<compile_context>
chip_gen: v6e
topology: v6e:2x2x1
jax: 0.10.0
libtpu: 0.0.40
codegen_flags: <defaults>
</compile_context>

<pallas_src>
import math
import jax
import jax.numpy as jnp
from jax.experimental import pallas as pl
from jax.experimental.pallas import tpu as pltpu  # noqa: F401  (TPU backend module)

# ---------------- small BERT-like config ----------------
VOCAB   = 100
SEQ     = 8
HID     = 32
NHEAD   = 4
HDIM    = HID // NHEAD
FFN     = 64
NLAYERS = 2
NCLASS  = 148                         # matches nn.Linear(768, 148) output dim
CPAD    = 128 * pl.cdiv(NCLASS, 128)  # 148 -> 256 lane-dense classifier width
BATCH   = 2
EPS     = 1e-12

# ---- lane offsets inside the packed per-layer weight slab wbig [HID, WBIG_W] ----
W_QKV  = 0                   # [HID, 3*HID]  fused Q|K|V
W_WO   = 3 * HID             # [HID, HID]    attention output proj
W_W1   = 4 * HID             # [HID, FFN]    FFN up-proj
WBIG_W = 4 * HID + FFN

# ---- lane offsets inside the packed per-layer vector slab lvecs [1, LVEC_W] ----
V_BQKV = 0                   # 3*HID
V_BO   = 3 * HID             # HID
V_LN1G = V_BO + HID
V_LN1B = V_LN1G + HID
V_B1   = V_LN1B + HID        # FFN
V_B2   = V_B1 + FFN          # HID
V_LN2G = V_B2 + HID
V_LN2B = V_LN2G + HID
LVEC_W = V_LN2B + HID        # 352

# ---- lane offsets inside the packed head vector slab hvecs [1, HVEC_W] ----
H_EMBG  = 0                  # HID  embedding LN gamma
H_EMBB  = HID                # HID  embedding LN beta
H_POOLB = 2 * HID            # HID  pooler bias
H_CLSB  = 3 * HID            # CPAD classifier bias (zero padded)
H_CLSM  = 3 * HID + CPAD     # CPAD classifier padding mask (0 / -1e30)
HVEC_W  = 3 * HID + 2 * CPAD # 608


# ---------------- shared math helpers (pure jnp, usable inside kernels) ----------------
def _layer_norm(x, g, b):
    mu = jnp.mean(x, axis=-1, keepdims=True)
    var = jnp.mean((x - mu) ** 2, axis=-1, keepdims=True)
    return (x - mu) * jax.lax.rsqrt(var + EPS) * g + b


def _gelu(x):
    # tanh-approximate GELU (BERT style)
    c = math.sqrt(2.0 / math.pi)
    return 0.5 * x * (1.0 + jnp.tanh(c * (x + 0.044715 * x * x * x)))


# ---------------- single fused Pallas kernel ----------------
def fused_bert_kernel(x0_ref, bias_ref, wbig_ref, w2_ref, lvecs_ref,
                      whead_ref, hvecs_ref, o_ref):
    # Activations: [B*S, HID] (batch folded onto sublanes), VMEM-resident throughout.
    x = _layer_norm(x0_ref[...],
                    hvecs_ref[:, H_EMBG:H_EMBG + HID],
                    hvecs_ref[:, H_EMBB:H_EMBB + HID])
    bias = bias_ref[...]                        # [B*S, B*S] block-diag + key-pad bias
    scale = 1.0 / math.sqrt(HDIM)

    for l in range(NLAYERS):                    # static unroll (NLAYERS = 2)
        # ---- attention: ONE full-width QKV matmul, heads sliced by lane offset ----
        qkv = (jnp.dot(x, wbig_ref[l, :, W_QKV:W_QKV + 3 * HID],
                       preferred_element_type=jnp.float32)
               + lvecs_ref[l, :, V_BQKV:V_BQKV + 3 * HID])          # [B*S, 3*HID]

        ctx_heads = []
        for h in range(NHEAD):                  # static unroll (NHEAD = 4)
            q = qkv[:, h * HDIM:(h + 1) * HDIM]                     # [B*S, D]
            k = qkv[:, HID + h * HDIM:HID + (h + 1) * HDIM]
            v = qkv[:, 2 * HID + h * HDIM:2 * HID + (h + 1) * HDIM]
            # Full-batch scores; cross-batch / padded keys are masked to -1e9 by
            # `bias`, so their softmax weight underflows to exactly 0 in f32.
            # (A fully-masked row would give garbage, not NaN — cannot happen here.)
            s = jnp.einsum('qd,kd->qk', q, k,
                           preferred_element_type=jnp.float32) * scale + bias
            s = s - jnp.max(s, axis=-1, keepdims=True)
            p = jnp.exp(s)
            p = p * pl.reciprocal(jnp.sum(p, axis=-1, keepdims=True), approx=True)
            ctx_heads.append(jnp.dot(p, v, preferred_element_type=jnp.float32))
        ctx = jnp.concatenate(ctx_heads, axis=-1)                   # [B*S, HID]

        attn = (jnp.dot(ctx, wbig_ref[l, :, W_WO:W_WO + HID],
                        preferred_element_type=jnp.float32)
                + lvecs_ref[l, :, V_BO:V_BO + HID])
        h1 = _layer_norm(x + attn,
                         lvecs_ref[l, :, V_LN1G:V_LN1G + HID],
                         lvecs_ref[l, :, V_LN1B:V_LN1B + HID])
        ff = _gelu(jnp.dot(h1, wbig_ref[l, :, W_W1:W_W1 + FFN],
                           preferred_element_type=jnp.float32)
                   + lvecs_ref[l, :, V_B1:V_B1 + FFN])
        ff = (jnp.dot(ff, w2_ref[l], preferred_element_type=jnp.float32)
              + lvecs_ref[l, :, V_B2:V_B2 + HID])
        x = _layer_norm(h1 + ff,
                        lvecs_ref[l, :, V_LN2G:V_LN2G + HID],
                        lvecs_ref[l, :, V_LN2B:V_LN2B + HID])

    # ---- pooler + classifier on ALL rows (rows independent; CLS rows sliced in
    #      the wrapper) — avoids 1-row sublane gathers, keeps stores lane-dense ----
    pooled = jnp.tanh(jnp.dot(x, whead_ref[:, 0:HID],
                              preferred_element_type=jnp.float32)
                      + hvecs_ref[:, H_POOLB:H_POOLB + HID])
    # nn.Dropout(0.5) is the identity at inference time.
    logits = (jnp.dot(pooled, whead_ref[:, HID:HID + CPAD],
                      preferred_element_type=jnp.float32)
              + hvecs_ref[:, H_CLSB:H_CLSB + CPAD])
    logits = jnp.maximum(logits, 0.0)                               # ReLU
    logits = logits + hvecs_ref[:, H_CLSM:H_CLSM + CPAD]            # -1e30 on pad lanes
    m = jnp.max(logits, axis=-1, keepdims=True)
    e = jnp.exp(logits - m)
    o_ref[...] = e * pl.reciprocal(jnp.sum(e, axis=-1, keepdims=True), approx=False)


# ---------------- wrapper: weight packing + single pallas_call ----------------
def pack_params(params):
    wbig, w2s, lvecs = [], [], []
    for lp in params['layers']:
        wqkv = jnp.concatenate([lp['wq'], lp['wk'], lp['wv']], axis=1)   # [H, 3H]
        wbig.append(jnp.concatenate([wqkv, lp['wo'], lp['w1']], axis=1)) # [H, 4H+F]
        w2s.append(lp['w2'])                                             # [F, H]
        lvecs.append(jnp.concatenate(
            [lp['bq'], lp['bk'], lp['bv'], lp['bo'],
             lp['ln1_g'], lp['ln1_b'], lp['b1'], lp['b2'],
             lp['ln2_g'], lp['ln2_b']], axis=1))                         # [1, 352]

    cls_w_pad = jnp.pad(params['cls_w'], ((0, 0), (0, CPAD - NCLASS)))
    cls_b_pad = jnp.pad(params['cls_b'], ((0, 0), (0, CPAD - NCLASS)))
    cls_mask = jnp.where(jnp.arange(CPAD)[None, :] < NCLASS,
                         0.0, -1e30).astype(jnp.float32)                 # [1, CPAD]

    return dict(
        wbig=jnp.stack(wbig, axis=0),                                    # [L, H, 192]
        w2=jnp.stack(w2s, axis=0),                                       # [L, F, H]
        lvecs=jnp.stack(lvecs, axis=0),                                  # [L, 1, 352]
        whead=jnp.concatenate([params['pooler_w'], cls_w_pad], axis=1),  # [H, H+CPAD]
        hvecs=jnp.concatenate([params['emb_ln_g'], params['emb_ln_b'],
                               params['pooler_b'], cls_b_pad, cls_mask],
                              axis=1),                                   # [1, 608]
    )


def build_attn_bias(mask):
    """[B*S, B*S] additive bias: 0 for same-batch valid keys, -1e9 otherwise."""
    B, S = mask.shape
    rows = jnp.arange(B * S)
    same_batch = (rows[:, None] // S) == (rows[None, :] // S)
    key_valid = mask.reshape(B * S).astype(bool)[None, :]
    return jnp.where(same_batch & key_valid, 0.0, -1e9).astype(jnp.float32)


def bert_classifier_forward(params, input_ids, mask):
    B, S = input_ids.shape
    # Embedding gather is glue JAX; everything after it runs in ONE fused kernel.
    x0 = (params['word_emb'][input_ids]
          + params['pos_emb'][None, :S, :]
          + params['type_emb'][None, 0:1, :]).reshape(B * S, HID)
    attn_bias = build_attn_bias(mask)
    pk = pack_params(params)

    probs_pad = pl.pallas_call(
        fused_bert_kernel,
        out_shape=jax.ShapeDtypeStruct((B * S, CPAD), jnp.float32),
        # no grid / specs: whole (tiny) arrays are placed in VMEM for the single step
    )(x0, attn_bias, pk['wbig'], pk['w2'], pk['lvecs'], pk['whead'], pk['hvecs'])

    # CLS rows (row b*SEQ per batch), real classes only.
    return probs_pad[0::S, :NCLASS]


# ---------------- pure-JAX reference (for verification) ----------------
def reference_forward(params, input_ids, mask):
    B, S = input_ids.shape
    x = (params['word_emb'][input_ids]
         + params['pos_emb'][None, :S, :]
         + params['type_emb'][None, 0:1, :])
    x = _layer_norm(x, params['emb_ln_g'], params['emb_ln_b'])
    mbias = (1.0 - mask.astype(jnp.float32))[:, None, None, :] * -1e9  # [B,1,1,S]

    def split_heads(t):
        return t.reshape(B, S, NHEAD, HDIM).transpose(0, 2, 1, 3)

    for lp in params['layers']:
        q = split_heads(x @ lp['wq'] + lp['bq'])
        k = split_heads(x @ lp['wk'] + lp['bk'])
        v = split_heads(x @ lp['wv'] + lp['bv'])
        s = jnp.einsum('bhqd,bhkd->bhqk', q, k) / math.sqrt(HDIM) + mbias
        p = jax.nn.softmax(s, axis=-1)
        ctx = jnp.einsum('bhqk,bhkd->bhqd', p, v).transpose(0, 2, 1, 3).reshape(B, S, HID)
        attn = ctx @ lp['wo'] + lp['bo']
        h1 = _layer_norm(x + attn, lp['ln1_g'], lp['ln1_b'])
        ff = _gelu(h1 @ lp['w1'] + lp['b1']) @ lp['w2'] + lp['b2']
        x = _layer_norm(h1 + ff, lp['ln2_g'], lp['ln2_b'])

    pooled = jnp.tanh(x[:, 0, :] @ params['pooler_w'] + params['pooler_b'])
    logits = jnp.maximum(pooled @ params['cls_w'] + params['cls_b'], 0.0)
    return jax.nn.softmax(logits, axis=-1)


# ---------------- deterministic parameter init ----------------
def init_params(key):
    def dense(k, fan_in, fan_out):
        k1, k2 = jax.random.split(k)
        w = jax.random.normal(k1, (fan_in, fan_out), jnp.float32) * 0.02
        b = jax.random.normal(k2, (1, fan_out), jnp.float32) * 0.02
        return w, b

    keys = jax.random.split(key, 8 + NLAYERS)
    p = {}
    p['word_emb'] = jax.random.normal(keys[0], (VOCAB, HID), jnp.float32) * 0.02
    p['pos_emb']  = jax.random.normal(keys[1], (SEQ, HID), jnp.float32) * 0.02
    p['type_emb'] = jax.random.normal(keys[2], (2, HID), jnp.float32) * 0.02
    p['emb_ln_g'] = jnp.ones((1, HID), jnp.float32)
    p['emb_ln_b'] = jnp.zeros((1, HID), jnp.float32)

    layers = []
    for l in range(NLAYERS):
        lk = jax.random.split(keys[3 + l], 6)
        wq, bq = dense(lk[0], HID, HID)
        wk, bk = dense(lk[1], HID, HID)
        wv, bv = dense(lk[2], HID, HID)
        wo, bo = dense(lk[3], HID, HID)
        w1, b1 = dense(lk[4], HID, FFN)
        w2, b2 = dense(lk[5], FFN, HID)
        layers.append(dict(
            wq=wq, bq=bq, wk=wk, bk=bk, wv=wv, bv=bv, wo=wo, bo=bo,
            ln1_g=jnp.ones((1, HID), jnp.float32), ln1_b=jnp.zeros((1, HID), jnp.float32),
            w1=w1, b1=b1, w2=w2, b2=b2,
            ln2_g=jnp.ones((1, HID), jnp.float32), ln2_b=jnp.zeros((1, HID), jnp.float32)))
    p['layers'] = layers

    p['pooler_w'], p['pooler_b'] = dense(keys[3 + NLAYERS], HID, HID)
    p['cls_w'], p['cls_b'] = dense(keys[4 + NLAYERS], HID, NCLASS)
    return p


if __name__ == "__main__":
    key = jax.random.PRNGKey(0)
    pkey, ikey = jax.random.split(key)
    params = init_params(pkey)

    input_ids = jax.random.randint(ikey, (BATCH, SEQ), 0, VOCAB, dtype=jnp.int32)
    mask = jnp.array([[1, 1, 1, 1, 1, 1, 1, 1],
                      [1, 1, 1, 1, 1, 1, 0, 0]], dtype=jnp.float32)

    probs = bert_classifier_forward(params, input_ids, mask)
    probs = jax.block_until_ready(probs)

    ref = jax.block_until_ready(reference_forward(params, input_ids, mask))

    assert probs.shape == (BATCH, NCLASS)
    assert bool(jnp.all(jnp.isfinite(probs)))
    assert bool(jnp.allclose(jnp.sum(probs, axis=-1), 1.0, atol=1e-4))
    assert bool(jnp.allclose(probs, ref, atol=1e-4)), "mismatch vs pure-JAX reference"

    # TODO(synk): inference()'s torch.topk is host-side post-processing and is not
    # implemented as a kernel.
    print("KERNEL_OK")
</pallas_src>

<mosaic_0001>
module attributes {stable_mosaic.version = 11 : i64} {
  func.func @fused_bert_kernel(%arg0: memref<16x32xf32, #tpu.memory_space<vmem>>, %arg1: memref<16x16xf32, #tpu.memory_space<vmem>>, %arg2: memref<2x32x192xf32, #tpu.memory_space<vmem>>, %arg3: memref<2x64x32xf32, #tpu.memory_space<vmem>>, %arg4: memref<2x1x352xf32, #tpu.memory_space<vmem>>, %arg5: memref<32x288xf32, #tpu.memory_space<vmem>>, %arg6: memref<1x608xf32, #tpu.memory_space<vmem>>, %arg7: memref<16x256xf32, #tpu.memory_space<vmem>>) attributes {dimension_semantics = [], scalar_prefetch = 0 : i64, scratch_operands = 0 : i64, tpu.core_type = #tpu.core_type<tc>} {
    %c0 = arith.constant 0 : index
    %c0_0 = arith.constant 0 : index
    %0 = vector.load %arg0[%c0, %c0_0] : memref<16x32xf32, #tpu.memory_space<vmem>>, vector<16x32xf32>
    %c0_1 = arith.constant 0 : index
    %c0_2 = arith.constant 0 : index
    %1 = vector.load %arg6[%c0_1, %c0_2] : memref<1x608xf32, #tpu.memory_space<vmem>>, vector<1x32xf32>
    %c0_3 = arith.constant 0 : index
    %c32 = arith.constant 32 : index
    %2 = vector.load %arg6[%c0_3, %c32] : memref<1x608xf32, #tpu.memory_space<vmem>>, vector<1x32xf32>
    %cst = arith.constant dense<0.000000e+00> : vector<16xf32>
    %3 = vector.multi_reduction <add>, %0, %cst [1] : vector<16x32xf32> to vector<16xf32>
    %4 = vector.shape_cast %3 : vector<16xf32> to vector<16x1xf32>
    %cst_4 = arith.constant 3.200000e+01 : f32
    %5 = vector.broadcast %cst_4 : f32 to vector<16x1xf32>
    %6 = arith.divf %4, %5 : vector<16x1xf32>
    %7 = vector.broadcast %6 : vector<16x1xf32> to vector<16x32xf32>
    %8 = arith.subf %0, %7 : vector<16x32xf32>
    %9 = arith.mulf %8, %8 : vector<16x32xf32>
    %cst_5 = arith.constant dense<0.000000e+00> : vector<16xf32>
    %10 = vector.multi_reduction <add>, %9, %cst_5 [1] : vector<16x32xf32> to vector<16xf32>
    %11 = vector.shape_cast %10 : vector<16xf32> to vector<16x1xf32>
    %cst_6 = arith.constant 3.200000e+01 : f32
    %12 = vector.broadcast %cst_6 : f32 to vector<16x1xf32>
    %13 = arith.divf %11, %12 : vector<16x1xf32>
    %14 = vector.broadcast %6 : vector<16x1xf32> to vector<16x32xf32>
    %15 = arith.subf %0, %14 : vector<16x32xf32>
    %cst_7 = arith.constant 9.99999996E-13 : f32
    %16 = vector.broadcast %cst_7 : f32 to vector<16x1xf32>
    %17 = arith.addf %13, %16 : vector<16x1xf32>
    %18 = math.rsqrt %17 : vector<16x1xf32>
    %19 = vector.broadcast %18 : vector<16x1xf32> to vector<16x32xf32>
    %20 = arith.mulf %15, %19 : vector<16x32xf32>
    %21 = vector.broadcast %1 : vector<1x32xf32> to vector<16x32xf32>
    %22 = arith.mulf %20, %21 : vector<16x32xf32>
    %23 = vector.broadcast %2 : vector<1x32xf32> to vector<16x32xf32>
    %24 = arith.addf %22, %23 : vector<16x32xf32>
    %c0_8 = arith.constant 0 : index
    %c0_9 = arith.constant 0 : index
    %25 = vector.load %arg1[%c0_8, %c0_9] : memref<16x16xf32, #tpu.memory_space<vmem>>, vector<16x16xf32>
    %c0_10 = arith.constant 0 : index
    %c0_11 = arith.constant 0 : index
    %c0_12 = arith.constant 0 : index
    %26 = vector.load %arg2[%c0_10, %c0_11, %c0_12] : memref<2x32x192xf32, #tpu.memory_space<vmem>>, vector<1x32x96xf32>
    %27 = vector.shape_cast %26 : vector<1x32x96xf32> to vector<32x96xf32>
    %cst_13 = arith.constant dense<0.000000e+00> : vector<16x96xf32>
    %28 = tpu.matmul %24, %27, %cst_13 {dimension_numbers = #tpu.dot_dimension_numbers<[1], [0], [0], [1], [0, 0, 1, 1], [], []>} : vector<16x32xf32>, vector<32x96xf32>, vector<16x96xf32> -> vector<16x96xf32>
    %c0_14 = arith.constant 0 : index
    %c0_15 = arith.constant 0 : index
    %c0_16 = arith.constant 0 : index
    %29 = vector.load %arg4[%c0_14, %c0_15, %c0_16] : memref<2x1x352xf32, #tpu.memory_space<vmem>>, vector<1x1x96xf32>
    %30 = vector.shape_cast %29 : vector<1x1x96xf32> to vector<1x96xf32>
    %31 = vector.broadcast %30 : vector<1x96xf32> to vector<16x96xf32>
    %32 = arith.addf %28, %31 : vector<16x96xf32>
    %33 = vector.extract_strided_slice %32 {offsets = [0, 0], sizes = [16, 8], strides = [1, 1]} : vector<16x96xf32> to vector<16x8xf32>
    %34 = vector.extract_strided_slice %32 {offsets = [0, 32], sizes = [16, 8], strides = [1, 1]} : vector<16x96xf32> to vector<16x8xf32>
    %35 = vector.extract_strided_slice %32 {offsets = [0, 64], sizes = [16, 8], strides = [1, 1]} : vector<16x96xf32> to vector<16x8xf32>
    "tpu.trace_start"() <{level = 10 : i32, message = "qd,kd->qk"}> : () -> ()
    %cst_17 = arith.constant dense<0.000000e+00> : vector<16x16xf32>
    %36 = tpu.matmul %33, %34, %cst_17 {dimension_numbers = #tpu.dot_dimension_numbers<[1], [1], [0], [0], [0, 0, 1, 0], [], []>} : vector<16x8xf32>, vector<16x8xf32>, vector<16x16xf32> -> vector<16x16xf32>
    "tpu.trace_stop"() : () -> ()
    %cst_18 = arith.constant 0.353553385 : f32
    %37 = vector.broadcast %cst_18 : f32 to vector<16x16xf32>
    %38 = arith.mulf %36, %37 : vector<16x16xf32>
    %39 = arith.addf %38, %25 : vector<16x16xf32>
    %cst_19 = arith.constant dense<0xFF800000> : vector<16xf32>
    %40 = vector.multi_reduction <maximumf>, %39, %cst_19 [1] : vector<16x16xf32> to vector<16xf32>
    %41 = vector.shape_cast %40 : vector<16xf32> to vector<16x1xf32>
    %42 = vector.broadcast %41 : vector<16x1xf32> to vector<16x16xf32>
    %43 = arith.subf %39, %42 : vector<16x16xf32>
    %44 = math.exp %43 : vector<16x16xf32>
    %cst_20 = arith.constant dense<0.000000e+00> : vector<16xf32>
    %45 = vector.multi_reduction <add>, %44, %cst_20 [1] : vector<16x16xf32> to vector<16xf32>
    %46 = vector.shape_cast %45 : vector<16xf32> to vector<16x1xf32>
    %47 = tpu.reciprocal %46 {approx = true} : vector<16x1xf32> -> vector<16x1xf32>
    %48 = vector.broadcast %47 : vector<16x1xf32> to vector<16x16xf32>
    %49 = arith.mulf %44, %48 : vector<16x16xf32>
    %cst_21 = arith.constant dense<0.000000e+00> : vector<16x8xf32>
    %50 = tpu.matmul %49, %35, %cst_21 {dimension_numbers = #tpu.dot_dimension_numbers<[1], [0], [0], [1], [0, 0, 1, 1], [], []>} : vector<16x16xf32>, vector<16x8xf32>, vector<16x8xf32> -> vector<16x8xf32>
    %51 = vector.extract_strided_slice %32 {offsets = [0, 8], sizes = [16, 8], strides = [1, 1]} : vector<16x96xf32> to vector<16x8xf32>
    %52 = vector.extract_strided_slice %32 {offsets = [0, 40], sizes = [16, 8], strides = [1, 1]} : vector<16x96xf32> to vector<16x8xf32>
    %53 = vector.extract_strided_slice %32 {offsets = [0, 72], sizes = [16, 8], strides = [1, 1]} : vector<16x96xf32> to vector<16x8xf32>
    "tpu.trace_start"() <{level = 10 : i32, message = "qd,kd->qk"}> : () -> ()
    %cst_22 = arith.constant dense<0.000000e+00> : vector<16x16xf32>
    %54 = tpu.matmul %51, %52, %cst_22 {dimension_numbers = #tpu.dot_dimension_numbers<[1], [1], [0], [0], [0, 0, 1, 0], [], []>} : vector<16x8xf32>, vector<16x8xf32>, vector<16x16xf32> -> vector<16x16xf32>
    "tpu.trace_stop"() : () -> ()
    %cst_23 = arith.constant 0.353553385 : f32
    %55 = vector.broadcast %cst_23 : f32 to vector<16x16xf32>
    %56 = arith.mulf %54, %55 : vector<16x16xf32>
    %57 = arith.addf %56, %25 : vector<16x16xf32>
    %cst_24 = arith.constant dense<0xFF800000> : vector<16xf32>
    %58 = vector.multi_reduction <maximumf>, %57, %cst_24 [1] : vector<16x16xf32> to vector<16xf32>
    %59 = vector.shape_cast %58 : vector<16xf32> to vector<16x1xf32>
    %60 = vector.broadcast %59 : vector<16x1xf32> to vector<16x16xf32>
    %61 = arith.subf %57, %60 : vector<16x16xf32>
    %62 = math.exp %61 : vector<16x16xf32>
    %cst_25 = arith.constant dense<0.000000e+00> : vector<16xf32>
    %63 = vector.multi_reduction <add>, %62, %cst_25 [1] : vector<16x16xf32> to vector<16xf32>
    %64 = vector.shape_cast %63 : vector<16xf32> to vector<16x1xf32>
    %65 = tpu.reciprocal %64 {approx = true} : vector<16x1xf32> -> vector<16x1xf32>
    %66 = vector.broadcast %65 : vector<16x1xf32> to vector<16x16xf32>
    %67 = arith.mulf %62, %66 : vector<16x16xf32>
    %cst_26 = arith.constant dense<0.000000e+00> : vector<16x8xf32>
    %68 = tpu.matmul %67, %53, %cst_26 {dimension_numbers = #tpu.dot_dimension_numbers<[1], [0], [0], [1], [0, 0, 1, 1], [], []>} : vector<16x16xf32>, vector<16x8xf32>, vector<16x8xf32> -> vector<16x8xf32>
    %69 = vector.extract_strided_slice %32 {offsets = [0, 16], sizes = [16, 8], strides = [1, 1]} : vector<16x96xf32> to vector<16x8xf32>
    %70 = vector.extract_strided_slice %32 {offsets = [0, 48], sizes = [16, 8], strides = [1, 1]} : vector<16x96xf32> to vector<16x8xf32>
    %71 = vector.extract_strided_slice %32 {offsets = [0, 80], sizes = [16, 8], strides = [1, 1]} : vector<16x96xf32> to vector<16x8xf32>
    "tpu.trace_start"() <{level = 10 : i32, message = "qd,kd->qk"}> : () -> ()
    %cst_27 = arith.constant dense<0.000000e+00> : vector<16x16xf32>
    %72 = tpu.matmul %69, %70, %cst_27 {dimension_numbers = #tpu.dot_dimension_numbers<[1], [1], [0], [0], [0, 0, 1, 0], [], []>} : vector<16x8xf32>, vector<16x8xf32>, vector<16x16xf32> -> vector<16x16xf32>
    "tpu.trace_stop"() : () -> ()
    %cst_28 = arith.constant 0.353553385 : f32
    %73 = vector.broadcast %cst_28 : f32 to vector<16x16xf32>
    %74 = arith.mulf %72, %73 : vector<16x16xf32>
    %75 = arith.addf %74, %25 : vector<16x16xf32>
    %cst_29 = arith.constant dense<0xFF800000> : vector<16xf32>
    %76 = vector.multi_reduction <maximumf>, %75, %cst_29 [1] : vector<16x16xf32> to vector<16xf32>
    %77 = vector.shape_cast %76 : vector<16xf32> to vector<16x1xf32>
    %78 = vector.broadcast %77 : vector<16x1xf32> to vector<16x16xf32>
    %79 = arith.subf %75, %78 : vector<16x16xf32>
    %80 = math.exp %79 : vector<16x16xf32>
    %cst_30 = arith.constant dense<0.000000e+00> : vector<16xf32>
    %81 = vector.multi_reduction <add>, %80, %cst_30 [1] : vector<16x16xf32> to vector<16xf32>
    %82 = vector.shape_cast %81 : vector<16xf32> to vector<16x1xf32>
    %83 = tpu.reciprocal %82 {approx = true} : vector<16x1xf32> -> vector<16x1xf32>
    %84 = vector.broadcast %83 : vector<16x1xf32> to vector<16x16xf32>
    %85 = arith.mulf %80, %84 : vector<16x16xf32>
    %cst_31 = arith.constant dense<0.000000e+00> : vector<16x8xf32>
    %86 = tpu.matmul %85, %71, %cst_31 {dimension_numbers = #tpu.dot_dimension_numbers<[1], [0], [0], [1], [0, 0, 1, 1], [], []>} : vector<16x16xf32>, vector<16x8xf32>, vector<16x8xf32> -> vector<16x8xf32>
    %87 = vector.extract_strided_slice %32 {offsets = [0, 24], sizes = [16, 8], strides = [1, 1]} : vector<16x96xf32> to vector<16x8xf32>
    %88 = vector.extract_strided_slice %32 {offsets = [0, 56], sizes = [16, 8], strides = [1, 1]} : vector<16x96xf32> to vector<16x8xf32>
    %89 = vector.extract_strided_slice %32 {offsets = [0, 88], sizes = [16, 8], strides = [1, 1]} : vector<16x96xf32> to vector<16x8xf32>
    "tpu.trace_start"() <{level = 10 : i32, message = "qd,kd->qk"}> : () -> ()
    %cst_32 = arith.constant dense<0.000000e+00> : vector<16x16xf32>
    %90 = tpu.matmul %87, %88, %cst_32 {dimension_numbers = #tpu.dot_dimension_numbers<[1], [1], [0], [0], [0, 0, 1, 0], [], []>} : vector<16x8xf32>, vector<16x8xf32>, vector<16x16xf32> -> vector<16x16xf32>
    "tpu.trace_stop"() : () -> ()
    %cst_33 = arith.constant 0.353553385 : f32
    %91 = vector.broadcast %cst_33 : f32 to vector<16x16xf32>
    %92 = arith.mulf %90, %91 : vector<16x16xf32>
    %93 = arith.addf %92, %25 : vector<16x16xf32>
    %cst_34 = arith.constant dense<0xFF800000> : vector<16xf32>
    %94 = vector.multi_reduction <maximumf>, %93, %cst_34 [1] : vector<16x16xf32> to vector<16xf32>
    %95 = vector.shape_cast %94 : vector<16xf32> to vector<16x1xf32>
    %96 = vector.broadcast %95 : vector<16x1xf32> to vector<16x16xf32>
    %97 = arith.subf %93, %96 : vector<16x16xf32>
    %98 = math.exp %97 : vector<16x16xf32>
    %cst_35 = arith.constant dense<0.000000e+00> : vector<16xf32>
    %99 = vector.multi_reduction <add>, %98, %cst_35 [1] : vector<16x16xf32> to vector<16xf32>
    %100 = vector.shape_cast %99 : vector<16xf32> to vector<16x1xf32>
    %101 = tpu.reciprocal %100 {approx = true} : vector<16x1xf32> -> vector<16x1xf32>
    %102 = vector.broadcast %101 : vector<16x1xf32> to vector<16x16xf32>
    %103 = arith.mulf %98, %102 : vector<16x16xf32>
    %cst_36 = arith.constant dense<0.000000e+00> : vector<16x8xf32>
    %104 = tpu.matmul %103, %89, %cst_36 {dimension_numbers = #tpu.dot_dimension_numbers<[1], [0], [0], [1], [0, 0, 1, 1], [], []>} : vector<16x16xf32>, vector<16x8xf32>, vector<16x8xf32> -> vector<16x8xf32>
    %105 = tpu.concatenate %50, %68, %86, %104 in 1 : vector<16x8xf32>, vector<16x8xf32>, vector<16x8xf32>, vector<16x8xf32> -> vector<16x32xf32>
    %c0_37 = arith.constant 0 : index
    %c0_38 = arith.constant 0 : index
    %c96 = arith.constant 96 : index
    %106 = vector.load %arg2[%c0_37, %c0_38, %c96] : memref<2x32x192xf32, #tpu.memory_space<vmem>>, vector<1x32x32xf32>
    %107 = vector.shape_cast %106 : vector<1x32x32xf32> to vector<32x32xf32>
    %cst_39 = arith.constant dense<0.000000e+00> : vector<16x32xf32>
    %108 = tpu.matmul %105, %107, %cst_39 {dimension_numbers = #tpu.dot_dimension_numbers<[1], [0], [0], [1], [0, 0, 1, 1], [], []>} : vector<16x32xf32>, vector<32x32xf32>, vector<16x32xf32> -> vector<16x32xf32>
    %c0_40 = arith.constant 0 : index
    %c0_41 = arith.constant 0 : index
    %c96_42 = arith.constant 96 : index
    %109 = vector.load %arg4[%c0_40, %c0_41, %c96_42] : memref<2x1x352xf32, #tpu.memory_space<vmem>>, vector<1x1x32xf32>
    %110 = vector.shape_cast %109 : vector<1x1x32xf32> to vector<1x32xf32>
    %111 = vector.broadcast %110 : vector<1x32xf32> to vector<16x32xf32>
    %112 = arith.addf %108, %111 : vector<16x32xf32>
    %113 = arith.addf %24, %112 : vector<16x32xf32>
    %c0_43 = arith.constant 0 : index
    %c0_44 = arith.constant 0 : index
    %c128 = arith.constant 128 : index
    %114 = vector.load %arg4[%c0_43, %c0_44, %c128] : memref<2x1x352xf32, #tpu.memory_space<vmem>>, vector<1x1x32xf32>
    %115 = vector.shape_cast %114 : vector<1x1x32xf32> to vector<1x32xf32>
    %c0_45 = arith.constant 0 : index
    %c0_46 = arith.constant 0 : index
    %c160 = arith.constant 160 : index
    %116 = vector.load %arg4[%c0_45, %c0_46, %c160] : memref<2x1x352xf32, #tpu.memory_space<vmem>>, vector<1x1x32xf32>
    %117 = vector.shape_cast %116 : vector<1x1x32xf32> to vector<1x32xf32>
    %cst_47 = arith.constant dense<0.000000e+00> : vector<16xf32>
    %118 = vector.multi_reduction <add>, %113, %cst_47 [1] : vector<16x32xf32> to vector<16xf32>
    %119 = vector.shape_cast %118 : vector<16xf32> to vector<16x1xf32>
    %cst_48 = arith.constant 3.200000e+01 : f32
    %120 = vector.broadcast %cst_48 : f32 to vector<16x1xf32>
    %121 = arith.divf %119, %120 : vector<16x1xf32>
    %122 = vector.broadcast %121 : vector<16x1xf32> to vector<16x32xf32>
    %123 = arith.subf %113, %122 : vector<16x32xf32>
    %124 = arith.mulf %123, %123 : vector<16x32xf32>
    %cst_49 = arith.constant dense<0.000000e+00> : vector<16xf32>
    %125 = vector.multi_reduction <add>, %124, %cst_49 [1] : vector<16x32xf32> to vector<16xf32>
    %126 = vector.shape_cast %125 : vector<16xf32> to vector<16x1xf32>
    %cst_50 = arith.constant 3.200000e+01 : f32
    %127 = vector.broadcast %cst_50 : f32 to vector<16x1xf32>
    %128 = arith.divf %126, %127 : vector<16x1xf32>
    %129 = vector.broadcast %121 : vector<16x1xf32> to vector<16x32xf32>
    %130 = arith.subf %113, %129 : vector<16x32xf32>
    %cst_51 = arith.constant 9.99999996E-13 : f32
    %131 = vector.broadcast %cst_51 : f32 to vector<16x1xf32>
    %132 = arith.addf %128, %131 : vector<16x1xf32>
    %133 = math.rsqrt %132 : vector<16x1xf32>
    %134 = vector.broadcast %133 : vector<16x1xf32> to vector<16x32xf32>
    %135 = arith.mulf %130, %134 : vector<16x32xf32>
    %136 = vector.broadcast %115 : vector<1x32xf32> to vector<16x32xf32>
    %137 = arith.mulf %135, %136 : vector<16x32xf32>
    %138 = vector.broadcast %117 : vector<1x32xf32> to vector<16x32xf32>
    %139 = arith.addf %137, %138 : vector<16x32xf32>
    %c0_52 = arith.constant 0 : index
    %c0_53 = arith.constant 0 : index
    %c128_54 = arith.constant 128 : index
    %140 = vector.load %arg2[%c0_52, %c0_53, %c128_54] : memref<2x32x192xf32, #tpu.memory_space<vmem>>, vector<1x32x64xf32>
    %141 = vector.shape_cast %140 : vector<1x32x64xf32> to vector<32x64xf32>
    %cst_55 = arith.constant dense<0.000000e+00> : vector<16x64xf32>
    %142 = tpu.matmul %139, %141, %cst_55 {dimension_numbers = #tpu.dot_dimension_numbers<[1], [0], [0], [1], [0, 0, 1, 1], [], []>} : vector<16x32xf32>, vector<32x64xf32>, vector<16x64xf32> -> vector<16x64xf32>
    %c0_56 = arith.constant 0 : index
    %c0_57 = arith.constant 0 : index
    %c192 = arith.constant 192 : index
    %143 = vector.load %arg4[%c0_56, %c0_57, %c192] : memref<2x1x352xf32, #tpu.memory_space<vmem>>, vector<1x1x64xf32>
    %144 = vector.shape_cast %143 : vector<1x1x64xf32> to vector<1x64xf32>
    %145 = vector.broadcast %144 : vector<1x64xf32> to vector<16x64xf32>
    %146 = arith.addf %142, %145 : vector<16x64xf32>
    %cst_58 = arith.constant 5.000000e-01 : f32
    %147 = vector.broadcast %cst_58 : f32 to vector<16x64xf32>
    %148 = arith.mulf %147, %146 : vector<16x64xf32>
    %cst_59 = arith.constant 4.471500e-02 : f32
    %149 = vector.broadcast %cst_59 : f32 to vector<16x64xf32>
    %150 = arith.mulf %149, %146 : vector<16x64xf32>
    %151 = arith.mulf %150, %146 : vector<16x64xf32>
    %152 = arith.mulf %151, %146 : vector<16x64xf32>
    %153 = arith.addf %146, %152 : vector<16x64xf32>
    %cst_60 = arith.constant 0.797884583 : f32
    %154 = vector.broadcast %cst_60 : f32 to vector<16x64xf32>
    %155 = arith.mulf %154, %153 : vector<16x64xf32>
    %156 = math.tanh %155 : vector<16x64xf32>
    %cst_61 = arith.constant 1.000000e+00 : f32
    %157 = vector.broadcast %cst_61 : f32 to vector<16x64xf32>
    %158 = arith.addf %157, %156 : vector<16x64xf32>
    %159 = arith.mulf %148, %158 : vector<16x64xf32>
    %c0_62 = arith.constant 0 : index
    %c0_63 = arith.constant 0 : index
    %c0_64 = arith.constant 0 : index
    %160 = vector.load %arg3[%c0_62, %c0_63, %c0_64] : memref<2x64x32xf32, #tpu.memory_space<vmem>>, vector<1x64x32xf32>
    %161 = vector.shape_cast %160 : vector<1x64x32xf32> to vector<64x32xf32>
    %cst_65 = arith.constant dense<0.000000e+00> : vector<16x32xf32>
    %162 = tpu.matmul %159, %161, %cst_65 {dimension_numbers = #tpu.dot_dimension_numbers<[1], [0], [0], [1], [0, 0, 1, 1], [], []>} : vector<16x64xf32>, vector<64x32xf32>, vector<16x32xf32> -> vector<16x32xf32>
    %c0_66 = arith.constant 0 : index
    %c0_67 = arith.constant 0 : index
    %c256 = arith.constant 256 : index
    %163 = vector.load %arg4[%c0_66, %c0_67, %c256] : memref<2x1x352xf32, #tpu.memory_space<vmem>>, vector<1x1x32xf32>
    %164 = vector.shape_cast %163 : vector<1x1x32xf32> to vector<1x32xf32>
    %165 = vector.broadcast %164 : vector<1x32xf32> to vector<16x32xf32>
    %166 = arith.addf %162, %165 : vector<16x32xf32>
    %167 = arith.addf %139, %166 : vector<16x32xf32>
    %c0_68 = arith.constant 0 : index
    %c0_69 = arith.constant 0 : index
    %c288 = arith.constant 288 : index
    %168 = vector.load %arg4[%c0_68, %c0_69, %c288] : memref<2x1x352xf32, #tpu.memory_space<vmem>>, vector<1x1x32xf32>
    %169 = vector.shape_cast %168 : vector<1x1x32xf32> to vector<1x32xf32>
    %c0_70 = arith.constant 0 : index
    %c0_71 = arith.constant 0 : index
    %c320 = arith.constant 320 : index
    %170 = vector.load %arg4[%c0_70, %c0_71, %c320] : memref<2x1x352xf32, #tpu.memory_space<vmem>>, vector<1x1x32xf32>
    %171 = vector.shape_cast %170 : vector<1x1x32xf32> to vector<1x32xf32>
    %cst_72 = arith.constant dense<0.000000e+00> : vector<16xf32>
    %172 = vector.multi_reduction <add>, %167, %cst_72 [1] : vector<16x32xf32> to vector<16xf32>
    %173 = vector.shape_cast %172 : vector<16xf32> to vector<16x1xf32>
    %cst_73 = arith.constant 3.200000e+01 : f32
    %174 = vector.broadcast %cst_73 : f32 to vector<16x1xf32>
    %175 = arith.divf %173, %174 : vector<16x1xf32>
    %176 = vector.broadcast %175 : vector<16x1xf32> to vector<16x32xf32>
    %177 = arith.subf %167, %176 : vector<16x32xf32>
    %178 = arith.mulf %177, %177 : vector<16x32xf32>
    %cst_74 = arith.constant dense<0.000000e+00> : vector<16xf32>
    %179 = vector.multi_reduction <add>, %178, %cst_74 [1] : vector<16x32xf32> to vector<16xf32>
    %180 = vector.shape_cast %179 : vector<16xf32> to vector<16x1xf32>
    %cst_75 = arith.constant 3.200000e+01 : f32
    %181 = vector.broadcast %cst_75 : f32 to vector<16x1xf32>
    %182 = arith.divf %180, %181 : vector<16x1xf32>
    %183 = vector.broadcast %175 : vector<16x1xf32> to vector<16x32xf32>
    %184 = arith.subf %167, %183 : vector<16x32xf32>
    %cst_76 = arith.constant 9.99999996E-13 : f32
    %185 = vector.broadcast %cst_76 : f32 to vector<16x1xf32>
    %186 = arith.addf %182, %185 : vector<16x1xf32>
    %187 = math.rsqrt %186 : vector<16x1xf32>
    %188 = vector.broadcast %187 : vector<16x1xf32> to vector<16x32xf32>
    %189 = arith.mulf %184, %188 : vector<16x32xf32>
    %190 = vector.broadcast %169 : vector<1x32xf32> to vector<16x32xf32>
    %191 = arith.mulf %189, %190 : vector<16x32xf32>
    %192 = vector.broadcast %171 : vector<1x32xf32> to vector<16x32xf32>
    %193 = arith.addf %191, %192 : vector<16x32xf32>
    %c1 = arith.constant 1 : index
    %c0_77 = arith.constant 0 : index
    %c0_78 = arith.constant 0 : index
    %194 = vector.load %arg2[%c1, %c0_77, %c0_78] : memref<2x32x192xf32, #tpu.memory_space<vmem>>, vector<1x32x96xf32>
    %195 = vector.shape_cast %194 : vector<1x32x96xf32> to vector<32x96xf32>
    %cst_79 = arith.constant dense<0.000000e+00> : vector<16x96xf32>
    %196 = tpu.matmul %193, %195, %cst_79 {dimension_numbers = #tpu.dot_dimension_numbers<[1], [0], [0], [1], [0, 0, 1, 1], [], []>} : vector<16x32xf32>, vector<32x96xf32>, vector<16x96xf32> -> vector<16x96xf32>
    %c1_80 = arith.constant 1 : index
    %c0_81 = arith.constant 0 : index
    %c0_82 = arith.constant 0 : index
    %197 = vector.load %arg4[%c1_80, %c0_81, %c0_82] : memref<2x1x352xf32, #tpu.memory_space<vmem>>, vector<1x1x96xf32>
    %198 = vector.shape_cast %197 : vector<1x1x96xf32> to vector<1x96xf32>
    %199 = vector.broadcast %198 : vector<1x96xf32> to vector<16x96xf32>
    %200 = arith.addf %196, %199 : vector<16x96xf32>
    %201 = vector.extract_strided_slice %200 {offsets = [0, 0], sizes = [16, 8], strides = [1, 1]} : vector<16x96xf32> to vector<16x8xf32>
    %202 = vector.extract_strided_slice %200 {offsets = [0, 32], sizes = [16, 8], strides = [1, 1]} : vector<16x96xf32> to vector<16x8xf32>
    %203 = vector.extract_strided_slice %200 {offsets = [0, 64], sizes = [16, 8], strides = [1, 1]} : vector<16x96xf32> to vector<16x8xf32>
    "tpu.trace_start"() <{level = 10 : i32, message = "qd,kd->qk"}> : () -> ()
    %cst_83 = arith.constant dense<0.000000e+00> : vector<16x16xf32>
    %204 = tpu.matmul %201, %202, %cst_83 {dimension_numbers = #tpu.dot_dimension_numbers<[1], [1], [0], [0], [0, 0, 1, 0], [], []>} : vector<16x8xf32>, vector<16x8xf32>, vector<16x16xf32> -> vector<16x16xf32>
    "tpu.trace_stop"() : () -> ()
    %cst_84 = arith.constant 0.353553385 : f32
    %205 = vector.broadcast %cst_84 : f32 to vector<16x16xf32>
    %206 = arith.mulf %204, %205 : vector<16x16xf32>
    %207 = arith.addf %206, %25 : vector<16x16xf32>
    %cst_85 = arith.constant dense<0xFF800000> : vector<16xf32>
    %208 = vector.multi_reduction <maximumf>, %207, %cst_85 [1] : vector<16x16xf32> to vector<16xf32>
    %209 = vector.shape_cast %208 : vector<16xf32> to vector<16x1xf32>
    %210 = vector.broadcast %209 : vector<16x1xf32> to vector<16x16xf32>
    %211 = arith.subf %207, %210 : vector<16x16xf32>
    %212 = math.exp %211 : vector<16x16xf32>
    %cst_86 = arith.constant dense<0.000000e+00> : vector<16xf32>
    %213 = vector.multi_reduction <add>, %212, %cst_86 [1] : vector<16x16xf32> to vector<16xf32>
    %214 = vector.shape_cast %213 : vector<16xf32> to vector<16x1xf32>
    %215 = tpu.reciprocal %214 {approx = true} : vector<16x1xf32> -> vector<16x1xf32>
    %216 = vector.broadcast %215 : vector<16x1xf32> to vector<16x16xf32>
    %217 = arith.mulf %212, %216 : vector<16x16xf32>
    %cst_87 = arith.constant dense<0.000000e+00> : vector<16x8xf32>
    %218 = tpu.matmul %217, %203, %cst_87 {dimension_numbers = #tpu.dot_dimension_numbers<[1], [0], [0], [1], [0, 0, 1, 1], [], []>} : vector<16x16xf32>, vector<16x8xf32>, vector<16x8xf32> -> vector<16x8xf32>
    %219 = vector.extract_strided_slice %200 {offsets = [0, 8], sizes = [16, 8], strides = [1, 1]} : vector<16x96xf32> to vector<16x8xf32>
    %220 = vector.extract_strided_slice %200 {offsets = [0, 40], sizes = [16, 8], strides = [1, 1]} : vector<16x96xf32> to vector<16x8xf32>
    %221 = vector.extract_strided_slice %200 {offsets = [0, 72], sizes = [16, 8], strides = [1, 1]} : vector<16x96xf32> to vector<16x8xf32>
    "tpu.trace_start"() <{level = 10 : i32, message = "qd,kd->qk"}> : () -> ()
    %cst_88 = arith.constant dense<0.000000e+00> : vector<16x16xf32>
    %222 = tpu.matmul %219, %220, %cst_88 {dimension_numbers = #tpu.dot_dimension_numbers<[1], [1], [0], [0], [0, 0, 1, 0], [], []>} : vector<16x8xf32>, vector<16x8xf32>, vector<16x16xf32> -> vector<16x16xf32>
    "tpu.trace_stop"() : () -> ()
    %cst_89 = arith.constant 0.353553385 : f32
    %223 = vector.broadcast %cst_89 : f32 to vector<16x16xf32>
    %224 = arith.mulf %222, %223 : vector<16x16xf32>
    %225 = arith.addf %224, %25 : vector<16x16xf32>
    %cst_90 = arith.constant dense<0xFF800000> : vector<16xf32>
    %226 = vector.multi_reduction <maximumf>, %225, %cst_90 [1] : vector<16x16xf32> to vector<16xf32>
    %227 = vector.shape_cast %226 : vector<16xf32> to vector<16x1xf32>
    %228 = vector.broadcast %227 : vector<16x1xf32> to vector<16x16xf32>
    %229 = arith.subf %225, %228 : vector<16x16xf32>
    %230 = math.exp %229 : vector<16x16xf32>
    %cst_91 = arith.constant dense<0.000000e+00> : vector<16xf32>
    %231 = vector.multi_reduction <add>, %230, %cst_91 [1] : vector<16x16xf32> to vector<16xf32>
    %232 = vector.shape_cast %231 : vector<16xf32> to vector<16x1xf32>
    %233 = tpu.reciprocal %232 {approx = true} : vector<16x1xf32> -> vector<16x1xf32>
    %234 = vector.broadcast %233 : vector<16x1xf32> to vector<16x16xf32>
    %235 = arith.mulf %230, %234 : vector<16x16xf32>
    %cst_92 = arith.constant dense<0.000000e+00> : vector<16x8xf32>
    %236 = tpu.matmul %235, %221, %cst_92 {dimension_numbers = #tpu.dot_dimension_numbers<[1], [0], [0], [1], [0, 0, 1, 1], [], []>} : vector<16x16xf32>, vector<16x8xf32>, vector<16x8xf32> -> vector<16x8xf32>
    %237 = vector.extract_strided_slice %200 {offsets = [0, 16], sizes = [16, 8], strides = [1, 1]} : vector<16x96xf32> to vector<16x8xf32>
    %238 = vector.extract_strided_slice %200 {offsets = [0, 48], sizes = [16, 8], strides = [1, 1]} : vector<16x96xf32> to vector<16x8xf32>
    %239 = vector.extract_strided_slice %200 {offsets = [0, 80], sizes = [16, 8], strides = [1, 1]} : vector<16x96xf32> to vector<16x8xf32>
    "tpu.trace_start"() <{level = 10 : i32, message = "qd,kd->qk"}> : () -> ()
    %cst_93 = arith.constant dense<0.000000e+00> : vector<16x16xf32>
    %240 = tpu.matmul %237, %238, %cst_93 {dimension_numbers = #tpu.dot_dimension_numbers<[1], [1], [0], [0], [0, 0, 1, 0], [], []>} : vector<16x8xf32>, vector<16x8xf32>, vector<16x16xf32> -> vector<16x16xf32>
    "tpu.trace_stop"() : () -> ()
    %cst_94 = arith.constant 0.353553385 : f32
    %241 = vector.broadcast %cst_94 : f32 to vector<16x16xf32>
    %242 = arith.mulf %240, %241 : vector<16x16xf32>
    %243 = arith.addf %242, %25 : vector<16x16xf32>
    %cst_95 = arith.constant dense<0xFF800000> : vector<16xf32>
    %244 = vector.multi_reduction <maximumf>, %243, %cst_95 [1] : vector<16x16xf32> to vector<16xf32>
    %245 = vector.shape_cast %244 : vector<16xf32> to vector<16x1xf32>
    %246 = vector.broadcast %245 : vector<16x1xf32> to vector<16x16xf32>
    %247 = arith.subf %243, %246 : vector<16x16xf32>
    %248 = math.exp %247 : vector<16x16xf32>
    %cst_96 = arith.constant dense<0.000000e+00> : vector<16xf32>
    %249 = vector.multi_reduction <add>, %248, %cst_96 [1] : vector<16x16xf32> to vector<16xf32>
    %250 = vector.shape_cast %249 : vector<16xf32> to vector<16x1xf32>
    %251 = tpu.reciprocal %250 {approx = true} : vector<16x1xf32> -> vector<16x1xf32>
    %252 = vector.broadcast %251 : vector<16x1xf32> to vector<16x16xf32>
    %253 = arith.mulf %248, %252 : vector<16x16xf32>
    %cst_97 = arith.constant dense<0.000000e+00> : vector<16x8xf32>
    %254 = tpu.matmul %253, %239, %cst_97 {dimension_numbers = #tpu.dot_dimension_numbers<[1], [0], [0], [1], [0, 0, 1, 1], [], []>} : vector<16x16xf32>, vector<16x8xf32>, vector<16x8xf32> -> vector<16x8xf32>
    %255 = vector.extract_strided_slice %200 {offsets = [0, 24], sizes = [16, 8], strides = [1, 1]} : vector<16x96xf32> to vector<16x8xf32>
    %256 = vector.extract_strided_slice %200 {offsets = [0, 56], sizes = [16, 8], strides = [1, 1]} : vector<16x96xf32> to vector<16x8xf32>
    %257 = vector.extract_strided_slice %200 {offsets = [0, 88], sizes = [16, 8], strides = [1, 1]} : vector<16x96xf32> to vector<16x8xf32>
    "tpu.trace_start"() <{level = 10 : i32, message = "qd,kd->qk"}> : () -> ()
    %cst_98 = arith.constant dense<0.000000e+00> : vector<16x16xf32>
    %258 = tpu.matmul %255, %256, %cst_98 {dimension_numbers = #tpu.dot_dimension_numbers<[1], [1], [0], [0], [0, 0, 1, 0], [], []>} : vector<16x8xf32>, vector<16x8xf32>, vector<16x16xf32> -> vector<16x16xf32>
    "tpu.trace_stop"() : () -> ()
    %cst_99 = arith.constant 0.353553385 : f32
    %259 = vector.broadcast %cst_99 : f32 to vector<16x16xf32>
    %260 = arith.mulf %258, %259 : vector<16x16xf32>
    %261 = arith.addf %260, %25 : vector<16x16xf32>
    %cst_100 = arith.constant dense<0xFF800000> : vector<16xf32>
    %262 = vector.multi_reduction <maximumf>, %261, %cst_100 [1] : vector<16x16xf32> to vector<16xf32>
    %263 = vector.shape_cast %262 : vector<16xf32> to vector<16x1xf32>
    %264 = vector.broadcast %263 : vector<16x1xf32> to vector<16x16xf32>
    %265 = arith.subf %261, %264 : vector<16x16xf32>
    %266 = math.exp %265 : vector<16x16xf32>
    %cst_101 = arith.constant dense<0.000000e+00> : vector<16xf32>
    %267 = vector.multi_reduction <add>, %266, %cst_101 [1] : vector<16x16xf32> to vector<16xf32>
    %268 = vector.shape_cast %267 : vector<16xf32> to vector<16x1xf32>
    %269 = tpu.reciprocal %268 {approx = true} : vector<16x1xf32> -> vector<16x1xf32>
    %270 = vector.broadcast %269 : vector<16x1xf32> to vector<16x16xf32>
    %271 = arith.mulf %266, %270 : vector<16x16xf32>
    %cst_102 = arith.constant dense<0.000000e+00> : vector<16x8xf32>
    %272 = tpu.matmul %271, %257, %cst_102 {dimension_numbers = #tpu.dot_dimension_numbers<[1], [0], [0], [1], [0, 0, 1, 1], [], []>} : vector<16x16xf32>, vector<16x8xf32>, vector<16x8xf32> -> vector<16x8xf32>
    %273 = tpu.concatenate %218, %236, %254, %272 in 1 : vector<16x8xf32>, vector<16x8xf32>, vector<16x8xf32>, vector<16x8xf32> -> vector<16x32xf32>
    %c1_103 = arith.constant 1 : index
    %c0_104 = arith.constant 0 : index
    %c96_105 = arith.constant 96 : index
    %274 = vector.load %arg2[%c1_103, %c0_104, %c96_105] : memref<2x32x192xf32, #tpu.memory_space<vmem>>, vector<1x32x32xf32>
    %275 = vector.shape_cast %274 : vector<1x32x32xf32> to vector<32x32xf32>
    %cst_106 = arith.constant dense<0.000000e+00> : vector<16x32xf32>
    %276 = tpu.matmul %273, %275, %cst_106 {dimension_numbers = #tpu.dot_dimension_numbers<[1], [0], [0], [1], [0, 0, 1, 1], [], []>} : vector<16x32xf32>, vector<32x32xf32>, vector<16x32xf32> -> vector<16x32xf32>
    %c1_107 = arith.constant 1 : index
    %c0_108 = arith.constant 0 : index
    %c96_109 = arith.constant 96 : index
    %277 = vector.load %arg4[%c1_107, %c0_108, %c96_109] : memref<2x1x352xf32, #tpu.memory_space<vmem>>, vector<1x1x32xf32>
    %278 = vector.shape_cast %277 : vector<1x1x32xf32> to vector<1x32xf32>
    %279 = vector.broadcast %278 : vector<1x32xf32> to vector<16x32xf32>
    %280 = arith.addf %276, %279 : vector<16x32xf32>
    %281 = arith.addf %193, %280 : vector<16x32xf32>
    %c1_110 = arith.constant 1 : index
    %c0_111 = arith.constant 0 : index
    %c128_112 = arith.constant 128 : index
    %282 = vector.load %arg4[%c1_110, %c0_111, %c128_112] : memref<2x1x352xf32, #tpu.memory_space<vmem>>, vector<1x1x32xf32>
    %283 = vector.shape_cast %282 : vector<1x1x32xf32> to vector<1x32xf32>
    %c1_113 = arith.constant 1 : index
    %c0_114 = arith.constant 0 : index
    %c160_115 = arith.constant 160 : index
    %284 = vector.load %arg4[%c1_113, %c0_114, %c160_115] : memref<2x1x352xf32, #tpu.memory_space<vmem>>, vector<1x1x32xf32>
    %285 = vector.shape_cast %284 : vector<1x1x32xf32> to vector<1x32xf32>
    %cst_116 = arith.constant dense<0.000000e+00> : vector<16xf32>
    %286 = vector.multi_reduction <add>, %281, %cst_116 [1] : vector<16x32xf32> to vector<16xf32>
    %287 = vector.shape_cast %286 : vector<16xf32> to vector<16x1xf32>
    %cst_117 = arith.constant 3.200000e+01 : f32
    %288 = vector.broadcast %cst_117 : f32 to vector<16x1xf32>
    %289 = arith.divf %287, %288 : vector<16x1xf32>
    %290 = vector.broadcast %289 : vector<16x1xf32> to vector<16x32xf32>
    %291 = arith.subf %281, %290 : vector<16x32xf32>
    %292 = arith.mulf %291, %291 : vector<16x32xf32>
    %cst_118 = arith.constant dense<0.000000e+00> : vector<16xf32>
    %293 = vector.multi_reduction <add>, %292, %cst_118 [1] : vector<16x32xf32> to vector<16xf32>
    %294 = vector.shape_cast %293 : vector<16xf32> to vector<16x1xf32>
    %cst_119 = arith.constant 3.200000e+01 : f32
    %295 = vector.broadcast %cst_119 : f32 to vector<16x1xf32>
    %296 = arith.divf %294, %295 : vector<16x1xf32>
    %297 = vector.broadcast %289 : vector<16x1xf32> to vector<16x32xf32>
    %298 = arith.subf %281, %297 : vector<16x32xf32>
    %cst_120 = arith.constant 9.99999996E-13 : f32
    %299 = vector.broadcast %cst_120 : f32 to vector<16x1xf32>
    %300 = arith.addf %296, %299 : vector<16x1xf32>
    %301 = math.rsqrt %300 : vector<16x1xf32>
    %302 = vector.broadcast %301 : vector<16x1xf32> to vector<16x32xf32>
    %303 = arith.mulf %298, %302 : vector<16x32xf32>
    %304 = vector.broadcast %283 : vector<1x32xf32> to vector<16x32xf32>
    %305 = arith.mulf %303, %304 : vector<16x32xf32>
    %306 = vector.broadcast %285 : vector<1x32xf32> to vector<16x32xf32>
    %307 = arith.addf %305, %306 : vector<16x32xf32>
    %c1_121 = arith.constant 1 : index
    %c0_122 = arith.constant 0 : index
    %c128_123 = arith.constant 128 : index
    %308 = vector.load %arg2[%c1_121, %c0_122, %c128_123] : memref<2x32x192xf32, #tpu.memory_space<vmem>>, vector<1x32x64xf32>
    %309 = vector.shape_cast %308 : vector<1x32x64xf32> to vector<32x64xf32>
    %cst_124 = arith.constant dense<0.000000e+00> : vector<16x64xf32>
    %310 = tpu.matmul %307, %309, %cst_124 {dimension_numbers = #tpu.dot_dimension_numbers<[1], [0], [0], [1], [0, 0, 1, 1], [], []>} : vector<16x32xf32>, vector<32x64xf32>, vector<16x64xf32> -> vector<16x64xf32>
    %c1_125 = arith.constant 1 : index
    %c0_126 = arith.constant 0 : index
    %c192_127 = arith.constant 192 : index
    %311 = vector.load %arg4[%c1_125, %c0_126, %c192_127] : memref<2x1x352xf32, #tpu.memory_space<vmem>>, vector<1x1x64xf32>
    %312 = vector.shape_cast %311 : vector<1x1x64xf32> to vector<1x64xf32>
    %313 = vector.broadcast %312 : vector<1x64xf32> to vector<16x64xf32>
    %314 = arith.addf %310, %313 : vector<16x64xf32>
    %cst_128 = arith.constant 5.000000e-01 : f32
    %315 = vector.broadcast %cst_128 : f32 to vector<16x64xf32>
    %316 = arith.mulf %315, %314 : vector<16x64xf32>
    %cst_129 = arith.constant 4.471500e-02 : f32
    %317 = vector.broadcast %cst_129 : f32 to vector<16x64xf32>
    %318 = arith.mulf %317, %314 : vector<16x64xf32>
    %319 = arith.mulf %318, %314 : vector<16x64xf32>
    %320 = arith.mulf %319, %314 : vector<16x64xf32>
    %321 = arith.addf %314, %320 : vector<16x64xf32>
    %cst_130 = arith.constant 0.797884583 : f32
    %322 = vector.broadcast %cst_130 : f32 to vector<16x64xf32>
    %323 = arith.mulf %322, %321 : vector<16x64xf32>
    %324 = math.tanh %323 : vector<16x64xf32>
    %cst_131 = arith.constant 1.000000e+00 : f32
    %325 = vector.broadcast %cst_131 : f32 to vector<16x64xf32>
    %326 = arith.addf %325, %324 : vector<16x64xf32>
    %327 = arith.mulf %316, %326 : vector<16x64xf32>
    %c1_132 = arith.constant 1 : index
    %c0_133 = arith.constant 0 : index
    %c0_134 = arith.constant 0 : index
    %328 = vector.load %arg3[%c1_132, %c0_133, %c0_134] : memref<2x64x32xf32, #tpu.memory_space<vmem>>, vector<1x64x32xf32>
    %329 = vector.shape_cast %328 : vector<1x64x32xf32> to vector<64x32xf32>
    %cst_135 = arith.constant dense<0.000000e+00> : vector<16x32xf32>
    %330 = tpu.matmul %327, %329, %cst_135 {dimension_numbers = #tpu.dot_dimension_numbers<[1], [0], [0], [1], [0, 0, 1, 1], [], []>} : vector<16x64xf32>, vector<64x32xf32>, vector<16x32xf32> -> vector<16x32xf32>
    %c1_136 = arith.constant 1 : index
    %c0_137 = arith.constant 0 : index
    %c256_138 = arith.constant 256 : index
    %331 = vector.load %arg4[%c1_136, %c0_137, %c256_138] : memref<2x1x352xf32, #tpu.memory_space<vmem>>, vector<1x1x32xf32>
    %332 = vector.shape_cast %331 : vector<1x1x32xf32> to vector<1x32xf32>
    %333 = vector.broadcast %332 : vector<1x32xf32> to vector<16x32xf32>
    %334 = arith.addf %330, %333 : vector<16x32xf32>
    %335 = arith.addf %307, %334 : vector<16x32xf32>
    %c1_139 = arith.constant 1 : index
    %c0_140 = arith.constant 0 : index
    %c288_141 = arith.constant 288 : index
    %336 = vector.load %arg4[%c1_139, %c0_140, %c288_141] : memref<2x1x352xf32, #tpu.memory_space<vmem>>, vector<1x1x32xf32>
    %337 = vector.shape_cast %336 : vector<1x1x32xf32> to vector<1x32xf32>
    %c1_142 = arith.constant 1 : index
    %c0_143 = arith.constant 0 : index
    %c320_144 = arith.constant 320 : index
    %338 = vector.load %arg4[%c1_142, %c0_143, %c320_144] : memref<2x1x352xf32, #tpu.memory_space<vmem>>, vector<1x1x32xf32>
    %339 = vector.shape_cast %338 : vector<1x1x32xf32> to vector<1x32xf32>
    %cst_145 = arith.constant dense<0.000000e+00> : vector<16xf32>
    %340 = vector.multi_reduction <add>, %335, %cst_145 [1] : vector<16x32xf32> to vector<16xf32>
    %341 = vector.shape_cast %340 : vector<16xf32> to vector<16x1xf32>
    %cst_146 = arith.constant 3.200000e+01 : f32
    %342 = vector.broadcast %cst_146 : f32 to vector<16x1xf32>
    %343 = arith.divf %341, %342 : vector<16x1xf32>
    %344 = vector.broadcast %343 : vector<16x1xf32> to vector<16x32xf32>
    %345 = arith.subf %335, %344 : vector<16x32xf32>
    %346 = arith.mulf %345, %345 : vector<16x32xf32>
    %cst_147 = arith.constant dense<0.000000e+00> : vector<16xf32>
    %347 = vector.multi_reduction <add>, %346, %cst_147 [1] : vector<16x32xf32> to vector<16xf32>
    %348 = vector.shape_cast %347 : vector<16xf32> to vector<16x1xf32>
    %cst_148 = arith.constant 3.200000e+01 : f32
    %349 = vector.broadcast %cst_148 : f32 to vector<16x1xf32>
    %350 = arith.divf %348, %349 : vector<16x1xf32>
    %351 = vector.broadcast %343 : vector<16x1xf32> to vector<16x32xf32>
    %352 = arith.subf %335, %351 : vector<16x32xf32>
    %cst_149 = arith.constant 9.99999996E-13 : f32
    %353 = vector.broadcast %cst_149 : f32 to vector<16x1xf32>
    %354 = arith.addf %350, %353 : vector<16x1xf32>
    %355 = math.rsqrt %354 : vector<16x1xf32>
    %356 = vector.broadcast %355 : vector<16x1xf32> to vector<16x32xf32>
    %357 = arith.mulf %352, %356 : vector<16x32xf32>
    %358 = vector.broadcast %337 : vector<1x32xf32> to vector<16x32xf32>
    %359 = arith.mulf %357, %358 : vector<16x32xf32>
    %360 = vector.broadcast %339 : vector<1x32xf32> to vector<16x32xf32>
    %361 = arith.addf %359, %360 : vector<16x32xf32>
    %c0_150 = arith.constant 0 : index
    %c0_151 = arith.constant 0 : index
    %362 = vector.load %arg5[%c0_150, %c0_151] : memref<32x288xf32, #tpu.memory_space<vmem>>, vector<32x32xf32>
    %cst_152 = arith.constant dense<0.000000e+00> : vector<16x32xf32>
    %363 = tpu.matmul %361, %362, %cst_152 {dimension_numbers = #tpu.dot_dimension_numbers<[1], [0], [0], [1], [0, 0, 1, 1], [], []>} : vector<16x32xf32>, vector<32x32xf32>, vector<16x32xf32> -> vector<16x32xf32>
    %c0_153 = arith.constant 0 : index
    %c64 = arith.constant 64 : index
    %364 = vector.load %arg6[%c0_153, %c64] : memref<1x608xf32, #tpu.memory_space<vmem>>, vector<1x32xf32>
    %365 = vector.broadcast %364 : vector<1x32xf32> to vector<16x32xf32>
    %366 = arith.addf %363, %365 : vector<16x32xf32>
    %367 = math.tanh %366 : vector<16x32xf32>
    %c0_154 = arith.constant 0 : index
    %c32_155 = arith.constant 32 : index
    %368 = vector.load %arg5[%c0_154, %c32_155] : memref<32x288xf32, #tpu.memory_space<vmem>>, vector<32x256xf32>
    %cst_156 = arith.constant dense<0.000000e+00> : vector<16x256xf32>
    %369 = tpu.matmul %367, %368, %cst_156 {dimension_numbers = #tpu.dot_dimension_numbers<[1], [0], [0], [1], [0, 0, 1, 1], [], []>} : vector<16x32xf32>, vector<32x256xf32>, vector<16x256xf32> -> vector<16x256xf32>
    %c0_157 = arith.constant 0 : index
    %c96_158 = arith.constant 96 : index
    %370 = vector.load %arg6[%c0_157, %c96_158] : memref<1x608xf32, #tpu.memory_space<vmem>>, vector<1x256xf32>
    %371 = vector.broadcast %370 : vector<1x256xf32> to vector<16x256xf32>
    %372 = arith.addf %369, %371 : vector<16x256xf32>
    %cst_159 = arith.constant 0.000000e+00 : f32
    %373 = vector.broadcast %cst_159 : f32 to vector<16x256xf32>
    %374 = arith.maximumf %372, %373 : vector<16x256xf32>
    %c0_160 = arith.constant 0 : index
    %c352 = arith.constant 352 : index
    %375 = vector.load %arg6[%c0_160, %c352] : memref<1x608xf32, #tpu.memory_space<vmem>>, vector<1x256xf32>
    %376 = vector.broadcast %375 : vector<1x256xf32> to vector<16x256xf32>
    %377 = arith.addf %374, %376 : vector<16x256xf32>
    %cst_161 = arith.constant dense<0xFF800000> : vector<16xf32>
    %378 = vector.multi_reduction <maximumf>, %377, %cst_161 [1] : vector<16x256xf32> to vector<16xf32>
    %379 = vector.shape_cast %378 : vector<16xf32> to vector<16x1xf32>
    %380 = vector.broadcast %379 : vector<16x1xf32> to vector<16x256xf32>
    %381 = arith.subf %377, %380 : vector<16x256xf32>
    %382 = math.exp %381 : vector<16x256xf32>
    %cst_162 = arith.constant dense<0.000000e+00> : vector<16xf32>
    %383 = vector.multi_reduction <add>, %382, %cst_162 [1] : vector<16x256xf32> to vector<16xf32>
    %384 = vector.shape_cast %383 : vector<16xf32> to vector<16x1xf32>
    %385 = tpu.reciprocal %384 : vector<16x1xf32> -> vector<16x1xf32>
    %386 = vector.broadcast %385 : vector<16x1xf32> to vector<16x256xf32>
    %387 = arith.mulf %382, %386 : vector<16x256xf32>
    %c0_163 = arith.constant 0 : index
    %c0_164 = arith.constant 0 : index
    %388 = vector.load %arg7[%c0_163, %c0_164] : memref<16x256xf32, #tpu.memory_space<vmem>>, vector<16x256xf32>
    tpu.vector_store %arg7[%c0_163, %c0_164], %387 {strides = array<i32>} : memref<16x256xf32, #tpu.memory_space<vmem>>, vector<16x256xf32>,
    return
  }
}

</mosaic_0001>

<llo_original>
// kernel: tpu_custom_call.1
$region0: #{tpu_custom_call.1}
  #allocation0 [shape = 'u32[]', space=smem, size = 0x4, offset = 0x4, fixed_abs, tag = 'smem constant byte address 0x4 - core index']
  #allocation1 [shape = 'u32[144,128]{1,0:T(1,128)}', space=vmem, size = 0x12000, scoped, tag = 'internal scratch']
  %s0 = inlined_call_operand.vmem [shape: f32[16,32], index: 0, kind: input, shape index: {}]
  %s1 = inlined_call_operand.vmem [shape: f32[16,16], index: 1, kind: input, shape index: {}]
  %s2 = inlined_call_operand.vmem [shape: f32[2,32,192], index: 2, kind: input, shape index: {}]
  %s3 = inlined_call_operand.vmem [shape: f32[2,64,32], index: 3, kind: input, shape index: {}]
  %s4 = inlined_call_operand.vmem [shape: f32[2,1,352], index: 4, kind: input, shape index: {}]
  %s5 = inlined_call_operand.hbm [shape: f32[32,288], index: 5, kind: input, shape index: {}]
  %s6 = inlined_call_operand.vmem [shape: f32[1,608], index: 6, kind: input, shape index: {}]
  %s7 = inlined_call_operand.hbm [shape: f32[16,256], index: 7, kind: output, shape index: {}]
  %s8 = sld [smem:[#allocation0]]
  $region42: #{tpu_custom_call.1} parent=0
    _
  %s10 = ssub.s32 1, %s8
  %s11 = scalar_select 0, %s10, %s8
  $region1: #{tpu_custom_call.1} parent=0
    #allocation2 [shape = 'u8[49152]{0}', space=vmem, size = 0xc000, scoped, tag = 'input window, operand 5, single buffered']
    #allocation3 [shape = 's32[1]{0}', space=sflag, size = 0x4, scoped, tag = 'scoped memory for tpu_custom_call.1']
    #allocation4 [shape = 's32[1]{0}', space=sflag, size = 0x4, scoped, tag = 'scoped memory for tpu_custom_call.1']
    #allocation5 [shape = 'u8[16384]{0}', space=vmem, size = 0x4000, scoped, tag = 'output window, operand 0, single buffered']
    %12 = vsyncpa [#allocation3], 0
    %13 = vsyncpa [#allocation4], 0
    // Predicated region
    $region2: #{tpu_custom_call.1} parent=1 // pred_check
      _
    $region3: #{tpu_custom_call.1} parent=1 // pred_check_branch
      %15 = sbr.rel (0) target = $region5
    $region4: #{tpu_custom_call.1} parent=1 // pred_region
      _
    $region5: #{tpu_custom_call.1} parent=1 // pred_fallthru
      _
    // Predicated region
    $region6: #{tpu_custom_call.1} parent=1 // pred_check
      _
    $region7: #{tpu_custom_call.1} parent=1 // pred_check_branch
      %17 = sbr.rel (0) target = $region9
    $region8: #{tpu_custom_call.1} parent=1 // pred_region
      _
    $region9: #{tpu_custom_call.1} parent=1 // pred_fallthru
      _
    // Predicated region
    $region10: #{tpu_custom_call.1} parent=1 // pred_check
      _
    $region11: #{tpu_custom_call.1} parent=1 // pred_check_branch
      %19 = sbr.rel (0) target = $region13
    $region12: #{tpu_custom_call.1} parent=1 // pred_region
      _
    $region13: #{tpu_custom_call.1} parent=1 // pred_fallthru
      _
    // Predicated region
    $region14: #{tpu_custom_call.1} parent=1 // pred_check
      _
    $region15: #{tpu_custom_call.1} parent=1 // pred_check_branch
      %21 = sbr.rel (0) target = $region17
    $region16: #{tpu_custom_call.1} parent=1 // pred_region
      _
    $region17: #{tpu_custom_call.1} parent=1 // pred_fallthru
      _
    // Predicated region
    $region18: #{tpu_custom_call.1} parent=1 // pred_check
      _
    $region19: #{tpu_custom_call.1} parent=1 // pred_check_branch
      %23 = sbr.rel (0) target = $region21
    $region20: #{tpu_custom_call.1} parent=1 // pred_region
      _
    $region21: #{tpu_custom_call.1} parent=1 // pred_fallthru
      _
    // Predicated region
    $region22: #{tpu_custom_call.1} parent=1 // pred_check
      _
    $region23: #{tpu_custom_call.1} parent=1 // pred_check_branch
      %25 = sbr.rel (0) target = $region25
    $region24: #{tpu_custom_call.1} parent=1 // pred_region
      %s27 = ssub.s32 1536, 1536
      %28 = vsyncadd [#allocation3], %s27
      %s29 = sshll.u32 [#allocation2], 4
      %s30 = int_to_ptr.vmem [resolvable:$true] %s29
      %35 = dma.hbm_to_vmem [thread:$0]  %s5, 1536, %s30, [#allocation3], 384, 384, 24
    $region25: #{tpu_custom_call.1} parent=1 // pred_fallthru
      _
    // Predicated region
    $region26: #{tpu_custom_call.1} parent=1 // pred_check
      _
    $region27: #{tpu_custom_call.1} parent=1 // pred_check_branch
      %37 = sbr.rel (0) target = $region29
    $region28: #{tpu_custom_call.1} parent=1 // pred_region
      _
    $region29: #{tpu_custom_call.1} parent=1 // pred_fallthru
      _
    // Predicated region
    $region30: #{tpu_custom_call.1} parent=1 // pred_check
      _
    $region31: #{tpu_custom_call.1} parent=1 // pred_check_branch
      %39 = sbr.rel (0) target = $region33
    $region32: #{tpu_custom_call.1} parent=1 // pred_region
      %40 = dma.done [#allocation3], 1536
    $region33: #{tpu_custom_call.1} parent=1 // pred_fallthru
      _
    %v41 = vld [vmem:[%s0] sm:$0xff]
    %v42 = vld [vmem:[%s0 + $0x8] sm:$0xff]
    %v43 = vld [vmem:[%s6] sm:$0x1]
    %vm44 = vcmask 261120
    %v45 = vsel %vm44, %v41, 0.0
    %46 = vadd.xlane.f32.xlu0 %v45
    %v47 = vpop.xlane.xlu0 %46
    %v48 = vsel %vm44, %v42, 0.0
    %49 = vadd.xlane.f32.xlu0 %v48
    %v50 = vpop.xlane.xlu0 %49
    %v51 = vrcp.pop 32.0
    %v52 = vmul.f32 %v47, %v51
    %v53 = vmul.f32 %v50, %v51
    %v54 = vsub.f32 %v41, %v52
    %v55 = vsub.f32 %v42, %v53
    %v56 = vmul.f32 %v54, %v54
    %v57 = vmul.f32 %v55, %v55
    %v58 = vsel %vm44, %v56, 0.0
    %59 = vadd.xlane.f32.xlu0 %v58
    %v60 = vpop.xlane.xlu0 %59
    %v61 = vsel %vm44, %v57, 0.0
    %62 = vadd.xlane.f32.xlu0 %v61
    %v63 = vpop.xlane.xlu0 %62
    %v64 = vmul.f32 %v60, %v51
    %v65 = vmul.f32 %v63, %v51
    %v66 = vadd.f32 %v64, 1e-12
    %v67 = vadd.f32 %v65, 1e-12
    %v68 = vrsqrt.pop %v66
    %v69 = vrsqrt.pop %v67
    %v70 = vmul.f32 %v54, %v68
    %v71 = vmul.f32 %v55, %v69
    %v73 = vlaneseq
    %v74 = vshrl.u32 %v73, 7
    %v75 = vsub.s32 0, %v74
    %v76 = vrot.slane %v43, %v75
    %v78 = vmul.f32 %v70, %v76
    %v79 = vmul.f32 %v71, %v76
    %80 = vrot.lane.b32.xlu0 %v76, 96
    %v81 = vpop.permute.xlu0 %80
    %v83 = vadd.f32 %v78, %v81
    %v84 = vadd.f32 %v79, %v81
    %v85 = vld [vmem:[%s1] sm:$0xff]
    %v86 = vld [vmem:[%s1 + $0x8] sm:$0xff]
    %v87 = vld [vmem:[%s2] sm:$0xff]
    %v88 = vld [vmem:[%s2 + $0x10] sm:$0xff]
    %v89 = vld [vmem:[%s2 + $0x20] sm:$0xff]
    %v90 = vld [vmem:[%s2 + $0x30] sm:$0xff]
    %v91 = vld [vmem:[%s4] sm:$0x1]
    %v93 = vlaneseq
    %v94 = vshrl.u32 %v93, 7
    %v95 = vsub.s32 0, %v94
    %v96 = vrot.slane %v91, %v95
    %v99 = vsel %vm44, %v83, 0
    %v102 = vsel %vm44, %v84, 0
    %104 = vmatprep.subr.mxu0 0.0
    %105 = vmatpush1.msra.mxu0 0.0
    %106 = vmatprep.subr.mxu0 0.0
    %107 = vmatpush1.msra.mxu0 0.0
    %108 = vmatprep.subr.mxu0 0.0
    %109 = vmatpush1.msra.mxu0 0.0
    %110 = vmatprep.subr.mxu0 0.0
    %111 = vmatpush1.msra.mxu0 0.0
    %112 = vmatprep.subr.mxu0 0.0
    %113 = vmatpush1.msra.mxu0 0.0
    %114 = vmatprep.subr.mxu0 0.0
    %115 = vmatpush1.msra.mxu0 0.0
    %116 = vmatprep.subr.mxu0 0.0
    %117 = vmatpush1.msra.mxu0 0.0
    %118 = vmatprep.subr.mxu0 0.0
    %119 = vmatpush1.msra.mxu0 0.0
    %120 = vmatprep.subr.mxu0 0.0
    %121 = vmatpush1.msra.mxu0 0.0
    %122 = vmatprep.subr.mxu0 0.0
    %123 = vmatpush1.msra.mxu0 0.0
    %124 = vmatprep.subr.mxu0 0.0
    %125 = vmatpush1.msra.mxu0 0.0
    %126 = vmatprep.subr.mxu0 0.0
    %127 = vmatpush1.msra.mxu0 0.0
    %128 = vmatprep.subr.mxu0 0.0
    %129 = vmatpush1.msra.mxu0 %v90
    %130 = vmatprep.subr.mxu0 0.0
    %131 = vmatpush1.msra.mxu0 %v89
    %132 = vmatprep.subr.mxu0 0.0
    %133 = vmatpush1.msra.mxu0 %v88
    %134 = vmatprep.subr.mxu0 0.0
    %135 = vmatpush1.msra.mxu0 %v87
    %136 = vmatprep.subr.mxu0 0.0
    %137 = vmatpush2.msra.mxu0 0.0
    %138 = vmatprep.subr.mxu0 0.0
    %139 = vmatpush2.msra.mxu0 0.0
    %140 = vmatprep.subr.mxu0 0.0
    %141 = vmatpush2.msra.mxu0 0.0
    %142 = vmatprep.subr.mxu0 0.0
    %143 = vmatpush2.msra.mxu0 0.0
    %144 = vmatprep.subr.mxu0 0.0
    %145 = vmatpush2.msra.mxu0 0.0
    %146 = vmatprep.subr.mxu0 0.0
    %147 = vmatpush2.msra.mxu0 0.0
    %148 = vmatprep.subr.mxu0 0.0
    %149 = vmatpush2.msra.mxu0 0.0
    %150 = vmatprep.subr.mxu0 0.0
    %151 = vmatpush2.msra.mxu0 0.0
    %152 = vmatprep.subr.mxu0 0.0
    %153 = vmatpush2.msra.mxu0 0.0
    %154 = vmatprep.subr.mxu0 0.0
    %155 = vmatpush2.msra.mxu0 0.0
    %156 = vmatprep.subr.mxu0 0.0
    %157 = vmatpush2.msra.mxu0 0.0
    %158 = vmatprep.subr.mxu0 0.0
    %159 = vmatpush2.msra.mxu0 0.0
    %160 = vmatprep.subr.mxu0 0.0
    %161 = vmatpush2.msra.mxu0 0.0
    %162 = vmatprep.subr.mxu0 0.0
    %163 = vmatpush2.msra.mxu0 0.0
    %164 = vmatprep.subr.mxu0 0.0
    %165 = vmatpush2.msra.mxu0 0.0
    %166 = vmatprep.subr.mxu0 0.0
    %167 = vmatpush2.msra.mxu0 0.0
    %168 = vmatprep.mubr.f32.mxu0 0.0
    %169 = vmatmul.mubr.f32.gmra.mxu0 %v99
    %v170 = vpop.f32.mrf.mxu0
    %v171 = vadd.f32 %v96, %v170
    %v172 = vpop.f32.mrf.mxu0
    %173 = vmatprep.mubr.f32.mxu0 0.0
    %174 = vmatmul.mubr.f32.gmra.mxu0 %v102
    %v175 = vpop.f32.mrf.mxu0
    %v176 = vadd.f32 %v96, %v175
    %v177 = vpop.f32.mrf.mxu0
    %178 = vdwg.mxu0
    %181 = vrot.lane.b32.xlu0 %v171, 96
    %v182 = vpop.permute.xlu0 %181
    %183 = vrot.lane.b32.xlu0 %v176, 96
    %v184 = vpop.permute.xlu0 %183
    %vm185 = vcmask 64512
    %v186 = vsel %vm185, %v171, 0
    %v188 = vsel %vm185, %v176, 0
    %v190 = vsel %vm185, %v182, 0
    %v192 = vsel %vm185, %v184, 0
    %194 = vmatprep.subr.mxu0 0.0
    %195 = vmatpush1.xpose.msra.mxu0 0.0
    %196 = vmatprep.subr.mxu0 0.0
    %197 = vmatpush1.xpose.msra.mxu0 0.0
    %198 = vmatprep.subr.mxu0 0.0
    %199 = vmatpush1.xpose.msra.mxu0 0.0
    %200 = vmatprep.subr.mxu0 0.0
    %201 = vmatpush1.xpose.msra.mxu0 0.0
    %202 = vmatprep.subr.mxu0 0.0
    %203 = vmatpush1.xpose.msra.mxu0 0.0
    %204 = vmatprep.subr.mxu0 0.0
    %205 = vmatpush1.xpose.msra.mxu0 0.0
    %206 = vmatprep.subr.mxu0 0.0
    %207 = vmatpush1.xpose.msra.mxu0 0.0
    %208 = vmatprep.subr.mxu0 0.0
    %209 = vmatpush1.xpose.msra.mxu0 0.0
    %210 = vmatprep.subr.mxu0 0.0
    %211 = vmatpush1.xpose.msra.mxu0 0.0
    %212 = vmatprep.subr.mxu0 0.0
    %213 = vmatpush1.xpose.msra.mxu0 0.0
    %214 = vmatprep.subr.mxu0 0.0
    %215 = vmatpush1.xpose.msra.mxu0 0.0
    %216 = vmatprep.subr.mxu0 0.0
    %217 = vmatpush1.xpose.msra.mxu0 0.0
    %218 = vmatprep.subr.mxu0 0.0
    %219 = vmatpush1.xpose.msra.mxu0 0.0
    %220 = vmatprep.subr.mxu0 0.0
    %221 = vmatpush1.xpose.msra.mxu0 0.0
    %222 = vmatprep.subr.mxu0 0.0
    %223 = vmatpush1.xpose.msra.mxu0 %v192
    %224 = vmatprep.subr.mxu0 0.0
    %225 = vmatpush1.xpose.msra.mxu0 %v190
    %226 = vmatprep.subr.mxu0 0.0
    %227 = vmatpush2.xpose.msra.mxu0 0.0
    %228 = vmatprep.subr.mxu0 0.0
    %229 = vmatpush2.xpose.msra.mxu0 0.0
    %230 = vmatprep.subr.mxu0 0.0
    %231 = vmatpush2.xpose.msra.mxu0 0.0
    %232 = vmatprep.subr.mxu0 0.0
    %233 = vmatpush2.xpose.msra.mxu0 0.0
    %234 = vmatprep.subr.mxu0 0.0
    %235 = vmatpush2.xpose.msra.mxu0 0.0
    %236 = vmatprep.subr.mxu0 0.0
    %237 = vmatpush2.xpose.msra.mxu0 0.0
    %238 = vmatprep.subr.mxu0 0.0
    %239 = vmatpush2.xpose.msra.mxu0 0.0
    %240 = vmatprep.subr.mxu0 0.0
    %241 = vmatpush2.xpose.msra.mxu0 0.0
    %242 = vmatprep.subr.mxu0 0.0
    %243 = vmatpush2.xpose.msra.mxu0 0.0
    %244 = vmatprep.subr.mxu0 0.0
    %245 = vmatpush2.xpose.msra.mxu0 0.0
    %246 = vmatprep.subr.mxu0 0.0
    %247 = vmatpush2.xpose.msra.mxu0 0.0
    %248 = vmatprep.subr.mxu0 0.0
    %249 = vmatpush2.xpose.msra.mxu0 0.0
    %250 = vmatprep.subr.mxu0 0.0
    %251 = vmatpush2.xpose.msra.mxu0 0.0
    %252 = vmatprep.subr.mxu0 0.0
    %253 = vmatpush2.xpose.msra.mxu0 0.0
    %254 = vmatprep.subr.mxu0 0.0
    %255 = vmatpush2.xpose.msra.mxu0 0.0
    %256 = vmatprep.subr.mxu0 0.0
    %257 = vmatpush2.xpose.msra.mxu0 0.0
    %258 = vmatprep.mubr.f32.mxu0 0.0
    %259 = vmatmul.mubr.f32.gmra.mxu0 %v186
    %v260 = vpop.f32.mrf.mxu0
    %v261 = vadd.f32 0.0, %v260
    %v262 = vpop.f32.mrf.mxu0
    %263 = vmatprep.mubr.f32.mxu0 0.0
    %264 = vmatmul.mubr.f32.gmra.mxu0 %v188
    %v265 = vpop.f32.mrf.mxu0
    %v266 = vadd.f32 0.0, %v265
    %v267 = vpop.f32.mrf.mxu0
    %268 = vdwg.mxu0
    %v269 = vmul.f32 %v261, 0.35355338
    %v270 = vmul.f32 %v266, 0.35355338
    %v271 = vadd.f32 %v269, %v85
    %v272 = vadd.f32 %v270, %v86
    %vm273 = vcmask 130048
    %v274 = vsel %vm273, %v271, -inf
    %275 = vmax.xlane.f32.xlu0 %v274
    %v276 = vpop.xlane.xlu0 %275
    %v277 = vsel %vm273, %v272, -inf
    %278 = vmax.xlane.f32.xlu0 %v277
    %v279 = vpop.xlane.xlu0 %278
    %v280 = vsub.f32 %v271, %v276
    %v281 = vsub.f32 %v272, %v279
    %v282 = vmul.f32 %v280, 1.442695
    %v283 = vpow.pop %v282
    %v284 = vmul.f32 %v281, 1.442695
    %v285 = vpow.pop %v284
    %v286 = vsel %vm273, %v283, 0.0
    %287 = vadd.xlane.f32.xlu0 %v286
    %v288 = vpop.xlane.xlu0 %287
    %v289 = vsel %vm273, %v285, 0.0
    %290 = vadd.xlane.f32.xlu0 %v289
    %v291 = vpop.xlane.xlu0 %290
    %v292 = vrcp.pop %v288
    %v293 = vrcp.pop %v291
    %v294 = vmul.f32 %v283, %v292
    %v295 = vmul.f32 %v285, %v293
    %296 = vrot.lane.b32.xlu0 %v171, 64
    %v297 = vpop.permute.xlu0 %296
    %298 = vrot.lane.b32.xlu0 %v176, 64
    %v299 = vpop.permute.xlu0 %298
    %v303 = vsel %vm273, %v294, 0
    %v306 = vsel %vm273, %v295, 0
    %308 = vmatprep.subr.mxu0 0.0
    %309 = vmatpush1.msra.mxu0 0.0
    %310 = vmatprep.subr.mxu0 0.0
    %311 = vmatpush1.msra.mxu0 0.0
    %312 = vmatprep.subr.mxu0 0.0
    %313 = vmatpush1.msra.mxu0 0.0
    %314 = vmatprep.subr.mxu0 0.0
    %315 = vmatpush1.msra.mxu0 0.0
    %316 = vmatprep.subr.mxu0 0.0
    %317 = vmatpush1.msra.mxu0 0.0
    %318 = vmatprep.subr.mxu0 0.0
    %319 = vmatpush1.msra.mxu0 0.0
    %320 = vmatprep.subr.mxu0 0.0
    %321 = vmatpush1.msra.mxu0 0.0
    %322 = vmatprep.subr.mxu0 0.0
    %323 = vmatpush1.msra.mxu0 0.0
    %324 = vmatprep.subr.mxu0 0.0
    %325 = vmatpush1.msra.mxu0 0.0
    %326 = vmatprep.subr.mxu0 0.0
    %327 = vmatpush1.msra.mxu0 0.0
    %328 = vmatprep.subr.mxu0 0.0
    %329 = vmatpush1.msra.mxu0 0.0
    %330 = vmatprep.subr.mxu0 0.0
    %331 = vmatpush1.msra.mxu0 0.0
    %332 = vmatprep.subr.mxu0 0.0
    %333 = vmatpush1.msra.mxu0 0.0
    %334 = vmatprep.subr.mxu0 0.0
    %335 = vmatpush1.msra.mxu0 0.0
    %336 = vmatprep.subr.mxu0 0.0
    %337 = vmatpush1.msra.mxu0 %v299
    %338 = vmatprep.subr.mxu0 0.0
    %339 = vmatpush1.msra.mxu0 %v297
    %340 = vmatprep.subr.mxu0 0.0
    %341 = vmatpush2.msra.mxu0 0.0
    %342 = vmatprep.subr.mxu0 0.0
    %343 = vmatpush2.msra.mxu0 0.0
    %344 = vmatprep.subr.mxu0 0.0
    %345 = vmatpush2.msra.mxu0 0.0
    %346 = vmatprep.subr.mxu0 0.0
    %347 = vmatpush2.msra.mxu0 0.0
    %348 = vmatprep.subr.mxu0 0.0
    %349 = vmatpush2.msra.mxu0 0.0
    %350 = vmatprep.subr.mxu0 0.0
    %351 = vmatpush2.msra.mxu0 0.0
    %352 = vmatprep.subr.mxu0 0.0
    %353 = vmatpush2.msra.mxu0 0.0
    %354 = vmatprep.subr.mxu0 0.0
    %355 = vmatpush2.msra.mxu0 0.0
    %356 = vmatprep.subr.mxu0 0.0
    %357 = vmatpush2.msra.mxu0 0.0
    %358 = vmatprep.subr.mxu0 0.0
    %359 = vmatpush2.msra.mxu0 0.0
    %360 = vmatprep.subr.mxu0 0.0
    %361 = vmatpush2.msra.mxu0 0.0
    %362 = vmatprep.subr.mxu0 0.0
    %363 = vmatpush2.msra.mxu0 0.0
    %364 = vmatprep.subr.mxu0 0.0
    %365 = vmatpush2.msra.mxu0 0.0
    %366 = vmatprep.subr.mxu0 0.0
    %367 = vmatpush2.msra.mxu0 0.0
    %368 = vmatprep.subr.mxu0 0.0
    %369 = vmatpush2.msra.mxu0 0.0
    %370 = vmatprep.subr.mxu0 0.0
    %371 = vmatpush2.msra.mxu0 0.0
    %372 = vmatprep.mubr.f32.mxu0 0.0
    %373 = vmatmul.mubr.f32.gmra.mxu0 %v303
    %v374 = vpop.f32.mrf.mxu0
    %v375 = vadd.f32 0.0, %v374
    %v376 = vpop.f32.mrf.mxu0
    %377 = vmatprep.mubr.f32.mxu0 0.0
    %378 = vmatmul.mubr.f32.gmra.mxu0 %v306
    %v379 = vpop.f32.mrf.mxu0
    %v380 = vadd.f32 0.0, %v379
    %v381 = vpop.f32.mrf.mxu0
    %382 = vdwg.mxu0
    %383 = vrot.lane.b32.xlu0 %v171, 120
    %v384 = vpop.permute.xlu0 %383
    %385 = vrot.lane.b32.xlu0 %v176, 120
    %v386 = vpop.permute.xlu0 %385
    %387 = vrot.lane.b32.xlu0 %v171, 88
    %v388 = vpop.permute.xlu0 %387
    %389 = vrot.lane.b32.xlu0 %v176, 88
    %v390 = vpop.permute.xlu0 %389
    %v391 = vsel %vm185, %v384, 0
    %v393 = vsel %vm185, %v386, 0
    %v395 = vsel %vm185, %v388, 0
    %v397 = vsel %vm185, %v390, 0
    %399 = vmatprep.subr.mxu0 0.0
    %400 = vmatpush1.xpose.msra.mxu0 0.0
    %401 = vmatprep.subr.mxu0 0.0
    %402 = vmatpush1.xpose.msra.mxu0 0.0
    %403 = vmatprep.subr.mxu0 0.0
    %404 = vmatpush1.xpose.msra.mxu0 0.0
    %405 = vmatprep.subr.mxu0 0.0
    %406 = vmatpush1.xpose.msra.mxu0 0.0
    %407 = vmatprep.subr.mxu0 0.0
    %408 = vmatpush1.xpose.msra.mxu0 0.0
    %409 = vmatprep.subr.mxu0 0.0
    %410 = vmatpush1.xpose.msra.mxu0 0.0
    %411 = vmatprep.subr.mxu0 0.0
    %412 = vmatpush1.xpose.msra.mxu0 0.0
    %413 = vmatprep.subr.mxu0 0.0
    %414 = vmatpush1.xpose.msra.mxu0 0.0
    %415 = vmatprep.subr.mxu0 0.0
    %416 = vmatpush1.xpose.msra.mxu0 0.0
    %417 = vmatprep.subr.mxu0 0.0
    %418 = vmatpush1.xpose.msra.mxu0 0.0
    %419 = vmatprep.subr.mxu0 0.0
    %420 = vmatpush1.xpose.msra.mxu0 0.0
    %421 = vmatprep.subr.mxu0 0.0
    %422 = vmatpush1.xpose.msra.mxu0 0.0
    %423 = vmatprep.subr.mxu0 0.0
    %424 = vmatpush1.xpose.msra.mxu0 0.0
    %425 = vmatprep.subr.mxu0 0.0
    %426 = vmatpush1.xpose.msra.mxu0 0.0
    %427 = vmatprep.subr.mxu0 0.0
    %428 = vmatpush1.xpose.msra.mxu0 %v397
    %429 = vmatprep.subr.mxu0 0.0
    %430 = vmatpush1.xpose.msra.mxu0 %v395
    %431 = vmatprep.subr.mxu0 0.0
    %432 = vmatpush2.xpose.msra.mxu0 0.0
    %433 = vmatprep.subr.mxu0 0.0
    %434 = vmatpush2.xpose.msra.mxu0 0.0
    %435 = vmatprep.subr.mxu0 0.0
    %436 = vmatpush2.xpose.msra.mxu0 0.0
    %437 = vmatprep.subr.mxu0 0.0
    %438 = vmatpush2.xpose.msra.mxu0 0.0
    %439 = vmatprep.subr.mxu0 0.0
    %440 = vmatpush2.xpose.msra.mxu0 0.0
    %441 = vmatprep.subr.mxu0 0.0
    %442 = vmatpush2.xpose.msra.mxu0 0.0
    %443 = vmatprep.subr.mxu0 0.0
    %444 = vmatpush2.xpose.msra.mxu0 0.0
    %445 = vmatprep.subr.mxu0 0.0
    %446 = vmatpush2.xpose.msra.mxu0 0.0
    %447 = vmatprep.subr.mxu0 0.0
    %448 = vmatpush2.xpose.msra.mxu0 0.0
    %449 = vmatprep.subr.mxu0 0.0
    %450 = vmatpush2.xpose.msra.mxu0 0.0
    %451 = vmatprep.subr.mxu0 0.0
    %452 = vmatpush2.xpose.msra.mxu0 0.0
    %453 = vmatprep.subr.mxu0 0.0
    %454 = vmatpush2.xpose.msra.mxu0 0.0
    %455 = vmatprep.subr.mxu0 0.0
    %456 = vmatpush2.xpose.msra.mxu0 0.0
    %457 = vmatprep.subr.mxu0 0.0
    %458 = vmatpush2.xpose.msra.mxu0 0.0
    %459 = vmatprep.subr.mxu0 0.0
    %460 = vmatpush2.xpose.msra.mxu0 0.0
    %461 = vmatprep.subr.mxu0 0.0
    %462 = vmatpush2.xpose.msra.mxu0 0.0
    %463 = vmatprep.mubr.f32.mxu0 0.0
    %464 = vmatmul.mubr.f32.gmra.mxu0 %v391
    %v465 = vpop.f32.mrf.mxu0
    %v466 = vadd.f32 0.0, %v465
    %v467 = vpop.f32.mrf.mxu0
    %468 = vmatprep.mubr.f32.mxu0 0.0
    %469 = vmatmul.mubr.f32.gmra.mxu0 %v393
    %v470 = vpop.f32.mrf.mxu0
    %v471 = vadd.f32 0.0, %v470
    %v472 = vpop.f32.mrf.mxu0
    %473 = vdwg.mxu0
    %v474 = vmul.f32 %v466, 0.35355338
    %v475 = vmul.f32 %v471, 0.35355338
    %v476 = vadd.f32 %v474, %v85
    %v477 = vadd.f32 %v475, %v86
    %v478 = vsel %vm273, %v476, -inf
    %479 = vmax.xlane.f32.xlu0 %v478
    %v480 = vpop.xlane.xlu0 %479
    %v481 = vsel %vm273, %v477, -inf
    %482 = vmax.xlane.f32.xlu0 %v481
    %v483 = vpop.xlane.xlu0 %482
    %v484 = vsub.f32 %v476, %v480
    %v485 = vsub.f32 %v477, %v483
    %v486 = vmul.f32 %v484, 1.442695
    %v487 = vpow.pop %v486
    %v488 = vmul.f32 %v485, 1.442695
    %v489 = vpow.pop %v488
    %v490 = vsel %vm273, %v487, 0.0
    %491 = vadd.xlane.f32.xlu0 %v490
    %v492 = vpop.xlane.xlu0 %491
    %v493 = vsel %vm273, %v489, 0.0
    %494 = vadd.xlane.f32.xlu0 %v493
    %v495 = vpop.xlane.xlu0 %494
    %v496 = vrcp.pop %v492
    %v497 = vrcp.pop %v495
    %v498 = vmul.f32 %v487, %v496
    %v499 = vmul.f32 %v489, %v497
    %500 = vrot.lane.b32.xlu0 %v171, 56
    %v501 = vpop.permute.xlu0 %500
    %502 = vrot.lane.b32.xlu0 %v176, 56
    %v503 = vpop.permute.xlu0 %502
    %v507 = vsel %vm273, %v498, 0
    %v510 = vsel %vm273, %v499, 0
    %512 = vmatprep.subr.mxu0 0.0
    %513 = vmatpush1.msra.mxu0 0.0
    %514 = vmatprep.subr.mxu0 0.0
    %515 = vmatpush1.msra.mxu0 0.0
    %516 = vmatprep.subr.mxu0 0.0
    %517 = vmatpush1.msra.mxu0 0.0
    %518 = vmatprep.subr.mxu0 0.0
    %519 = vmatpush1.msra.mxu0 0.0
    %520 = vmatprep.subr.mxu0 0.0
    %521 = vmatpush1.msra.mxu0 0.0
    %522 = vmatprep.subr.mxu0 0.0
    %523 = vmatpush1.msra.mxu0 0.0
    %524 = vmatprep.subr.mxu0 0.0
    %525 = vmatpush1.msra.mxu0 0.0
    %526 = vmatprep.subr.mxu0 0.0
    %527 = vmatpush1.msra.mxu0 0.0
    %528 = vmatprep.subr.mxu0 0.0
    %529 = vmatpush1.msra.mxu0 0.0
    %530 = vmatprep.subr.mxu0 0.0
    %531 = vmatpush1.msra.mxu0 0.0
    %532 = vmatprep.subr.mxu0 0.0
    %533 = vmatpush1.msra.mxu0 0.0
    %534 = vmatprep.subr.mxu0 0.0
    %535 = vmatpush1.msra.mxu0 0.0
    %536 = vmatprep.subr.mxu0 0.0
    %537 = vmatpush1.msra.mxu0 0.0
    %538 = vmatprep.subr.mxu0 0.0
    %539 = vmatpush1.msra.mxu0 0.0
    %540 = vmatprep.subr.mxu0 0.0
    %541 = vmatpush1.msra.mxu0 %v503
    %542 = vmatprep.subr.mxu0 0.0
    %543 = vmatpush1.msra.mxu0 %v501
    %544 = vmatprep.subr.mxu0 0.0
    %545 = vmatpush2.msra.mxu0 0.0
    %546 = vmatprep.subr.mxu0 0.0
    %547 = vmatpush2.msra.mxu0 0.0
    %548 = vmatprep.subr.mxu0 0.0
    %549 = vmatpush2.msra.mxu0 0.0
    %550 = vmatprep.subr.mxu0 0.0
    %551 = vmatpush2.msra.mxu0 0.0
    %552 = vmatprep.subr.mxu0 0.0
    %553 = vmatpush2.msra.mxu0 0.0
    %554 = vmatprep.subr.mxu0 0.0
    %555 = vmatpush2.msra.mxu0 0.0
    %556 = vmatprep.subr.mxu0 0.0
    %557 = vmatpush2.msra.mxu0 0.0
    %558 = vmatprep.subr.mxu0 0.0
    %559 = vmatpush2.msra.mxu0 0.0
    %560 = vmatprep.subr.mxu0 0.0
    %561 = vmatpush2.msra.mxu0 0.0
    %562 = vmatprep.subr.mxu0 0.0
    %563 = vmatpush2.msra.mxu0 0.0
    %564 = vmatprep.subr.mxu0 0.0
    %565 = vmatpush2.msra.mxu0 0.0
    %566 = vmatprep.subr.mxu0 0.0
    %567 = vmatpush2.msra.mxu0 0.0
    %568 = vmatprep.subr.mxu0 0.0
    %569 = vmatpush2.msra.mxu0 0.0
    %570 = vmatprep.subr.mxu0 0.0
    %571 = vmatpush2.msra.mxu0 0.0
    %572 = vmatprep.subr.mxu0 0.0
    %573 = vmatpush2.msra.mxu0 0.0
    %574 = vmatprep.subr.mxu0 0.0
    %575 = vmatpush2.msra.mxu0 0.0
    %576 = vmatprep.mubr.f32.mxu0 0.0
    %577 = vmatmul.mubr.f32.gmra.mxu0 %v507
    %v578 = vpop.f32.mrf.mxu0
    %v579 = vadd.f32 0.0, %v578
    %v580 = vpop.f32.mrf.mxu0
    %581 = vmatprep.mubr.f32.mxu0 0.0
    %582 = vmatmul.mubr.f32.gmra.mxu0 %v510
    %v583 = vpop.f32.mrf.mxu0
    %v584 = vadd.f32 0.0, %v583
    %v585 = vpop.f32.mrf.mxu0
    %586 = vdwg.mxu0
    %587 = vrot.lane.b32.xlu0 %v171, 112
    %v588 = vpop.permute.xlu0 %587
    %589 = vrot.lane.b32.xlu0 %v176, 112
    %v590 = vpop.permute.xlu0 %589
    %591 = vrot.lane.b32.xlu0 %v171, 80
    %v592 = vpop.permute.xlu0 %591
    %593 = vrot.lane.b32.xlu0 %v176, 80
    %v594 = vpop.permute.xlu0 %593
    %v595 = vsel %vm185, %v588, 0
    %v597 = vsel %vm185, %v590, 0
    %v599 = vsel %vm185, %v592, 0
    %v601 = vsel %vm185, %v594, 0
    %603 = vmatprep.subr.mxu0 0.0
    %604 = vmatpush1.xpose.msra.mxu0 0.0
    %605 = vmatprep.subr.mxu0 0.0
    %606 = vmatpush1.xpose.msra.mxu0 0.0
    %607 = vmatprep.subr.mxu0 0.0
    %608 = vmatpush1.xpose.msra.mxu0 0.0
    %609 = vmatprep.subr.mxu0 0.0
    %610 = vmatpush1.xpose.msra.mxu0 0.0
    %611 = vmatprep.subr.mxu0 0.0
    %612 = vmatpush1.xpose.msra.mxu0 0.0
    %613 = vmatprep.subr.mxu0 0.0
    %614 = vmatpush1.xpose.msra.mxu0 0.0
    %615 = vmatprep.subr.mxu0 0.0
    %616 = vmatpush1.xpose.msra.mxu0 0.0
    %617 = vmatprep.subr.mxu0 0.0
    %618 = vmatpush1.xpose.msra.mxu0 0.0
    %619 = vmatprep.subr.mxu0 0.0
    %620 = vmatpush1.xpose.msra.mxu0 0.0
    %621 = vmatprep.subr.mxu0 0.0
    %622 = vmatpush1.xpose.msra.mxu0 0.0
    %623 = vmatprep.subr.mxu0 0.0
    %624 = vmatpush1.xpose.msra.mxu0 0.0
    %625 = vmatprep.subr.mxu0 0.0
    %626 = vmatpush1.xpose.msra.mxu0 0.0
    %627 = vmatprep.subr.mxu0 0.0
    %628 = vmatpush1.xpose.msra.mxu0 0.0
    %629 = vmatprep.subr.mxu0 0.0
    %630 = vmatpush1.xpose.msra.mxu0 0.0
    %631 = vmatprep.subr.mxu0 0.0
    %632 = vmatpush1.xpose.msra.mxu0 %v601
    %633 = vmatprep.subr.mxu0 0.0
    %634 = vmatpush1.xpose.msra.mxu0 %v599
    %635 = vmatprep.subr.mxu0 0.0
    %636 = vmatpush2.xpose.msra.mxu0 0.0
    %637 = vmatprep.subr.mxu0 0.0
    %638 = vmatpush2.xpose.msra.mxu0 0.0
    %639 = vmatprep.subr.mxu0 0.0
    %640 = vmatpush2.xpose.msra.mxu0 0.0
    %641 = vmatprep.subr.mxu0 0.0
    %642 = vmatpush2.xpose.msra.mxu0 0.0
    %643 = vmatprep.subr.mxu0 0.0
    %644 = vmatpush2.xpose.msra.mxu0 0.0
    %645 = vmatprep.subr.mxu0 0.0
    %646 = vmatpush2.xpose.msra.mxu0 0.0
    %647 = vmatprep.subr.mxu0 0.0
    %648 = vmatpush2.xpose.msra.mxu0 0.0
    %649 = vmatprep.subr.mxu0 0.0
    %650 = vmatpush2.xpose.msra.mxu0 0.0
    %651 = vmatprep.subr.mxu0 0.0
    %652 = vmatpush2.xpose.msra.mxu0 0.0
    %653 = vmatprep.subr.mxu0 0.0
    %654 = vmatpush2.xpose.msra.mxu0 0.0
    %655 = vmatprep.subr.mxu0 0.0
    %656 = vmatpush2.xpose.msra.mxu0 0.0
    %657 = vmatprep.subr.mxu0 0.0
    %658 = vmatpush2.xpose.msra.mxu0 0.0
    %659 = vmatprep.subr.mxu0 0.0
    %660 = vmatpush2.xpose.msra.mxu0 0.0
    %661 = vmatprep.subr.mxu0 0.0
    %662 = vmatpush2.xpose.msra.mxu0 0.0
    %663 = vmatprep.subr.mxu0 0.0
    %664 = vmatpush2.xpose.msra.mxu0 0.0
    %665 = vmatprep.subr.mxu0 0.0
    %666 = vmatpush2.xpose.msra.mxu0 0.0
    %667 = vmatprep.mubr.f32.mxu0 0.0
    %668 = vmatmul.mubr.f32.gmra.mxu0 %v595
    %v669 = vpop.f32.mrf.mxu0
    %v670 = vadd.f32 0.0, %v669
    %v671 = vpop.f32.mrf.mxu0
    %672 = vmatprep.mubr.f32.mxu0 0.0
    %673 = vmatmul.mubr.f32.gmra.mxu0 %v597
    %v674 = vpop.f32.mrf.mxu0
    %v675 = vadd.f32 0.0, %v674
    %v676 = vpop.f32.mrf.mxu0
    %677 = vdwg.mxu0
    %v678 = vmul.f32 %v670, 0.35355338
    %v679 = vmul.f32 %v675, 0.35355338
    %v680 = vadd.f32 %v678, %v85
    %v681 = vadd.f32 %v679, %v86
    %v682 = vsel %vm273, %v680, -inf
    %683 = vmax.xlane.f32.xlu0 %v682
    %v684 = vpop.xlane.xlu0 %683
    %v685 = vsel %vm273, %v681, -inf
    %686 = vmax.xlane.f32.xlu0 %v685
    %v687 = vpop.xlane.xlu0 %686
    %v688 = vsub.f32 %v680, %v684
    %v689 = vsub.f32 %v681, %v687
    %v690 = vmul.f32 %v688, 1.442695
    %v691 = vpow.pop %v690
    %v692 = vmul.f32 %v689, 1.442695
    %v693 = vpow.pop %v692
    %v694 = vsel %vm273, %v691, 0.0
    %695 = vadd.xlane.f32.xlu0 %v694
    %v696 = vpop.xlane.xlu0 %695
    %v697 = vsel %vm273, %v693, 0.0
    %698 = vadd.xlane.f32.xlu0 %v697
    %v699 = vpop.xlane.xlu0 %698
    %v700 = vrcp.pop %v696
    %v701 = vrcp.pop %v699
    %v702 = vmul.f32 %v691, %v700
    %v703 = vmul.f32 %v693, %v701
    %704 = vrot.lane.b32.xlu0 %v171, 48
    %v705 = vpop.permute.xlu0 %704
    %706 = vrot.lane.b32.xlu0 %v176, 48
    %v707 = vpop.permute.xlu0 %706
    %v711 = vsel %vm273, %v702, 0
    %v714 = vsel %vm273, %v703, 0
    %716 = vmatprep.subr.mxu0 0.0
    %717 = vmatpush1.msra.mxu0 0.0
    %718 = vmatprep.subr.mxu0 0.0
    %719 = vmatpush1.msra.mxu0 0.0
    %720 = vmatprep.subr.mxu0 0.0
    %721 = vmatpush1.msra.mxu0 0.0
    %722 = vmatprep.subr.mxu0 0.0
    %723 = vmatpush1.msra.mxu0 0.0
    %724 = vmatprep.subr.mxu0 0.0
    %725 = vmatpush1.msra.mxu0 0.0
    %726 = vmatprep.subr.mxu0 0.0
    %727 = vmatpush1.msra.mxu0 0.0
    %728 = vmatprep.subr.mxu0 0.0
    %729 = vmatpush1.msra.mxu0 0.0
    %730 = vmatprep.subr.mxu0 0.0
    %731 = vmatpush1.msra.mxu0 0.0
    %732 = vmatprep.subr.mxu0 0.0
    %733 = vmatpush1.msra.mxu0 0.0
    %734 = vmatprep.subr.mxu0 0.0
    %735 = vmatpush1.msra.mxu0 0.0
    %736 = vmatprep.subr.mxu0 0.0
    %737 = vmatpush1.msra.mxu0 0.0
    %738 = vmatprep.subr.mxu0 0.0
    %739 = vmatpush1.msra.mxu0 0.0
    %740 = vmatprep.subr.mxu0 0.0
    %741 = vmatpush1.msra.mxu0 0.0
    %742 = vmatprep.subr.mxu0 0.0
    %743 = vmatpush1.msra.mxu0 0.0
    %744 = vmatprep.subr.mxu0 0.0
    %745 = vmatpush1.msra.mxu0 %v707
    %746 = vmatprep.subr.mxu0 0.0
    %747 = vmatpush1.msra.mxu0 %v705
    %748 = vmatprep.subr.mxu0 0.0
    %749 = vmatpush2.msra.mxu0 0.0
    %750 = vmatprep.subr.mxu0 0.0
    %751 = vmatpush2.msra.mxu0 0.0
    %752 = vmatprep.subr.mxu0 0.0
    %753 = vmatpush2.msra.mxu0 0.0
    %754 = vmatprep.subr.mxu0 0.0
    %755 = vmatpush2.msra.mxu0 0.0
    %756 = vmatprep.subr.mxu0 0.0
    %757 = vmatpush2.msra.mxu0 0.0
    %758 = vmatprep.subr.mxu0 0.0
    %759 = vmatpush2.msra.mxu0 0.0
    %760 = vmatprep.subr.mxu0 0.0
    %761 = vmatpush2.msra.mxu0 0.0
    %762 = vmatprep.subr.mxu0 0.0
    %763 = vmatpush2.msra.mxu0 0.0
    %764 = vmatprep.subr.mxu0 0.0
    %765 = vmatpush2.msra.mxu0 0.0
    %766 = vmatprep.subr.mxu0 0.0
    %767 = vmatpush2.msra.mxu0 0.0
    %768 = vmatprep.subr.mxu0 0.0
    %769 = vmatpush2.msra.mxu0 0.0
    %770 = vmatprep.subr.mxu0 0.0
    %771 = vmatpush2.msra.mxu0 0.0
    %772 = vmatprep.subr.mxu0 0.0
    %773 = vmatpush2.msra.mxu0 0.0
    %774 = vmatprep.subr.mxu0 0.0
    %775 = vmatpush2.msra.mxu0 0.0
    %776 = vmatprep.subr.mxu0 0.0
    %777 = vmatpush2.msra.mxu0 0.0
    %778 = vmatprep.subr.mxu0 0.0
    %779 = vmatpush2.msra.mxu0 0.0
    %780 = vmatprep.mubr.f32.mxu0 0.0
    %781 = vmatmul.mubr.f32.gmra.mxu0 %v711
    %v782 = vpop.f32.mrf.mxu0
    %v783 = vadd.f32 0.0, %v782
    %v784 = vpop.f32.mrf.mxu0
    %785 = vmatprep.mubr.f32.mxu0 0.0
    %786 = vmatmul.mubr.f32.gmra.mxu0 %v714
    %v787 = vpop.f32.mrf.mxu0
    %v788 = vadd.f32 0.0, %v787
    %v789 = vpop.f32.mrf.mxu0
    %790 = vdwg.mxu0
    %791 = vrot.lane.b32.xlu0 %v171, 104
    %v792 = vpop.permute.xlu0 %791
    %793 = vrot.lane.b32.xlu0 %v176, 104
    %v794 = vpop.permute.xlu0 %793
    %795 = vrot.lane.b32.xlu0 %v171, 72
    %v796 = vpop.permute.xlu0 %795
    %797 = vrot.lane.b32.xlu0 %v176, 72
    %v798 = vpop.permute.xlu0 %797
    %v799 = vsel %vm185, %v792, 0
    %v801 = vsel %vm185, %v794, 0
    %v803 = vsel %vm185, %v796, 0
    %v805 = vsel %vm185, %v798, 0
    %807 = vmatprep.subr.mxu0 0.0
    %808 = vmatpush1.xpose.msra.mxu0 0.0
    %809 = vmatprep.subr.mxu0 0.0
    %810 = vmatpush1.xpose.msra.mxu0 0.0
    %811 = vmatprep.subr.mxu0 0.0
    %812 = vmatpush1.xpose.msra.mxu0 0.0
    %813 = vmatprep.subr.mxu0 0.0
    %814 = vmatpush1.xpose.msra.mxu0 0.0
    %815 = vmatprep.subr.mxu0 0.0
    %816 = vmatpush1.xpose.msra.mxu0 0.0
    %817 = vmatprep.subr.mxu0 0.0
    %818 = vmatpush1.xpose.msra.mxu0 0.0
    %819 = vmatprep.subr.mxu0 0.0
    %820 = vmatpush1.xpose.msra.mxu0 0.0
    %821 = vmatprep.subr.mxu0 0.0
    %822 = vmatpush1.xpose.msra.mxu0 0.0
    %823 = vmatprep.subr.mxu0 0.0
    %824 = vmatpush1.xpose.msra.mxu0 0.0
    %825 = vmatprep.subr.mxu0 0.0
    %826 = vmatpush1.xpose.msra.mxu0 0.0
    %827 = vmatprep.subr.mxu0 0.0
    %828 = vmatpush1.xpose.msra.mxu0 0.0
    %829 = vmatprep.subr.mxu0 0.0
    %830 = vmatpush1.xpose.msra.mxu0 0.0
    %831 = vmatprep.subr.mxu0 0.0
    %832 = vmatpush1.xpose.msra.mxu0 0.0
    %833 = vmatprep.subr.mxu0 0.0
    %834 = vmatpush1.xpose.msra.mxu0 0.0
    %835 = vmatprep.subr.mxu0 0.0
    %836 = vmatpush1.xpose.msra.mxu0 %v805
    %837 = vmatprep.subr.mxu0 0.0
    %838 = vmatpush1.xpose.msra.mxu0 %v803
    %839 = vmatprep.subr.mxu0 0.0
    %840 = vmatpush2.xpose.msra.mxu0 0.0
    %841 = vmatprep.subr.mxu0 0.0
    %842 = vmatpush2.xpose.msra.mxu0 0.0
    %843 = vmatprep.subr.mxu0 0.0
    %844 = vmatpush2.xpose.msra.mxu0 0.0
    %845 = vmatprep.subr.mxu0 0.0
    %846 = vmatpush2.xpose.msra.mxu0 0.0
    %847 = vmatprep.subr.mxu0 0.0
    %848 = vmatpush2.xpose.msra.mxu0 0.0
    %849 = vmatprep.subr.mxu0 0.0
    %850 = vmatpush2.xpose.msra.mxu0 0.0
    %851 = vmatprep.subr.mxu0 0.0
    %852 = vmatpush2.xpose.msra.mxu0 0.0
    %853 = vmatprep.subr.mxu0 0.0
    %854 = vmatpush2.xpose.msra.mxu0 0.0
    %855 = vmatprep.subr.mxu0 0.0
    %856 = vmatpush2.xpose.msra.mxu0 0.0
    %857 = vmatprep.subr.mxu0 0.0
    %858 = vmatpush2.xpose.msra.mxu0 0.0
    %859 = vmatprep.subr.mxu0 0.0
    %860 = vmatpush2.xpose.msra.mxu0 0.0
    %861 = vmatprep.subr.mxu0 0.0
    %862 = vmatpush2.xpose.msra.mxu0 0.0
    %863 = vmatprep.subr.mxu0 0.0
    %864 = vmatpush2.xpose.msra.mxu0 0.0
    %865 = vmatprep.subr.mxu0 0.0
    %866 = vmatpush2.xpose.msra.mxu0 0.0
    %867 = vmatprep.subr.mxu0 0.0
    %868 = vmatpush2.xpose.msra.mxu0 0.0
    %869 = vmatprep.subr.mxu0 0.0
    %870 = vmatpush2.xpose.msra.mxu0 0.0
    %871 = vmatprep.mubr.f32.mxu0 0.0
    %872 = vmatmul.mubr.f32.gmra.mxu0 %v799
    %v873 = vpop.f32.mrf.mxu0
    %v874 = vadd.f32 0.0, %v873
    %v875 = vpop.f32.mrf.mxu0
    %876 = vmatprep.mubr.f32.mxu0 0.0
    %877 = vmatmul.mubr.f32.gmra.mxu0 %v801
    %v878 = vpop.f32.mrf.mxu0
    %v879 = vadd.f32 0.0, %v878
    %v880 = vpop.f32.mrf.mxu0
    %881 = vdwg.mxu0
    %v882 = vmul.f32 %v874, 0.35355338
    %v883 = vmul.f32 %v879, 0.35355338
    %v884 = vadd.f32 %v882, %v85
    %v885 = vadd.f32 %v883, %v86
    %v886 = vsel %vm273, %v884, -inf
    %887 = vmax.xlane.f32.xlu0 %v886
    %v888 = vpop.xlane.xlu0 %887
    %v889 = vsel %vm273, %v885, -inf
    %890 = vmax.xlane.f32.xlu0 %v889
    %v891 = vpop.xlane.xlu0 %890
    %v892 = vsub.f32 %v884, %v888
    %v893 = vsub.f32 %v885, %v891
    %v894 = vmul.f32 %v892, 1.442695
    %v895 = vpow.pop %v894
    %v896 = vmul.f32 %v893, 1.442695
    %v897 = vpow.pop %v896
    %v898 = vsel %vm273, %v895, 0.0
    %899 = vadd.xlane.f32.xlu0 %v898
    %v900 = vpop.xlane.xlu0 %899
    %v901 = vsel %vm273, %v897, 0.0
    %902 = vadd.xlane.f32.xlu0 %v901
    %v903 = vpop.xlane.xlu0 %902
    %v904 = vrcp.pop %v900
    %v905 = vrcp.pop %v903
    %v906 = vmul.f32 %v895, %v904
    %v907 = vmul.f32 %v897, %v905
    %908 = vrot.lane.b32.xlu0 %v171, 40
    %v909 = vpop.permute.xlu0 %908
    %910 = vrot.lane.b32.xlu0 %v176, 40
    %v911 = vpop.permute.xlu0 %910
    %v915 = vsel %vm273, %v906, 0
    %v918 = vsel %vm273, %v907, 0
    %920 = vmatprep.subr.mxu0 0.0
    %921 = vmatpush1.msra.mxu0 0.0
    %922 = vmatprep.subr.mxu0 0.0
    %923 = vmatpush1.msra.mxu0 0.0
    %924 = vmatprep.subr.mxu0 0.0
    %925 = vmatpush1.msra.mxu0 0.0
    %926 = vmatprep.subr.mxu0 0.0
    %927 = vmatpush1.msra.mxu0 0.0
    %928 = vmatprep.subr.mxu0 0.0
    %929 = vmatpush1.msra.mxu0 0.0
    %930 = vmatprep.subr.mxu0 0.0
    %931 = vmatpush1.msra.mxu0 0.0
    %932 = vmatprep.subr.mxu0 0.0
    %933 = vmatpush1.msra.mxu0 0.0
    %934 = vmatprep.subr.mxu0 0.0
    %935 = vmatpush1.msra.mxu0 0.0
    %936 = vmatprep.subr.mxu0 0.0
    %937 = vmatpush1.msra.mxu0 0.0
    %938 = vmatprep.subr.mxu0 0.0
    %939 = vmatpush1.msra.mxu0 0.0
    %940 = vmatprep.subr.mxu0 0.0
    %941 = vmatpush1.msra.mxu0 0.0
    %942 = vmatprep.subr.mxu0 0.0
    %943 = vmatpush1.msra.mxu0 0.0
    %944 = vmatprep.subr.mxu0 0.0
    %945 = vmatpush1.msra.mxu0 0.0
    %946 = vmatprep.subr.mxu0 0.0
    %947 = vmatpush1.msra.mxu0 0.0
    %948 = vmatprep.subr.mxu0 0.0
    %949 = vmatpush1.msra.mxu0 %v911
    %950 = vmatprep.subr.mxu0 0.0
    %951 = vmatpush1.msra.mxu0 %v909
    %952 = vmatprep.subr.mxu0 0.0
    %953 = vmatpush2.msra.mxu0 0.0
    %954 = vmatprep.subr.mxu0 0.0
    %955 = vmatpush2.msra.mxu0 0.0
    %956 = vmatprep.subr.mxu0 0.0
    %957 = vmatpush2.msra.mxu0 0.0
    %958 = vmatprep.subr.mxu0 0.0
    %959 = vmatpush2.msra.mxu0 0.0
    %960 = vmatprep.subr.mxu0 0.0
    %961 = vmatpush2.msra.mxu0 0.0
    %962 = vmatprep.subr.mxu0 0.0
    %963 = vmatpush2.msra.mxu0 0.0
    %964 = vmatprep.subr.mxu0 0.0
    %965 = vmatpush2.msra.mxu0 0.0
    %966 = vmatprep.subr.mxu0 0.0
    %967 = vmatpush2.msra.mxu0 0.0
    %968 = vmatprep.subr.mxu0 0.0
    %969 = vmatpush2.msra.mxu0 0.0
    %970 = vmatprep.subr.mxu0 0.0
    %971 = vmatpush2.msra.mxu0 0.0
    %972 = vmatprep.subr.mxu0 0.0
    %973 = vmatpush2.msra.mxu0 0.0
    %974 = vmatprep.subr.mxu0 0.0
    %975 = vmatpush2.msra.mxu0 0.0
    %976 = vmatprep.subr.mxu0 0.0
    %977 = vmatpush2.msra.mxu0 0.0
    %978 = vmatprep.subr.mxu0 0.0
    %979 = vmatpush2.msra.mxu0 0.0
    %980 = vmatprep.subr.mxu0 0.0
    %981 = vmatpush2.msra.mxu0 0.0
    %982 = vmatprep.subr.mxu0 0.0
    %983 = vmatpush2.msra.mxu0 0.0
    %984 = vmatprep.mubr.f32.mxu0 0.0
    %985 = vmatmul.mubr.f32.gmra.mxu0 %v915
    %v986 = vpop.f32.mrf.mxu0
    %v987 = vadd.f32 0.0, %v986
    %v988 = vpop.f32.mrf.mxu0
    %989 = vmatprep.mubr.f32.mxu0 0.0
    %990 = vmatmul.mubr.f32.gmra.mxu0 %v918
    %v991 = vpop.f32.mrf.mxu0
    %v992 = vadd.f32 0.0, %v991
    %v993 = vpop.f32.mrf.mxu0
    %994 = vdwg.mxu0
    %997 = vrot.lane.b32.xlu0 %v579, 8
    %v998 = vpop.permute.xlu0 %997
    %999 = vrot.lane.b32.xlu0 %v584, 8
    %v1000 = vpop.permute.xlu0 %999
    %1005 = vrot.lane.b32.xlu0 %v783, 16
    %v1006 = vpop.permute.xlu0 %1005
    %1007 = vrot.lane.b32.xlu0 %v788, 16
    %v1008 = vpop.permute.xlu0 %1007
    %1013 = vrot.lane.b32.xlu0 %v987, 24
    %v1014 = vpop.permute.xlu0 %1013
    %1015 = vrot.lane.b32.xlu0 %v992, 24
    %v1016 = vpop.permute.xlu0 %1015
    %v1019 = vsel %vm185, %v375, %v998
    %v1020 = vsel %vm185, %v380, %v1000
    %v1021 = vsel %vm273, %v1019, %v1006
    %v1022 = vsel %vm273, %v1020, %v1008
    %vm1023 = vcmask 195584
    %v1024 = vsel %vm1023, %v1021, %v1014
    %v1025 = vsel %vm1023, %v1022, %v1016
    %v1026 = vld [vmem:[%s2] sm:$0xff]
    %v1027 = vld [vmem:[%s2 + $0x10] sm:$0xff]
    %v1028 = vld [vmem:[%s2 + $0x20] sm:$0xff]
    %v1029 = vld [vmem:[%s2 + $0x30] sm:$0xff]
    %v1030 = vld [vmem:[%s4] sm:$0x1]
    %v1032 = vlaneseq
    %v1033 = vshrl.u32 %v1032, 7
    %v1034 = vsub.s32 0, %v1033
    %v1035 = vrot.slane %v1030, %v1034
    %1040 = vrot.lane.b32.xlu0 %v1026, 32
    %v1041 = vpop.permute.xlu0 %1040
    %1042 = vrot.lane.b32.xlu0 %v1027, 32
    %v1043 = vpop.permute.xlu0 %1042
    %1044 = vrot.lane.b32.xlu0 %v1028, 32
    %v1045 = vpop.permute.xlu0 %1044
    %1046 = vrot.lane.b32.xlu0 %v1029, 32
    %v1047 = vpop.permute.xlu0 %1046
    %1052 = vrot.lane.b32.xlu0 %v1035, 32
    %v1053 = vpop.permute.xlu0 %1052
    %v1056 = vsel %vm44, %v1024, 0
    %v1059 = vsel %vm44, %v1025, 0
    %1061 = vmatprep.subr.mxu0 0.0
    %1062 = vmatpush1.msra.mxu0 0.0
    %1063 = vmatprep.subr.mxu0 0.0
    %1064 = vmatpush1.msra.mxu0 0.0
    %1065 = vmatprep.subr.mxu0 0.0
    %1066 = vmatpush1.msra.mxu0 0.0
    %1067 = vmatprep.subr.mxu0 0.0
    %1068 = vmatpush1.msra.mxu0 0.0
    %1069 = vmatprep.subr.mxu0 0.0
    %1070 = vmatpush1.msra.mxu0 0.0
    %1071 = vmatprep.subr.mxu0 0.0
    %1072 = vmatpush1.msra.mxu0 0.0
    %1073 = vmatprep.subr.mxu0 0.0
    %1074 = vmatpush1.msra.mxu0 0.0
    %1075 = vmatprep.subr.mxu0 0.0
    %1076 = vmatpush1.msra.mxu0 0.0
    %1077 = vmatprep.subr.mxu0 0.0
    %1078 = vmatpush1.msra.mxu0 0.0
    %1079 = vmatprep.subr.mxu0 0.0
    %1080 = vmatpush1.msra.mxu0 0.0
    %1081 = vmatprep.subr.mxu0 0.0
    %1082 = vmatpush1.msra.mxu0 0.0
    %1083 = vmatprep.subr.mxu0 0.0
    %1084 = vmatpush1.msra.mxu0 0.0
    %1085 = vmatprep.subr.mxu0 0.0
    %1086 = vmatpush1.msra.mxu0 %v1047
    %1087 = vmatprep.subr.mxu0 0.0
    %1088 = vmatpush1.msra.mxu0 %v1045
    %1089 = vmatprep.subr.mxu0 0.0
    %1090 = vmatpush1.msra.mxu0 %v1043
    %1091 = vmatprep.subr.mxu0 0.0
    %1092 = vmatpush1.msra.mxu0 %v1041
    %1093 = vmatprep.subr.mxu0 0.0
    %1094 = vmatpush2.msra.mxu0 0.0
    %1095 = vmatprep.subr.mxu0 0.0
    %1096 = vmatpush2.msra.mxu0 0.0
    %1097 = vmatprep.subr.mxu0 0.0
    %1098 = vmatpush2.msra.mxu0 0.0
    %1099 = vmatprep.subr.mxu0 0.0
    %1100 = vmatpush2.msra.mxu0 0.0
    %1101 = vmatprep.subr.mxu0 0.0
    %1102 = vmatpush2.msra.mxu0 0.0
    %1103 = vmatprep.subr.mxu0 0.0
    %1104 = vmatpush2.msra.mxu0 0.0
    %1105 = vmatprep.subr.mxu0 0.0
    %1106 = vmatpush2.msra.mxu0 0.0
    %1107 = vmatprep.subr.mxu0 0.0
    %1108 = vmatpush2.msra.mxu0 0.0
    %1109 = vmatprep.subr.mxu0 0.0
    %1110 = vmatpush2.msra.mxu0 0.0
    %1111 = vmatprep.subr.mxu0 0.0
    %1112 = vmatpush2.msra.mxu0 0.0
    %1113 = vmatprep.subr.mxu0 0.0
    %1114 = vmatpush2.msra.mxu0 0.0
    %1115 = vmatprep.subr.mxu0 0.0
    %1116 = vmatpush2.msra.mxu0 0.0
    %1117 = vmatprep.subr.mxu0 0.0
    %1118 = vmatpush2.msra.mxu0 0.0
    %1119 = vmatprep.subr.mxu0 0.0
    %1120 = vmatpush2.msra.mxu0 0.0
    %1121 = vmatprep.subr.mxu0 0.0
    %1122 = vmatpush2.msra.mxu0 0.0
    %1123 = vmatprep.subr.mxu0 0.0
    %1124 = vmatpush2.msra.mxu0 0.0
    %1125 = vmatprep.mubr.f32.mxu0 0.0
    %1126 = vmatmul.mubr.f32.gmra.mxu0 %v1056
    %v1127 = vpop.f32.mrf.mxu0
    %v1128 = vadd.f32 %v1053, %v1127
    %v1129 = vpop.f32.mrf.mxu0
    %1130 = vmatprep.mubr.f32.mxu0 0.0
    %1131 = vmatmul.mubr.f32.gmra.mxu0 %v1059
    %v1132 = vpop.f32.mrf.mxu0
    %v1133 = vadd.f32 %v1053, %v1132
    %v1134 = vpop.f32.mrf.mxu0
    %1135 = vdwg.mxu0
    %v1136 = vadd.f32 %v83, %v1128
    %v1137 = vadd.f32 %v84, %v1133
    %v1138 = vld [vmem:[%s4 + $0x1] sm:$0x1]
    %v1139 = vsel %vm44, %v1136, 0.0
    %1140 = vadd.xlane.f32.xlu0 %v1139
    %v1141 = vpop.xlane.xlu0 %1140
    %v1142 = vsel %vm44, %v1137, 0.0
    %1143 = vadd.xlane.f32.xlu0 %v1142
    %v1144 = vpop.xlane.xlu0 %1143
    %v1145 = vmul.f32 %v1141, %v51
    %v1146 = vmul.f32 %v1144, %v51
    %v1147 = vsub.f32 %v1136, %v1145
    %v1148 = vsub.f32 %v1137, %v1146
    %v1149 = vmul.f32 %v1147, %v1147
    %v1150 = vmul.f32 %v1148, %v1148
    %v1151 = vsel %vm44, %v1149, 0.0
    %1152 = vadd.xlane.f32.xlu0 %v1151
    %v1153 = vpop.xlane.xlu0 %1152
    %v1154 = vsel %vm44, %v1150, 0.0
    %1155 = vadd.xlane.f32.xlu0 %v1154
    %v1156 = vpop.xlane.xlu0 %1155
    %v1157 = vmul.f32 %v1153, %v51
    %v1158 = vmul.f32 %v1156, %v51
    %v1159 = vadd.f32 %v1157, 1e-12
    %v1160 = vadd.f32 %v1158, 1e-12
    %v1161 = vrsqrt.pop %v1159
    %v1162 = vrsqrt.pop %v1160
    %v1163 = vmul.f32 %v1147, %v1161
    %v1164 = vmul.f32 %v1148, %v1162
    %v1166 = vlaneseq
    %v1167 = vshrl.u32 %v1166, 7
    %v1168 = vsub.s32 0, %v1167
    %v1169 = vrot.slane %v1138, %v1168
    %v1171 = vmul.f32 %v1163, %v1169
    %v1172 = vmul.f32 %v1164, %v1169
    %1173 = vrot.lane.b32.xlu0 %v1169, 96
    %v1174 = vpop.permute.xlu0 %1173
    %v1176 = vadd.f32 %v1171, %v1174
    %v1177 = vadd.f32 %v1172, %v1174
    %v1178 = vld [vmem:[%s2 + $0x8] sm:$0xff]
    %v1179 = vld [vmem:[%s2 + $0x18] sm:$0xff]
    %v1180 = vld [vmem:[%s2 + $0x28] sm:$0xff]
    %v1181 = vld [vmem:[%s2 + $0x38] sm:$0xff]
    %1182 = vrot.lane.b32.xlu0 %v1169, 64
    %v1183 = vpop.permute.xlu0 %1182
    %v1186 = vsel %vm44, %v1176, 0
    %v1189 = vsel %vm44, %v1177, 0
    %1191 = vmatprep.subr.mxu0 0.0
    %1192 = vmatpush1.msra.mxu0 0.0
    %1193 = vmatprep.subr.mxu0 0.0
    %1194 = vmatpush1.msra.mxu0 0.0
    %1195 = vmatprep.subr.mxu0 0.0
    %1196 = vmatpush1.msra.mxu0 0.0
    %1197 = vmatprep.subr.mxu0 0.0
    %1198 = vmatpush1.msra.mxu0 0.0
    %1199 = vmatprep.subr.mxu0 0.0
    %1200 = vmatpush1.msra.mxu0 0.0
    %1201 = vmatprep.subr.mxu0 0.0
    %1202 = vmatpush1.msra.mxu0 0.0
    %1203 = vmatprep.subr.mxu0 0.0
    %1204 = vmatpush1.msra.mxu0 0.0
    %1205 = vmatprep.subr.mxu0 0.0
    %1206 = vmatpush1.msra.mxu0 0.0
    %1207 = vmatprep.subr.mxu0 0.0
    %1208 = vmatpush1.msra.mxu0 0.0
    %1209 = vmatprep.subr.mxu0 0.0
    %1210 = vmatpush1.msra.mxu0 0.0
    %1211 = vmatprep.subr.mxu0 0.0
    %1212 = vmatpush1.msra.mxu0 0.0
    %1213 = vmatprep.subr.mxu0 0.0
    %1214 = vmatpush1.msra.mxu0 0.0
    %1215 = vmatprep.subr.mxu0 0.0
    %1216 = vmatpush1.msra.mxu0 %v1181
    %1217 = vmatprep.subr.mxu0 0.0
    %1218 = vmatpush1.msra.mxu0 %v1180
    %1219 = vmatprep.subr.mxu0 0.0
    %1220 = vmatpush1.msra.mxu0 %v1179
    %1221 = vmatprep.subr.mxu0 0.0
    %1222 = vmatpush1.msra.mxu0 %v1178
    %1223 = vmatprep.subr.mxu0 0.0
    %1224 = vmatpush2.msra.mxu0 0.0
    %1225 = vmatprep.subr.mxu0 0.0
    %1226 = vmatpush2.msra.mxu0 0.0
    %1227 = vmatprep.subr.mxu0 0.0
    %1228 = vmatpush2.msra.mxu0 0.0
    %1229 = vmatprep.subr.mxu0 0.0
    %1230 = vmatpush2.msra.mxu0 0.0
    %1231 = vmatprep.subr.mxu0 0.0
    %1232 = vmatpush2.msra.mxu0 0.0
    %1233 = vmatprep.subr.mxu0 0.0
    %1234 = vmatpush2.msra.mxu0 0.0
    %1235 = vmatprep.subr.mxu0 0.0
    %1236 = vmatpush2.msra.mxu0 0.0
    %1237 = vmatprep.subr.mxu0 0.0
    %1238 = vmatpush2.msra.mxu0 0.0
    %1239 = vmatprep.subr.mxu0 0.0
    %1240 = vmatpush2.msra.mxu0 0.0
    %1241 = vmatprep.subr.mxu0 0.0
    %1242 = vmatpush2.msra.mxu0 0.0
    %1243 = vmatprep.subr.mxu0 0.0
    %1244 = vmatpush2.msra.mxu0 0.0
    %1245 = vmatprep.subr.mxu0 0.0
    %1246 = vmatpush2.msra.mxu0 0.0
    %1247 = vmatprep.subr.mxu0 0.0
    %1248 = vmatpush2.msra.mxu0 0.0
    %1249 = vmatprep.subr.mxu0 0.0
    %1250 = vmatpush2.msra.mxu0 0.0
    %1251 = vmatprep.subr.mxu0 0.0
    %1252 = vmatpush2.msra.mxu0 0.0
    %1253 = vmatprep.subr.mxu0 0.0
    %1254 = vmatpush2.msra.mxu0 0.0
    %1255 = vmatprep.mubr.f32.mxu0 0.0
    %1256 = vmatmul.mubr.f32.gmra.mxu0 %v1186
    %v1257 = vpop.f32.mrf.mxu0
    %v1258 = vadd.f32 %v1183, %v1257
    %v1259 = vpop.f32.mrf.mxu0
    %1260 = vmatprep.mubr.f32.mxu0 0.0
    %1261 = vmatmul.mubr.f32.gmra.mxu0 %v1189
    %v1262 = vpop.f32.mrf.mxu0
    %v1263 = vadd.f32 %v1183, %v1262
    %v1264 = vpop.f32.mrf.mxu0
    %1265 = vdwg.mxu0
    %v1266 = vmul.f32 %v1258, 0.5
    %v1267 = vmul.f32 %v1263, 0.5
    %v1268 = vmul.f32 %v1258, 0.044715
    %v1269 = vmul.f32 %v1263, 0.044715
    %v1270 = vmul.f32 %v1268, %v1258
    %v1271 = vmul.f32 %v1269, %v1263
    %v1272 = vmul.f32 %v1270, %v1258
    %v1273 = vmul.f32 %v1271, %v1263
    %v1274 = vadd.f32 %v1258, %v1272
    %v1275 = vadd.f32 %v1263, %v1273
    %v1276 = vmul.f32 %v1274, 0.7978846
    %v1277 = vmul.f32 %v1275, 0.7978846
    %v1278 = vtanh.pop %v1276
    %v1279 = vtanh.pop %v1277
    %v1280 = vadd.f32 %v1278, 1.0
    %v1281 = vadd.f32 %v1279, 1.0
    %v1282 = vmul.f32 %v1266, %v1280
    %v1283 = vmul.f32 %v1267, %v1281
    %v1284 = vld [vmem:[%s3] sm:$0xff]
    %v1285 = vld [vmem:[%s3 + $0x8] sm:$0xff]
    %v1286 = vld [vmem:[%s3 + $0x10] sm:$0xff]
    %v1287 = vld [vmem:[%s3 + $0x18] sm:$0xff]
    %v1288 = vld [vmem:[%s3 + $0x20] sm:$0xff]
    %v1289 = vld [vmem:[%s3 + $0x28] sm:$0xff]
    %v1290 = vld [vmem:[%s3 + $0x30] sm:$0xff]
    %v1291 = vld [vmem:[%s3 + $0x38] sm:$0xff]
    %v1292 = vld [vmem:[%s4 + $0x2] sm:$0x1]
    %v1294 = vlaneseq
    %v1295 = vshrl.u32 %v1294, 7
    %v1296 = vsub.s32 0, %v1295
    %v1297 = vrot.slane %v1292, %v1296
    %vm1299 = vcmask 523264
    %v1301 = vsel %vm1299, %v1282, 0
    %v1304 = vsel %vm1299, %v1283, 0
    %1306 = vmatprep.subr.mxu0 0.0
    %1307 = vmatpush1.msra.mxu0 0.0
    %1308 = vmatprep.subr.mxu0 0.0
    %1309 = vmatpush1.msra.mxu0 0.0
    %1310 = vmatprep.subr.mxu0 0.0
    %1311 = vmatpush1.msra.mxu0 0.0
    %1312 = vmatprep.subr.mxu0 0.0
    %1313 = vmatpush1.msra.mxu0 0.0
    %1314 = vmatprep.subr.mxu0 0.0
    %1315 = vmatpush1.msra.mxu0 0.0
    %1316 = vmatprep.subr.mxu0 0.0
    %1317 = vmatpush1.msra.mxu0 0.0
    %1318 = vmatprep.subr.mxu0 0.0
    %1319 = vmatpush1.msra.mxu0 0.0
    %1320 = vmatprep.subr.mxu0 0.0
    %1321 = vmatpush1.msra.mxu0 0.0
    %1322 = vmatprep.subr.mxu0 0.0
    %1323 = vmatpush1.msra.mxu0 %v1291
    %1324 = vmatprep.subr.mxu0 0.0
    %1325 = vmatpush1.msra.mxu0 %v1290
    %1326 = vmatprep.subr.mxu0 0.0
    %1327 = vmatpush1.msra.mxu0 %v1289
    %1328 = vmatprep.subr.mxu0 0.0
    %1329 = vmatpush1.msra.mxu0 %v1288
    %1330 = vmatprep.subr.mxu0 0.0
    %1331 = vmatpush1.msra.mxu0 %v1287
    %1332 = vmatprep.subr.mxu0 0.0
    %1333 = vmatpush1.msra.mxu0 %v1286
    %1334 = vmatprep.subr.mxu0 0.0
    %1335 = vmatpush1.msra.mxu0 %v1285
    %1336 = vmatprep.subr.mxu0 0.0
    %1337 = vmatpush1.msra.mxu0 %v1284
    %1338 = vmatprep.subr.mxu0 0.0
    %1339 = vmatpush2.msra.mxu0 0.0
    %1340 = vmatprep.subr.mxu0 0.0
    %1341 = vmatpush2.msra.mxu0 0.0
    %1342 = vmatprep.subr.mxu0 0.0
    %1343 = vmatpush2.msra.mxu0 0.0
    %1344 = vmatprep.subr.mxu0 0.0
    %1345 = vmatpush2.msra.mxu0 0.0
    %1346 = vmatprep.subr.mxu0 0.0
    %1347 = vmatpush2.msra.mxu0 0.0
    %1348 = vmatprep.subr.mxu0 0.0
    %1349 = vmatpush2.msra.mxu0 0.0
    %1350 = vmatprep.subr.mxu0 0.0
    %1351 = vmatpush2.msra.mxu0 0.0
    %1352 = vmatprep.subr.mxu0 0.0
    %1353 = vmatpush2.msra.mxu0 0.0
    %1354 = vmatprep.subr.mxu0 0.0
    %1355 = vmatpush2.msra.mxu0 0.0
    %1356 = vmatprep.subr.mxu0 0.0
    %1357 = vmatpush2.msra.mxu0 0.0
    %1358 = vmatprep.subr.mxu0 0.0
    %1359 = vmatpush2.msra.mxu0 0.0
    %1360 = vmatprep.subr.mxu0 0.0
    %1361 = vmatpush2.msra.mxu0 0.0
    %1362 = vmatprep.subr.mxu0 0.0
    %1363 = vmatpush2.msra.mxu0 0.0
    %1364 = vmatprep.subr.mxu0 0.0
    %1365 = vmatpush2.msra.mxu0 0.0
    %1366 = vmatprep.subr.mxu0 0.0
    %1367 = vmatpush2.msra.mxu0 0.0
    %1368 = vmatprep.subr.mxu0 0.0
    %1369 = vmatpush2.msra.mxu0 0.0
    %1370 = vmatprep.mubr.f32.mxu0 0.0
    %1371 = vmatmul.mubr.f32.gmra.mxu0 %v1301
    %v1372 = vpop.f32.mrf.mxu0
    %v1373 = vadd.f32 %v1297, %v1372
    %v1374 = vpop.f32.mrf.mxu0
    %1375 = vmatprep.mubr.f32.mxu0 0.0
    %1376 = vmatmul.mubr.f32.gmra.mxu0 %v1304
    %v1377 = vpop.f32.mrf.mxu0
    %v1378 = vadd.f32 %v1297, %v1377
    %v1379 = vpop.f32.mrf.mxu0
    %1380 = vdwg.mxu0
    %v1381 = vadd.f32 %v1176, %v1373
    %v1382 = vadd.f32 %v1177, %v1378
    %v1383 = vsel %vm44, %v1381, 0.0
    %1384 = vadd.xlane.f32.xlu0 %v1383
    %v1385 = vpop.xlane.xlu0 %1384
    %v1386 = vsel %vm44, %v1382, 0.0
    %1387 = vadd.xlane.f32.xlu0 %v1386
    %v1388 = vpop.xlane.xlu0 %1387
    %v1389 = vmul.f32 %v1385, %v51
    %v1390 = vmul.f32 %v1388, %v51
    %v1391 = vsub.f32 %v1381, %v1389
    %v1392 = vsub.f32 %v1382, %v1390
    %v1393 = vmul.f32 %v1391, %v1391
    %v1394 = vmul.f32 %v1392, %v1392
    %v1395 = vsel %vm44, %v1393, 0.0
    %1396 = vadd.xlane.f32.xlu0 %v1395
    %v1397 = vpop.xlane.xlu0 %1396
    %v1398 = vsel %vm44, %v1394, 0.0
    %1399 = vadd.xlane.f32.xlu0 %v1398
    %v1400 = vpop.xlane.xlu0 %1399
    %v1401 = vmul.f32 %v1397, %v51
    %v1402 = vmul.f32 %v1400, %v51
    %v1403 = vadd.f32 %v1401, 1e-12
    %v1404 = vadd.f32 %v1402, 1e-12
    %v1405 = vrsqrt.pop %v1403
    %v1406 = vrsqrt.pop %v1404
    %v1407 = vmul.f32 %v1391, %v1405
    %v1408 = vmul.f32 %v1392, %v1406
    %1409 = vrot.lane.b32.xlu0 %v1297, 96
    %v1410 = vpop.permute.xlu0 %1409
    %v1412 = vmul.f32 %v1407, %v1410
    %v1413 = vmul.f32 %v1408, %v1410
    %1414 = vrot.lane.b32.xlu0 %v1297, 64
    %v1415 = vpop.permute.xlu0 %1414
    %v1417 = vadd.f32 %v1412, %v1415
    %v1418 = vadd.f32 %v1413, %v1415
    %s1419 = scalar_lea.vmem %s2, 64
    %v1420 = vld [vmem:[%s1419] sm:$0xff]
    %v1421 = vld [vmem:[%s1419 + $0x10] sm:$0xff]
    %v1422 = vld [vmem:[%s1419 + $0x20] sm:$0xff]
    %v1423 = vld [vmem:[%s1419 + $0x30] sm:$0xff]
    %s1424 = scalar_lea.vmem %s4, 3
    %v1425 = vld [vmem:[%s1424] sm:$0x1]
    %v1427 = vlaneseq
    %v1428 = vshrl.u32 %v1427, 7
    %v1429 = vsub.s32 0, %v1428
    %v1430 = vrot.slane %v1425, %v1429
    %v1433 = vsel %vm44, %v1417, 0
    %v1436 = vsel %vm44, %v1418, 0
    %1438 = vmatprep.subr.mxu0 0.0
    %1439 = vmatpush1.msra.mxu0 0.0
    %1440 = vmatprep.subr.mxu0 0.0
    %1441 = vmatpush1.msra.mxu0 0.0
    %1442 = vmatprep.subr.mxu0 0.0
    %1443 = vmatpush1.msra.mxu0 0.0
    %1444 = vmatprep.subr.mxu0 0.0
    %1445 = vmatpush1.msra.mxu0 0.0
    %1446 = vmatprep.subr.mxu0 0.0
    %1447 = vmatpush1.msra.mxu0 0.0
    %1448 = vmatprep.subr.mxu0 0.0
    %1449 = vmatpush1.msra.mxu0 0.0
    %1450 = vmatprep.subr.mxu0 0.0
    %1451 = vmatpush1.msra.mxu0 0.0
    %1452 = vmatprep.subr.mxu0 0.0
    %1453 = vmatpush1.msra.mxu0 0.0
    %1454 = vmatprep.subr.mxu0 0.0
    %1455 = vmatpush1.msra.mxu0 0.0
    %1456 = vmatprep.subr.mxu0 0.0
    %1457 = vmatpush1.msra.mxu0 0.0
    %1458 = vmatprep.subr.mxu0 0.0
    %1459 = vmatpush1.msra.mxu0 0.0
    %1460 = vmatprep.subr.mxu0 0.0
    %1461 = vmatpush1.msra.mxu0 0.0
    %1462 = vmatprep.subr.mxu0 0.0
    %1463 = vmatpush1.msra.mxu0 %v1423
    %1464 = vmatprep.subr.mxu0 0.0
    %1465 = vmatpush1.msra.mxu0 %v1422
    %1466 = vmatprep.subr.mxu0 0.0
    %1467 = vmatpush1.msra.mxu0 %v1421
    %1468 = vmatprep.subr.mxu0 0.0
    %1469 = vmatpush1.msra.mxu0 %v1420
    %1470 = vmatprep.subr.mxu0 0.0
    %1471 = vmatpush2.msra.mxu0 0.0
    %1472 = vmatprep.subr.mxu0 0.0
    %1473 = vmatpush2.msra.mxu0 0.0
    %1474 = vmatprep.subr.mxu0 0.0
    %1475 = vmatpush2.msra.mxu0 0.0
    %1476 = vmatprep.subr.mxu0 0.0
    %1477 = vmatpush2.msra.mxu0 0.0
    %1478 = vmatprep.subr.mxu0 0.0
    %1479 = vmatpush2.msra.mxu0 0.0
    %1480 = vmatprep.subr.mxu0 0.0
    %1481 = vmatpush2.msra.mxu0 0.0
    %1482 = vmatprep.subr.mxu0 0.0
    %1483 = vmatpush2.msra.mxu0 0.0
    %1484 = vmatprep.subr.mxu0 0.0
    %1485 = vmatpush2.msra.mxu0 0.0
    %1486 = vmatprep.subr.mxu0 0.0
    %1487 = vmatpush2.msra.mxu0 0.0
    %1488 = vmatprep.subr.mxu0 0.0
    %1489 = vmatpush2.msra.mxu0 0.0
    %1490 = vmatprep.subr.mxu0 0.0
    %1491 = vmatpush2.msra.mxu0 0.0
    %1492 = vmatprep.subr.mxu0 0.0
    %1493 = vmatpush2.msra.mxu0 0.0
    %1494 = vmatprep.subr.mxu0 0.0
    %1495 = vmatpush2.msra.mxu0 0.0
    %1496 = vmatprep.subr.mxu0 0.0
    %1497 = vmatpush2.msra.mxu0 0.0
    %1498 = vmatprep.subr.mxu0 0.0
    %1499 = vmatpush2.msra.mxu0 0.0
    %1500 = vmatprep.subr.mxu0 0.0
    %1501 = vmatpush2.msra.mxu0 0.0
    %1502 = vmatprep.mubr.f32.mxu0 0.0
    %1503 = vmatmul.mubr.f32.gmra.mxu0 %v1433
    %v1504 = vpop.f32.mrf.mxu0
    %v1505 = vadd.f32 %v1430, %v1504
    %v1506 = vpop.f32.mrf.mxu0
    %1507 = vmatprep.mubr.f32.mxu0 0.0
    %1508 = vmatmul.mubr.f32.gmra.mxu0 %v1436
    %v1509 = vpop.f32.mrf.mxu0
    %v1510 = vadd.f32 %v1430, %v1509
    %v1511 = vpop.f32.mrf.mxu0
    %1512 = vdwg.mxu0
    %1515 = vrot.lane.b32.xlu0 %v1505, 96
    %v1516 = vpop.permute.xlu0 %1515
    %1517 = vrot.lane.b32.xlu0 %v1510, 96
    %v1518 = vpop.permute.xlu0 %1517
    %v1519 = vsel %vm185, %v1505, 0
    %v1521 = vsel %vm185, %v1510, 0
    %v1523 = vsel %vm185, %v1516, 0
    %v1525 = vsel %vm185, %v1518, 0
    %1527 = vmatprep.subr.mxu0 0.0
    %1528 = vmatpush1.xpose.msra.mxu0 0.0
    %1529 = vmatprep.subr.mxu0 0.0
    %1530 = vmatpush1.xpose.msra.mxu0 0.0
    %1531 = vmatprep.subr.mxu0 0.0
    %1532 = vmatpush1.xpose.msra.mxu0 0.0
    %1533 = vmatprep.subr.mxu0 0.0
    %1534 = vmatpush1.xpose.msra.mxu0 0.0
    %1535 = vmatprep.subr.mxu0 0.0
    %1536 = vmatpush1.xpose.msra.mxu0 0.0
    %1537 = vmatprep.subr.mxu0 0.0
    %1538 = vmatpush1.xpose.msra.mxu0 0.0
    %1539 = vmatprep.subr.mxu0 0.0
    %1540 = vmatpush1.xpose.msra.mxu0 0.0
    %1541 = vmatprep.subr.mxu0 0.0
    %1542 = vmatpush1.xpose.msra.mxu0 0.0
    %1543 = vmatprep.subr.mxu0 0.0
    %1544 = vmatpush1.xpose.msra.mxu0 0.0
    %1545 = vmatprep.subr.mxu0 0.0
    %1546 = vmatpush1.xpose.msra.mxu0 0.0
    %1547 = vmatprep.subr.mxu0 0.0
    %1548 = vmatpush1.xpose.msra.mxu0 0.0
    %1549 = vmatprep.subr.mxu0 0.0
    %1550 = vmatpush1.xpose.msra.mxu0 0.0
    %1551 = vmatprep.subr.mxu0 0.0
    %1552 = vmatpush1.xpose.msra.mxu0 0.0
    %1553 = vmatprep.subr.mxu0 0.0
    %1554 = vmatpush1.xpose.msra.mxu0 0.0
    %1555 = vmatprep.subr.mxu0 0.0
    %1556 = vmatpush1.xpose.msra.mxu0 %v1525
    %1557 = vmatprep.subr.mxu0 0.0
    %1558 = vmatpush1.xpose.msra.mxu0 %v1523
    %1559 = vmatprep.subr.mxu0 0.0
    %1560 = vmatpush2.xpose.msra.mxu0 0.0
    %1561 = vmatprep.subr.mxu0 0.0
    %1562 = vmatpush2.xpose.msra.mxu0 0.0
    %1563 = vmatprep.subr.mxu0 0.0
    %1564 = vmatpush2.xpose.msra.mxu0 0.0
    %1565 = vmatprep.subr.mxu0 0.0
    %1566 = vmatpush2.xpose.msra.mxu0 0.0
    %1567 = vmatprep.subr.mxu0 0.0
    %1568 = vmatpush2.xpose.msra.mxu0 0.0
    %1569 = vmatprep.subr.mxu0 0.0
    %1570 = vmatpush2.xpose.msra.mxu0 0.0
    %1571 = vmatprep.subr.mxu0 0.0
    %1572 = vmatpush2.xpose.msra.mxu0 0.0
    %1573 = vmatprep.subr.mxu0 0.0
    %1574 = vmatpush2.xpose.msra.mxu0 0.0
    %1575 = vmatprep.subr.mxu0 0.0
    %1576 = vmatpush2.xpose.msra.mxu0 0.0
    %1577 = vmatprep.subr.mxu0 0.0
    %1578 = vmatpush2.xpose.msra.mxu0 0.0
    %1579 = vmatprep.subr.mxu0 0.0
    %1580 = vmatpush2.xpose.msra.mxu0 0.0
    %1581 = vmatprep.subr.mxu0 0.0
    %1582 = vmatpush2.xpose.msra.mxu0 0.0
    %1583 = vmatprep.subr.mxu0 0.0
    %1584 = vmatpush2.xpose.msra.mxu0 0.0
    %1585 = vmatprep.subr.mxu0 0.0
    %1586 = vmatpush2.xpose.msra.mxu0 0.0
    %1587 = vmatprep.subr.mxu0 0.0
    %1588 = vmatpush2.xpose.msra.mxu0 0.0
    %1589 = vmatprep.subr.mxu0 0.0
    %1590 = vmatpush2.xpose.msra.mxu0 0.0
    %1591 = vmatprep.mubr.f32.mxu0 0.0
    %1592 = vmatmul.mubr.f32.gmra.mxu0 %v1519
    %v1593 = vpop.f32.mrf.mxu0
    %v1594 = vadd.f32 0.0, %v1593
    %v1595 = vpop.f32.mrf.mxu0
    %1596 = vmatprep.mubr.f32.mxu0 0.0
    %1597 = vmatmul.mubr.f32.gmra.mxu0 %v1521
    %v1598 = vpop.f32.mrf.mxu0
    %v1599 = vadd.f32 0.0, %v1598
    %v1600 = vpop.f32.mrf.mxu0
    %1601 = vdwg.mxu0
    %v1602 = vmul.f32 %v1594, 0.35355338
    %v1603 = vmul.f32 %v1599, 0.35355338
    %v1604 = vadd.f32 %v1602, %v85
    %v1605 = vadd.f32 %v1603, %v86
    %v1606 = vsel %vm273, %v1604, -inf
    %1607 = vmax.xlane.f32.xlu0 %v1606
    %v1608 = vpop.xlane.xlu0 %1607
    %v1609 = vsel %vm273, %v1605, -inf
    %1610 = vmax.xlane.f32.xlu0 %v1609
    %v1611 = vpop.xlane.xlu0 %1610
    %v1612 = vsub.f32 %v1604, %v1608
    %v1613 = vsub.f32 %v1605, %v1611
    %v1614 = vmul.f32 %v1612, 1.442695
    %v1615 = vpow.pop %v1614
    %v1616 = vmul.f32 %v1613, 1.442695
    %v1617 = vpow.pop %v1616
    %v1618 = vsel %vm273, %v1615, 0.0
    %1619 = vadd.xlane.f32.xlu0 %v1618
    %v1620 = vpop.xlane.xlu0 %1619
    %v1621 = vsel %vm273, %v1617, 0.0
    %1622 = vadd.xlane.f32.xlu0 %v1621
    %v1623 = vpop.xlane.xlu0 %1622
    %v1624 = vrcp.pop %v1620
    %v1625 = vrcp.pop %v1623
    %v1626 = vmul.f32 %v1615, %v1624
    %v1627 = vmul.f32 %v1617, %v1625
    %1628 = vrot.lane.b32.xlu0 %v1505, 64
    %v1629 = vpop.permute.xlu0 %1628
    %1630 = vrot.lane.b32.xlu0 %v1510, 64
    %v1631 = vpop.permute.xlu0 %1630
    %v1635 = vsel %vm273, %v1626, 0
    %v1638 = vsel %vm273, %v1627, 0
    %1640 = vmatprep.subr.mxu0 0.0
    %1641 = vmatpush1.msra.mxu0 0.0
    %1642 = vmatprep.subr.mxu0 0.0
    %1643 = vmatpush1.msra.mxu0 0.0
    %1644 = vmatprep.subr.mxu0 0.0
    %1645 = vmatpush1.msra.mxu0 0.0
    %1646 = vmatprep.subr.mxu0 0.0
    %1647 = vmatpush1.msra.mxu0 0.0
    %1648 = vmatprep.subr.mxu0 0.0
    %1649 = vmatpush1.msra.mxu0 0.0
    %1650 = vmatprep.subr.mxu0 0.0
    %1651 = vmatpush1.msra.mxu0 0.0
    %1652 = vmatprep.subr.mxu0 0.0
    %1653 = vmatpush1.msra.mxu0 0.0
    %1654 = vmatprep.subr.mxu0 0.0
    %1655 = vmatpush1.msra.mxu0 0.0
    %1656 = vmatprep.subr.mxu0 0.0
    %1657 = vmatpush1.msra.mxu0 0.0
    %1658 = vmatprep.subr.mxu0 0.0
    %1659 = vmatpush1.msra.mxu0 0.0
    %1660 = vmatprep.subr.mxu0 0.0
    %1661 = vmatpush1.msra.mxu0 0.0
    %1662 = vmatprep.subr.mxu0 0.0
    %1663 = vmatpush1.msra.mxu0 0.0
    %1664 = vmatprep.subr.mxu0 0.0
    %1665 = vmatpush1.msra.mxu0 0.0
    %1666 = vmatprep.subr.mxu0 0.0
    %1667 = vmatpush1.msra.mxu0 0.0
    %1668 = vmatprep.subr.mxu0 0.0
    %1669 = vmatpush1.msra.mxu0 %v1631
    %1670 = vmatprep.subr.mxu0 0.0
    %1671 = vmatpush1.msra.mxu0 %v1629
    %1672 = vmatprep.subr.mxu0 0.0
    %1673 = vmatpush2.msra.mxu0 0.0
    %1674 = vmatprep.subr.mxu0 0.0
    %1675 = vmatpush2.msra.mxu0 0.0
    %1676 = vmatprep.subr.mxu0 0.0
    %1677 = vmatpush2.msra.mxu0 0.0
    %1678 = vmatprep.subr.mxu0 0.0
    %1679 = vmatpush2.msra.mxu0 0.0
    %1680 = vmatprep.subr.mxu0 0.0
    %1681 = vmatpush2.msra.mxu0 0.0
    %1682 = vmatprep.subr.mxu0 0.0
    %1683 = vmatpush2.msra.mxu0 0.0
    %1684 = vmatprep.subr.mxu0 0.0
    %1685 = vmatpush2.msra.mxu0 0.0
    %1686 = vmatprep.subr.mxu0 0.0
    %1687 = vmatpush2.msra.mxu0 0.0
    %1688 = vmatprep.subr.mxu0 0.0
    %1689 = vmatpush2.msra.mxu0 0.0
    %1690 = vmatprep.subr.mxu0 0.0
    %1691 = vmatpush2.msra.mxu0 0.0
    %1692 = vmatprep.subr.mxu0 0.0
    %1693 = vmatpush2.msra.mxu0 0.0
    %1694 = vmatprep.subr.mxu0 0.0
    %1695 = vmatpush2.msra.mxu0 0.0
    %1696 = vmatprep.subr.mxu0 0.0
    %1697 = vmatpush2.msra.mxu0 0.0
    %1698 = vmatprep.subr.mxu0 0.0
    %1699 = vmatpush2.msra.mxu0 0.0
    %1700 = vmatprep.subr.mxu0 0.0
    %1701 = vmatpush2.msra.mxu0 0.0
    %1702 = vmatprep.subr.mxu0 0.0
    %1703 = vmatpush2.msra.mxu0 0.0
    %1704 = vmatprep.mubr.f32.mxu0 0.0
    %1705 = vmatmul.mubr.f32.gmra.mxu0 %v1635
    %v1706 = vpop.f32.mrf.mxu0
    %v1707 = vadd.f32 0.0, %v1706
    %v1708 = vpop.f32.mrf.mxu0
    %1709 = vmatprep.mubr.f32.mxu0 0.0
    %1710 = vmatmul.mubr.f32.gmra.mxu0 %v1638
    %v1711 = vpop.f32.mrf.mxu0
    %v1712 = vadd.f32 0.0, %v1711
    %v1713 = vpop.f32.mrf.mxu0
    %1714 = vdwg.mxu0
    %1715 = vrot.lane.b32.xlu0 %v1505, 120
    %v1716 = vpop.permute.xlu0 %1715
    %1717 = vrot.lane.b32.xlu0 %v1510, 120
    %v1718 = vpop.permute.xlu0 %1717
    %1719 = vrot.lane.b32.xlu0 %v1505, 88
    %v1720 = vpop.permute.xlu0 %1719
    %1721 = vrot.lane.b32.xlu0 %v1510, 88
    %v1722 = vpop.permute.xlu0 %1721
    %v1723 = vsel %vm185, %v1716, 0
    %v1725 = vsel %vm185, %v1718, 0
    %v1727 = vsel %vm185, %v1720, 0
    %v1729 = vsel %vm185, %v1722, 0
    %1731 = vmatprep.subr.mxu0 0.0
    %1732 = vmatpush1.xpose.msra.mxu0 0.0
    %1733 = vmatprep.subr.mxu0 0.0
    %1734 = vmatpush1.xpose.msra.mxu0 0.0
    %1735 = vmatprep.subr.mxu0 0.0
    %1736 = vmatpush1.xpose.msra.mxu0 0.0
    %1737 = vmatprep.subr.mxu0 0.0
    %1738 = vmatpush1.xpose.msra.mxu0 0.0
    %1739 = vmatprep.subr.mxu0 0.0
    %1740 = vmatpush1.xpose.msra.mxu0 0.0
    %1741 = vmatprep.subr.mxu0 0.0
    %1742 = vmatpush1.xpose.msra.mxu0 0.0
    %1743 = vmatprep.subr.mxu0 0.0
    %1744 = vmatpush1.xpose.msra.mxu0 0.0
    %1745 = vmatprep.subr.mxu0 0.0
    %1746 = vmatpush1.xpose.msra.mxu0 0.0
    %1747 = vmatprep.subr.mxu0 0.0
    %1748 = vmatpush1.xpose.msra.mxu0 0.0
    %1749 = vmatprep.subr.mxu0 0.0
    %1750 = vmatpush1.xpose.msra.mxu0 0.0
    %1751 = vmatprep.subr.mxu0 0.0
    %1752 = vmatpush1.xpose.msra.mxu0 0.0
    %1753 = vmatprep.subr.mxu0 0.0
    %1754 = vmatpush1.xpose.msra.mxu0 0.0
    %1755 = vmatprep.subr.mxu0 0.0
    %1756 = vmatpush1.xpose.msra.mxu0 0.0
    %1757 = vmatprep.subr.mxu0 0.0
    %1758 = vmatpush1.xpose.msra.mxu0 0.0
    %1759 = vmatprep.subr.mxu0 0.0
    %1760 = vmatpush1.xpose.msra.mxu0 %v1729
    %1761 = vmatprep.subr.mxu0 0.0
    %1762 = vmatpush1.xpose.msra.mxu0 %v1727
    %1763 = vmatprep.subr.mxu0 0.0
    %1764 = vmatpush2.xpose.msra.mxu0 0.0
    %1765 = vmatprep.subr.mxu0 0.0
    %1766 = vmatpush2.xpose.msra.mxu0 0.0
    %1767 = vmatprep.subr.mxu0 0.0
    %1768 = vmatpush2.xpose.msra.mxu0 0.0
    %1769 = vmatprep.subr.mxu0 0.0
    %1770 = vmatpush2.xpose.msra.mxu0 0.0
    %1771 = vmatprep.subr.mxu0 0.0
    %1772 = vmatpush2.xpose.msra.mxu0 0.0
    %1773 = vmatprep.subr.mxu0 0.0
    %1774 = vmatpush2.xpose.msra.mxu0 0.0
    %1775 = vmatprep.subr.mxu0 0.0
    %1776 = vmatpush2.xpose.msra.mxu0 0.0
    %1777 = vmatprep.subr.mxu0 0.0
    %1778 = vmatpush2.xpose.msra.mxu0 0.0
    %1779 = vmatprep.subr.mxu0 0.0
    %1780 = vmatpush2.xpose.msra.mxu0 0.0
    %1781 = vmatprep.subr.mxu0 0.0
    %1782 = vmatpush2.xpose.msra.mxu0 0.0
    %1783 = vmatprep.subr.mxu0 0.0
    %1784 = vmatpush2.xpose.msra.mxu0 0.0
    %1785 = vmatprep.subr.mxu0 0.0
    %1786 = vmatpush2.xpose.msra.mxu0 0.0
    %1787 = vmatprep.subr.mxu0 0.0
    %1788 = vmatpush2.xpose.msra.mxu0 0.0
    %1789 = vmatprep.subr.mxu0 0.0
    %1790 = vmatpush2.xpose.msra.mxu0 0.0
    %1791 = vmatprep.subr.mxu0 0.0
    %1792 = vmatpush2.xpose.msra.mxu0 0.0
    %1793 = vmatprep.subr.mxu0 0.0
    %1794 = vmatpush2.xpose.msra.mxu0 0.0
    %1795 = vmatprep.mubr.f32.mxu0 0.0
    %1796 = vmatmul.mubr.f32.gmra.mxu0 %v1723
    %v1797 = vpop.f32.mrf.mxu0
    %v1798 = vadd.f32 0.0, %v1797
    %v1799 = vpop.f32.mrf.mxu0
    %1800 = vmatprep.mubr.f32.mxu0 0.0
    %1801 = vmatmul.mubr.f32.gmra.mxu0 %v1725
    %v1802 = vpop.f32.mrf.mxu0
    %v1803 = vadd.f32 0.0, %v1802
    %v1804 = vpop.f32.mrf.mxu0
    %1805 = vdwg.mxu0
    %v1806 = vmul.f32 %v1798, 0.35355338
    %v1807 = vmul.f32 %v1803, 0.35355338
    %v1808 = vadd.f32 %v1806, %v85
    %v1809 = vadd.f32 %v1807, %v86
    %v1810 = vsel %vm273, %v1808, -inf
    %1811 = vmax.xlane.f32.xlu0 %v1810
    %v1812 = vpop.xlane.xlu0 %1811
    %v1813 = vsel %vm273, %v1809, -inf
    %1814 = vmax.xlane.f32.xlu0 %v1813
    %v1815 = vpop.xlane.xlu0 %1814
    %v1816 = vsub.f32 %v1808, %v1812
    %v1817 = vsub.f32 %v1809, %v1815
    %v1818 = vmul.f32 %v1816, 1.442695
    %v1819 = vpow.pop %v1818
    %v1820 = vmul.f32 %v1817, 1.442695
    %v1821 = vpow.pop %v1820
    %v1822 = vsel %vm273, %v1819, 0.0
    %1823 = vadd.xlane.f32.xlu0 %v1822
    %v1824 = vpop.xlane.xlu0 %1823
    %v1825 = vsel %vm273, %v1821, 0.0
    %1826 = vadd.xlane.f32.xlu0 %v1825
    %v1827 = vpop.xlane.xlu0 %1826
    %v1828 = vrcp.pop %v1824
    %v1829 = vrcp.pop %v1827
    %v1830 = vmul.f32 %v1819, %v1828
    %v1831 = vmul.f32 %v1821, %v1829
    %1832 = vrot.lane.b32.xlu0 %v1505, 56
    %v1833 = vpop.permute.xlu0 %1832
    %1834 = vrot.lane.b32.xlu0 %v1510, 56
    %v1835 = vpop.permute.xlu0 %1834
    %v1839 = vsel %vm273, %v1830, 0
    %v1842 = vsel %vm273, %v1831, 0
    %1844 = vmatprep.subr.mxu0 0.0
    %1845 = vmatpush1.msra.mxu0 0.0
    %1846 = vmatprep.subr.mxu0 0.0
    %1847 = vmatpush1.msra.mxu0 0.0
    %1848 = vmatprep.subr.mxu0 0.0
    %1849 = vmatpush1.msra.mxu0 0.0
    %1850 = vmatprep.subr.mxu0 0.0
    %1851 = vmatpush1.msra.mxu0 0.0
    %1852 = vmatprep.subr.mxu0 0.0
    %1853 = vmatpush1.msra.mxu0 0.0
    %1854 = vmatprep.subr.mxu0 0.0
    %1855 = vmatpush1.msra.mxu0 0.0
    %1856 = vmatprep.subr.mxu0 0.0
    %1857 = vmatpush1.msra.mxu0 0.0
    %1858 = vmatprep.subr.mxu0 0.0
    %1859 = vmatpush1.msra.mxu0 0.0
    %1860 = vmatprep.subr.mxu0 0.0
    %1861 = vmatpush1.msra.mxu0 0.0
    %1862 = vmatprep.subr.mxu0 0.0
    %1863 = vmatpush1.msra.mxu0 0.0
    %1864 = vmatprep.subr.mxu0 0.0
    %1865 = vmatpush1.msra.mxu0 0.0
    %1866 = vmatprep.subr.mxu0 0.0
    %1867 = vmatpush1.msra.mxu0 0.0
    %1868 = vmatprep.subr.mxu0 0.0
    %1869 = vmatpush1.msra.mxu0 0.0
    %1870 = vmatprep.subr.mxu0 0.0
    %1871 = vmatpush1.msra.mxu0 0.0
    %1872 = vmatprep.subr.mxu0 0.0
    %1873 = vmatpush1.msra.mxu0 %v1835
    %1874 = vmatprep.subr.mxu0 0.0
    %1875 = vmatpush1.msra.mxu0 %v1833
    %1876 = vmatprep.subr.mxu0 0.0
    %1877 = vmatpush2.msra.mxu0 0.0
    %1878 = vmatprep.subr.mxu0 0.0
    %1879 = vmatpush2.msra.mxu0 0.0
    %1880 = vmatprep.subr.mxu0 0.0
    %1881 = vmatpush2.msra.mxu0 0.0
    %1882 = vmatprep.subr.mxu0 0.0
    %1883 = vmatpush2.msra.mxu0 0.0
    %1884 = vmatprep.subr.mxu0 0.0
    %1885 = vmatpush2.msra.mxu0 0.0
    %1886 = vmatprep.subr.mxu0 0.0
    %1887 = vmatpush2.msra.mxu0 0.0
    %1888 = vmatprep.subr.mxu0 0.0
    %1889 = vmatpush2.msra.mxu0 0.0
    %1890 = vmatprep.subr.mxu0 0.0
    %1891 = vmatpush2.msra.mxu0 0.0
    %1892 = vmatprep.subr.mxu0 0.0
    %1893 = vmatpush2.msra.mxu0 0.0
    %1894 = vmatprep.subr.mxu0 0.0
    %1895 = vmatpush2.msra.mxu0 0.0
    %1896 = vmatprep.subr.mxu0 0.0
    %1897 = vmatpush2.msra.mxu0 0.0
    %1898 = vmatprep.subr.mxu0 0.0
    %1899 = vmatpush2.msra.mxu0 0.0
    %1900 = vmatprep.subr.mxu0 0.0
    %1901 = vmatpush2.msra.mxu0 0.0
    %1902 = vmatprep.subr.mxu0 0.0
    %1903 = vmatpush2.msra.mxu0 0.0
    %1904 = vmatprep.subr.mxu0 0.0
    %1905 = vmatpush2.msra.mxu0 0.0
    %1906 = vmatprep.subr.mxu0 0.0
    %1907 = vmatpush2.msra.mxu0 0.0
    %1908 = vmatprep.mubr.f32.mxu0 0.0
    %1909 = vmatmul.mubr.f32.gmra.mxu0 %v1839
    %v1910 = vpop.f32.mrf.mxu0
    %v1911 = vadd.f32 0.0, %v1910
    %v1912 = vpop.f32.mrf.mxu0
    %1913 = vmatprep.mubr.f32.mxu0 0.0
    %1914 = vmatmul.mubr.f32.gmra.mxu0 %v1842
    %v1915 = vpop.f32.mrf.mxu0
    %v1916 = vadd.f32 0.0, %v1915
    %v1917 = vpop.f32.mrf.mxu0
    %1918 = vdwg.mxu0
    %1919 = vrot.lane.b32.xlu0 %v1505, 112
    %v1920 = vpop.permute.xlu0 %1919
    %1921 = vrot.lane.b32.xlu0 %v1510, 112
    %v1922 = vpop.permute.xlu0 %1921
    %1923 = vrot.lane.b32.xlu0 %v1505, 80
    %v1924 = vpop.permute.xlu0 %1923
    %1925 = vrot.lane.b32.xlu0 %v1510, 80
    %v1926 = vpop.permute.xlu0 %1925
    %v1927 = vsel %vm185, %v1920, 0
    %v1929 = vsel %vm185, %v1922, 0
    %v1931 = vsel %vm185, %v1924, 0
    %v1933 = vsel %vm185, %v1926, 0
    %1935 = vmatprep.subr.mxu0 0.0
    %1936 = vmatpush1.xpose.msra.mxu0 0.0
    %1937 = vmatprep.subr.mxu0 0.0
    %1938 = vmatpush1.xpose.msra.mxu0 0.0
    %1939 = vmatprep.subr.mxu0 0.0
    %1940 = vmatpush1.xpose.msra.mxu0 0.0
    %1941 = vmatprep.subr.mxu0 0.0
    %1942 = vmatpush1.xpose.msra.mxu0 0.0
    %1943 = vmatprep.subr.mxu0 0.0
    %1944 = vmatpush1.xpose.msra.mxu0 0.0
    %1945 = vmatprep.subr.mxu0 0.0
    %1946 = vmatpush1.xpose.msra.mxu0 0.0
    %1947 = vmatprep.subr.mxu0 0.0
    %1948 = vmatpush1.xpose.msra.mxu0 0.0
    %1949 = vmatprep.subr.mxu0 0.0
    %1950 = vmatpush1.xpose.msra.mxu0 0.0
    %1951 = vmatprep.subr.mxu0 0.0
    %1952 = vmatpush1.xpose.msra.mxu0 0.0
    %1953 = vmatprep.subr.mxu0 0.0
    %1954 = vmatpush1.xpose.msra.mxu0 0.0
    %1955 = vmatprep.subr.mxu0 0.0
    %1956 = vmatpush1.xpose.msra.mxu0 0.0
    %1957 = vmatprep.subr.mxu0 0.0
    %1958 = vmatpush1.xpose.msra.mxu0 0.0
    %1959 = vmatprep.subr.mxu0 0.0
    %1960 = vmatpush1.xpose.msra.mxu0 0.0
    %1961 = vmatprep.subr.mxu0 0.0
    %1962 = vmatpush1.xpose.msra.mxu0 0.0
    %1963 = vmatprep.subr.mxu0 0.0
    %1964 = vmatpush1.xpose.msra.mxu0 %v1933
    %1965 = vmatprep.subr.mxu0 0.0
    %1966 = vmatpush1.xpose.msra.mxu0 %v1931
    %1967 = vmatprep.subr.mxu0 0.0
    %1968 = vmatpush2.xpose.msra.mxu0 0.0
    %1969 = vmatprep.subr.mxu0 0.0
    %1970 = vmatpush2.xpose.msra.mxu0 0.0
    %1971 = vmatprep.subr.mxu0 0.0
    %1972 = vmatpush2.xpose.msra.mxu0 0.0
    %1973 = vmatprep.subr.mxu0 0.0
    %1974 = vmatpush2.xpose.msra.mxu0 0.0
    %1975 = vmatprep.subr.mxu0 0.0
    %1976 = vmatpush2.xpose.msra.mxu0 0.0
    %1977 = vmatprep.subr.mxu0 0.0
    %1978 = vmatpush2.xpose.msra.mxu0 0.0
    %1979 = vmatprep.subr.mxu0 0.0
    %1980 = vmatpush2.xpose.msra.mxu0 0.0
    %1981 = vmatprep.subr.mxu0 0.0
    %1982 = vmatpush2.xpose.msra.mxu0 0.0
    %1983 = vmatprep.subr.mxu0 0.0
    %1984 = vmatpush2.xpose.msra.mxu0 0.0
    %1985 = vmatprep.subr.mxu0 0.0
    %1986 = vmatpush2.xpose.msra.mxu0 0.0
    %1987 = vmatprep.subr.mxu0 0.0
    %1988 = vmatpush2.xpose.msra.mxu0 0.0
    %1989 = vmatprep.subr.mxu0 0.0
    %1990 = vmatpush2.xpose.msra.mxu0 0.0
    %1991 = vmatprep.subr.mxu0 0.0
    %1992 = vmatpush2.xpose.msra.mxu0 0.0
    %1993 = vmatprep.subr.mxu0 0.0
    %1994 = vmatpush2.xpose.msra.mxu0 0.0
    %1995 = vmatprep.subr.mxu0 0.0
    %1996 = vmatpush2.xpose.msra.mxu0 0.0
    %1997 = vmatprep.subr.mxu0 0.0
    %1998 = vmatpush2.xpose.msra.mxu0 0.0
    %1999 = vmatprep.mubr.f32.mxu0 0.0
    %2000 = vmatmul.mubr.f32.gmra.mxu0 %v1927
    %v2001 = vpop.f32.mrf.mxu0
    %v2002 = vadd.f32 0.0, %v2001
    %v2003 = vpop.f32.mrf.mxu0
    %2004 = vmatprep.mubr.f32.mxu0 0.0
    %2005 = vmatmul.mubr.f32.gmra.mxu0 %v1929
    %v2006 = vpop.f32.mrf.mxu0
    %v2007 = vadd.f32 0.0, %v2006
    %v2008 = vpop.f32.mrf.mxu0
    %2009 = vdwg.mxu0
    %v2010 = vmul.f32 %v2002, 0.35355338
    %v2011 = vmul.f32 %v2007, 0.35355338
    %v2012 = vadd.f32 %v2010, %v85
    %v2013 = vadd.f32 %v2011, %v86
    %v2014 = vsel %vm273, %v2012, -inf
    %2015 = vmax.xlane.f32.xlu0 %v2014
    %v2016 = vpop.xlane.xlu0 %2015
    %v2017 = vsel %vm273, %v2013, -inf
    %2018 = vmax.xlane.f32.xlu0 %v2017
    %v2019 = vpop.xlane.xlu0 %2018
    %v2020 = vsub.f32 %v2012, %v2016
    %v2021 = vsub.f32 %v2013, %v2019
    %v2022 = vmul.f32 %v2020, 1.442695
    %v2023 = vpow.pop %v2022
    %v2024 = vmul.f32 %v2021, 1.442695
    %v2025 = vpow.pop %v2024
    %v2026 = vsel %vm273, %v2023, 0.0
    %2027 = vadd.xlane.f32.xlu0 %v2026
    %v2028 = vpop.xlane.xlu0 %2027
    %v2029 = vsel %vm273, %v2025, 0.0
    %2030 = vadd.xlane.f32.xlu0 %v2029
    %v2031 = vpop.xlane.xlu0 %2030
    %v2032 = vrcp.pop %v2028
    %v2033 = vrcp.pop %v2031
    %v2034 = vmul.f32 %v2023, %v2032
    %v2035 = vmul.f32 %v2025, %v2033
    %2036 = vrot.lane.b32.xlu0 %v1505, 48
    %v2037 = vpop.permute.xlu0 %2036
    %2038 = vrot.lane.b32.xlu0 %v1510, 48
    %v2039 = vpop.permute.xlu0 %2038
    %v2043 = vsel %vm273, %v2034, 0
    %v2046 = vsel %vm273, %v2035, 0
    %2048 = vmatprep.subr.mxu0 0.0
    %2049 = vmatpush1.msra.mxu0 0.0
    %2050 = vmatprep.subr.mxu0 0.0
    %2051 = vmatpush1.msra.mxu0 0.0
    %2052 = vmatprep.subr.mxu0 0.0
    %2053 = vmatpush1.msra.mxu0 0.0
    %2054 = vmatprep.subr.mxu0 0.0
    %2055 = vmatpush1.msra.mxu0 0.0
    %2056 = vmatprep.subr.mxu0 0.0
    %2057 = vmatpush1.msra.mxu0 0.0
    %2058 = vmatprep.subr.mxu0 0.0
    %2059 = vmatpush1.msra.mxu0 0.0
    %2060 = vmatprep.subr.mxu0 0.0
    %2061 = vmatpush1.msra.mxu0 0.0
    %2062 = vmatprep.subr.mxu0 0.0
    %2063 = vmatpush1.msra.mxu0 0.0
    %2064 = vmatprep.subr.mxu0 0.0
    %2065 = vmatpush1.msra.mxu0 0.0
    %2066 = vmatprep.subr.mxu0 0.0
    %2067 = vmatpush1.msra.mxu0 0.0
    %2068 = vmatprep.subr.mxu0 0.0
    %2069 = vmatpush1.msra.mxu0 0.0
    %2070 = vmatprep.subr.mxu0 0.0
    %2071 = vmatpush1.msra.mxu0 0.0
    %2072 = vmatprep.subr.mxu0 0.0
    %2073 = vmatpush1.msra.mxu0 0.0
    %2074 = vmatprep.subr.mxu0 0.0
    %2075 = vmatpush1.msra.mxu0 0.0
    %2076 = vmatprep.subr.mxu0 0.0
    %2077 = vmatpush1.msra.mxu0 %v2039
    %2078 = vmatprep.subr.mxu0 0.0
    %2079 = vmatpush1.msra.mxu0 %v2037
    %2080 = vmatprep.subr.mxu0 0.0
    %2081 = vmatpush2.msra.mxu0 0.0
    %2082 = vmatprep.subr.mxu0 0.0
    %2083 = vmatpush2.msra.mxu0 0.0
    %2084 = vmatprep.subr.mxu0 0.0
    %2085 = vmatpush2.msra.mxu0 0.0
    %2086 = vmatprep.subr.mxu0 0.0
    %2087 = vmatpush2.msra.mxu0 0.0
    %2088 = vmatprep.subr.mxu0 0.0
    %2089 = vmatpush2.msra.mxu0 0.0
    %2090 = vmatprep.subr.mxu0 0.0
    %2091 = vmatpush2.msra.mxu0 0.0
    %2092 = vmatprep.subr.mxu0 0.0
    %2093 = vmatpush2.msra.mxu0 0.0
    %2094 = vmatprep.subr.mxu0 0.0
    %2095 = vmatpush2.msra.mxu0 0.0
    %2096 = vmatprep.subr.mxu0 0.0
    %2097 = vmatpush2.msra.mxu0 0.0
    %2098 = vmatprep.subr.mxu0 0.0
    %2099 = vmatpush2.msra.mxu0 0.0
    %2100 = vmatprep.subr.mxu0 0.0
    %2101 = vmatpush2.msra.mxu0 0.0
    %2102 = vmatprep.subr.mxu0 0.0
    %2103 = vmatpush2.msra.mxu0 0.0
    %2104 = vmatprep.subr.mxu0 0.0
    %2105 = vmatpush2.msra.mxu0 0.0
    %2106 = vmatprep.subr.mxu0 0.0
    %2107 = vmatpush2.msra.mxu0 0.0
    %2108 = vmatprep.subr.mxu0 0.0
    %2109 = vmatpush2.msra.mxu0 0.0
    %2110 = vmatprep.subr.mxu0 0.0
    %2111 = vmatpush2.msra.mxu0 0.0
    %2112 = vmatprep.mubr.f32.mxu0 0.0
    %2113 = vmatmul.mubr.f32.gmra.mxu0 %v2043
    %v2114 = vpop.f32.mrf.mxu0
    %v2115 = vadd.f32 0.0, %v2114
    %v2116 = vpop.f32.mrf.mxu0
    %2117 = vmatprep.mubr.f32.mxu0 0.0
    %2118 = vmatmul.mubr.f32.gmra.mxu0 %v2046
    %v2119 = vpop.f32.mrf.mxu0
    %v2120 = vadd.f32 0.0, %v2119
    %v2121 = vpop.f32.mrf.mxu0
    %2122 = vdwg.mxu0
    %2123 = vrot.lane.b32.xlu0 %v1505, 104
    %v2124 = vpop.permute.xlu0 %2123
    %2125 = vrot.lane.b32.xlu0 %v1510, 104
    %v2126 = vpop.permute.xlu0 %2125
    %2127 = vrot.lane.b32.xlu0 %v1505, 72
    %v2128 = vpop.permute.xlu0 %2127
    %2129 = vrot.lane.b32.xlu0 %v1510, 72
    %v2130 = vpop.permute.xlu0 %2129
    %v2131 = vsel %vm185, %v2124, 0
    %v2133 = vsel %vm185, %v2126, 0
    %v2135 = vsel %vm185, %v2128, 0
    %v2137 = vsel %vm185, %v2130, 0
    %2139 = vmatprep.subr.mxu0 0.0
    %2140 = vmatpush1.xpose.msra.mxu0 0.0
    %2141 = vmatprep.subr.mxu0 0.0
    %2142 = vmatpush1.xpose.msra.mxu0 0.0
    %2143 = vmatprep.subr.mxu0 0.0
    %2144 = vmatpush1.xpose.msra.mxu0 0.0
    %2145 = vmatprep.subr.mxu0 0.0
    %2146 = vmatpush1.xpose.msra.mxu0 0.0
    %2147 = vmatprep.subr.mxu0 0.0
    %2148 = vmatpush1.xpose.msra.mxu0 0.0
    %2149 = vmatprep.subr.mxu0 0.0
    %2150 = vmatpush1.xpose.msra.mxu0 0.0
    %2151 = vmatprep.subr.mxu0 0.0
    %2152 = vmatpush1.xpose.msra.mxu0 0.0
    %2153 = vmatprep.subr.mxu0 0.0
    %2154 = vmatpush1.xpose.msra.mxu0 0.0
    %2155 = vmatprep.subr.mxu0 0.0
    %2156 = vmatpush1.xpose.msra.mxu0 0.0
    %2157 = vmatprep.subr.mxu0 0.0
    %2158 = vmatpush1.xpose.msra.mxu0 0.0
    %2159 = vmatprep.subr.mxu0 0.0
    %2160 = vmatpush1.xpose.msra.mxu0 0.0
    %2161 = vmatprep.subr.mxu0 0.0
    %2162 = vmatpush1.xpose.msra.mxu0 0.0
    %2163 = vmatprep.subr.mxu0 0.0
    %2164 = vmatpush1.xpose.msra.mxu0 0.0
    %2165 = vmatprep.subr.mxu0 0.0
    %2166 = vmatpush1.xpose.msra.mxu0 0.0
    %2167 = vmatprep.subr.mxu0 0.0
    %2168 = vmatpush1.xpose.msra.mxu0 %v2137
    %2169 = vmatprep.subr.mxu0 0.0
    %2170 = vmatpush1.xpose.msra.mxu0 %v2135
    %2171 = vmatprep.subr.mxu0 0.0
    %2172 = vmatpush2.xpose.msra.mxu0 0.0
    %2173 = vmatprep.subr.mxu0 0.0
    %2174 = vmatpush2.xpose.msra.mxu0 0.0
    %2175 = vmatprep.subr.mxu0 0.0
    %2176 = vmatpush2.xpose.msra.mxu0 0.0
    %2177 = vmatprep.subr.mxu0 0.0
    %2178 = vmatpush2.xpose.msra.mxu0 0.0
    %2179 = vmatprep.subr.mxu0 0.0
    %2180 = vmatpush2.xpose.msra.mxu0 0.0
    %2181 = vmatprep.subr.mxu0 0.0
    %2182 = vmatpush2.xpose.msra.mxu0 0.0
    %2183 = vmatprep.subr.mxu0 0.0
    %2184 = vmatpush2.xpose.msra.mxu0 0.0
    %2185 = vmatprep.subr.mxu0 0.0
    %2186 = vmatpush2.xpose.msra.mxu0 0.0
    %2187 = vmatprep.subr.mxu0 0.0
    %2188 = vmatpush2.xpose.msra.mxu0 0.0
    %2189 = vmatprep.subr.mxu0 0.0
    %2190 = vmatpush2.xpose.msra.mxu0 0.0
    %2191 = vmatprep.subr.mxu0 0.0
    %2192 = vmatpush2.xpose.msra.mxu0 0.0
    %2193 = vmatprep.subr.mxu0 0.0
    %2194 = vmatpush2.xpose.msra.mxu0 0.0
    %2195 = vmatprep.subr.mxu0 0.0
    %2196 = vmatpush2.xpose.msra.mxu0 0.0
    %2197 = vmatprep.subr.mxu0 0.0
    %2198 = vmatpush2.xpose.msra.mxu0 0.0
    %2199 = vmatprep.subr.mxu0 0.0
    %2200 = vmatpush2.xpose.msra.mxu0 0.0
    %2201 = vmatprep.subr.mxu0 0.0
    %2202 = vmatpush2.xpose.msra.mxu0 0.0
    %2203 = vmatprep.mubr.f32.mxu0 0.0
    %2204 = vmatmul.mubr.f32.gmra.mxu0 %v2131
    %v2205 = vpop.f32.mrf.mxu0
    %v2206 = vadd.f32 0.0, %v2205
    %v2207 = vpop.f32.mrf.mxu0
    %2208 = vmatprep.mubr.f32.mxu0 0.0
    %2209 = vmatmul.mubr.f32.gmra.mxu0 %v2133
    %v2210 = vpop.f32.mrf.mxu0
    %v2211 = vadd.f32 0.0, %v2210
    %v2212 = vpop.f32.mrf.mxu0
    %2213 = vdwg.mxu0
    %v2214 = vmul.f32 %v2206, 0.35355338
    %v2215 = vmul.f32 %v2211, 0.35355338
    %v2216 = vadd.f32 %v2214, %v85
    %v2217 = vadd.f32 %v2215, %v86
    %v2218 = vsel %vm273, %v2216, -inf
    %2219 = vmax.xlane.f32.xlu0 %v2218
    %v2220 = vpop.xlane.xlu0 %2219
    %v2221 = vsel %vm273, %v2217, -inf
    %2222 = vmax.xlane.f32.xlu0 %v2221
    %v2223 = vpop.xlane.xlu0 %2222
    %v2224 = vsub.f32 %v2216, %v2220
    %v2225 = vsub.f32 %v2217, %v2223
    %v2226 = vmul.f32 %v2224, 1.442695
    %v2227 = vpow.pop %v2226
    %v2228 = vmul.f32 %v2225, 1.442695
    %v2229 = vpow.pop %v2228
    %v2230 = vsel %vm273, %v2227, 0.0
    %2231 = vadd.xlane.f32.xlu0 %v2230
    %v2232 = vpop.xlane.xlu0 %2231
    %v2233 = vsel %vm273, %v2229, 0.0
    %2234 = vadd.xlane.f32.xlu0 %v2233
    %v2235 = vpop.xlane.xlu0 %2234
    %v2236 = vrcp.pop %v2232
    %v2237 = vrcp.pop %v2235
    %v2238 = vmul.f32 %v2227, %v2236
    %v2239 = vmul.f32 %v2229, %v2237
    %2240 = vrot.lane.b32.xlu0 %v1505, 40
    %v2241 = vpop.permute.xlu0 %2240
    %2242 = vrot.lane.b32.xlu0 %v1510, 40
    %v2243 = vpop.permute.xlu0 %2242
    %v2247 = vsel %vm273, %v2238, 0
    %v2250 = vsel %vm273, %v2239, 0
    %2252 = vmatprep.subr.mxu0 0.0
    %2253 = vmatpush1.msra.mxu0 0.0
    %2254 = vmatprep.subr.mxu0 0.0
    %2255 = vmatpush1.msra.mxu0 0.0
    %2256 = vmatprep.subr.mxu0 0.0
    %2257 = vmatpush1.msra.mxu0 0.0
    %2258 = vmatprep.subr.mxu0 0.0
    %2259 = vmatpush1.msra.mxu0 0.0
    %2260 = vmatprep.subr.mxu0 0.0
    %2261 = vmatpush1.msra.mxu0 0.0
    %2262 = vmatprep.subr.mxu0 0.0
    %2263 = vmatpush1.msra.mxu0 0.0
    %2264 = vmatprep.subr.mxu0 0.0
    %2265 = vmatpush1.msra.mxu0 0.0
    %2266 = vmatprep.subr.mxu0 0.0
    %2267 = vmatpush1.msra.mxu0 0.0
    %2268 = vmatprep.subr.mxu0 0.0
    %2269 = vmatpush1.msra.mxu0 0.0
    %2270 = vmatprep.subr.mxu0 0.0
    %2271 = vmatpush1.msra.mxu0 0.0
    %2272 = vmatprep.subr.mxu0 0.0
    %2273 = vmatpush1.msra.mxu0 0.0
    %2274 = vmatprep.subr.mxu0 0.0
    %2275 = vmatpush1.msra.mxu0 0.0
    %2276 = vmatprep.subr.mxu0 0.0
    %2277 = vmatpush1.msra.mxu0 0.0
    %2278 = vmatprep.subr.mxu0 0.0
    %2279 = vmatpush1.msra.mxu0 0.0
    %2280 = vmatprep.subr.mxu0 0.0
    %2281 = vmatpush1.msra.mxu0 %v2243
    %2282 = vmatprep.subr.mxu0 0.0
    %2283 = vmatpush1.msra.mxu0 %v2241
    %2284 = vmatprep.subr.mxu0 0.0
    %2285 = vmatpush2.msra.mxu0 0.0
    %2286 = vmatprep.subr.mxu0 0.0
    %2287 = vmatpush2.msra.mxu0 0.0
    %2288 = vmatprep.subr.mxu0 0.0
    %2289 = vmatpush2.msra.mxu0 0.0
    %2290 = vmatprep.subr.mxu0 0.0
    %2291 = vmatpush2.msra.mxu0 0.0
    %2292 = vmatprep.subr.mxu0 0.0
    %2293 = vmatpush2.msra.mxu0 0.0
    %2294 = vmatprep.subr.mxu0 0.0
    %2295 = vmatpush2.msra.mxu0 0.0
    %2296 = vmatprep.subr.mxu0 0.0
    %2297 = vmatpush2.msra.mxu0 0.0
    %2298 = vmatprep.subr.mxu0 0.0
    %2299 = vmatpush2.msra.mxu0 0.0
    %2300 = vmatprep.subr.mxu0 0.0
    %2301 = vmatpush2.msra.mxu0 0.0
    %2302 = vmatprep.subr.mxu0 0.0
    %2303 = vmatpush2.msra.mxu0 0.0
    %2304 = vmatprep.subr.mxu0 0.0
    %2305 = vmatpush2.msra.mxu0 0.0
    %2306 = vmatprep.subr.mxu0 0.0
    %2307 = vmatpush2.msra.mxu0 0.0
    %2308 = vmatprep.subr.mxu0 0.0
    %2309 = vmatpush2.msra.mxu0 0.0
    %2310 = vmatprep.subr.mxu0 0.0
    %2311 = vmatpush2.msra.mxu0 0.0
    %2312 = vmatprep.subr.mxu0 0.0
    %2313 = vmatpush2.msra.mxu0 0.0
    %2314 = vmatprep.subr.mxu0 0.0
    %2315 = vmatpush2.msra.mxu0 0.0
    %2316 = vmatprep.mubr.f32.mxu0 0.0
    %2317 = vmatmul.mubr.f32.gmra.mxu0 %v2247
    %v2318 = vpop.f32.mrf.mxu0
    %v2319 = vadd.f32 0.0, %v2318
    %v2320 = vpop.f32.mrf.mxu0
    %2321 = vmatprep.mubr.f32.mxu0 0.0
    %2322 = vmatmul.mubr.f32.gmra.mxu0 %v2250
    %v2323 = vpop.f32.mrf.mxu0
    %v2324 = vadd.f32 0.0, %v2323
    %v2325 = vpop.f32.mrf.mxu0
    %2326 = vdwg.mxu0
    %2329 = vrot.lane.b32.xlu0 %v1911, 8
    %v2330 = vpop.permute.xlu0 %2329
    %2331 = vrot.lane.b32.xlu0 %v1916, 8
    %v2332 = vpop.permute.xlu0 %2331
    %2337 = vrot.lane.b32.xlu0 %v2115, 16
    %v2338 = vpop.permute.xlu0 %2337
    %2339 = vrot.lane.b32.xlu0 %v2120, 16
    %v2340 = vpop.permute.xlu0 %2339
    %2345 = vrot.lane.b32.xlu0 %v2319, 24
    %v2346 = vpop.permute.xlu0 %2345
    %2347 = vrot.lane.b32.xlu0 %v2324, 24
    %v2348 = vpop.permute.xlu0 %2347
    %v2351 = vsel %vm185, %v1707, %v2330
    %v2352 = vsel %vm185, %v1712, %v2332
    %v2353 = vsel %vm273, %v2351, %v2338
    %v2354 = vsel %vm273, %v2352, %v2340
    %v2355 = vsel %vm1023, %v2353, %v2346
    %v2356 = vsel %vm1023, %v2354, %v2348
    %v2357 = vld [vmem:[%s1419] sm:$0xff]
    %v2358 = vld [vmem:[%s1419 + $0x10] sm:$0xff]
    %v2359 = vld [vmem:[%s1419 + $0x20] sm:$0xff]
    %v2360 = vld [vmem:[%s1419 + $0x30] sm:$0xff]
    %v2361 = vld [vmem:[%s1424] sm:$0x1]
    %v2363 = vlaneseq
    %v2364 = vshrl.u32 %v2363, 7
    %v2365 = vsub.s32 0, %v2364
    %v2366 = vrot.slane %v2361, %v2365
    %2371 = vrot.lane.b32.xlu0 %v2357, 32
    %v2372 = vpop.permute.xlu0 %2371
    %2373 = vrot.lane.b32.xlu0 %v2358, 32
    %v2374 = vpop.permute.xlu0 %2373
    %2375 = vrot.lane.b32.xlu0 %v2359, 32
    %v2376 = vpop.permute.xlu0 %2375
    %2377 = vrot.lane.b32.xlu0 %v2360, 32
    %v2378 = vpop.permute.xlu0 %2377
    %2383 = vrot.lane.b32.xlu0 %v2366, 32
    %v2384 = vpop.permute.xlu0 %2383
    %v2387 = vsel %vm44, %v2355, 0
    %v2390 = vsel %vm44, %v2356, 0
    %2392 = vmatprep.subr.mxu0 0.0
    %2393 = vmatpush1.msra.mxu0 0.0
    %2394 = vmatprep.subr.mxu0 0.0
    %2395 = vmatpush1.msra.mxu0 0.0
    %2396 = vmatprep.subr.mxu0 0.0
    %2397 = vmatpush1.msra.mxu0 0.0
    %2398 = vmatprep.subr.mxu0 0.0
    %2399 = vmatpush1.msra.mxu0 0.0
    %2400 = vmatprep.subr.mxu0 0.0
    %2401 = vmatpush1.msra.mxu0 0.0
    %2402 = vmatprep.subr.mxu0 0.0
    %2403 = vmatpush1.msra.mxu0 0.0
    %2404 = vmatprep.subr.mxu0 0.0
    %2405 = vmatpush1.msra.mxu0 0.0
    %2406 = vmatprep.subr.mxu0 0.0
    %2407 = vmatpush1.msra.mxu0 0.0
    %2408 = vmatprep.subr.mxu0 0.0
    %2409 = vmatpush1.msra.mxu0 0.0
    %2410 = vmatprep.subr.mxu0 0.0
    %2411 = vmatpush1.msra.mxu0 0.0
    %2412 = vmatprep.subr.mxu0 0.0
    %2413 = vmatpush1.msra.mxu0 0.0
    %2414 = vmatprep.subr.mxu0 0.0
    %2415 = vmatpush1.msra.mxu0 0.0
    %2416 = vmatprep.subr.mxu0 0.0
    %2417 = vmatpush1.msra.mxu0 %v2378
    %2418 = vmatprep.subr.mxu0 0.0
    %2419 = vmatpush1.msra.mxu0 %v2376
    %2420 = vmatprep.subr.mxu0 0.0
    %2421 = vmatpush1.msra.mxu0 %v2374
    %2422 = vmatprep.subr.mxu0 0.0
    %2423 = vmatpush1.msra.mxu0 %v2372
    %2424 = vmatprep.subr.mxu0 0.0
    %2425 = vmatpush2.msra.mxu0 0.0
    %2426 = vmatprep.subr.mxu0 0.0
    %2427 = vmatpush2.msra.mxu0 0.0
    %2428 = vmatprep.subr.mxu0 0.0
    %2429 = vmatpush2.msra.mxu0 0.0
    %2430 = vmatprep.subr.mxu0 0.0
    %2431 = vmatpush2.msra.mxu0 0.0
    %2432 = vmatprep.subr.mxu0 0.0
    %2433 = vmatpush2.msra.mxu0 0.0
    %2434 = vmatprep.subr.mxu0 0.0
    %2435 = vmatpush2.msra.mxu0 0.0
    %2436 = vmatprep.subr.mxu0 0.0
    %2437 = vmatpush2.msra.mxu0 0.0
    %2438 = vmatprep.subr.mxu0 0.0
    %2439 = vmatpush2.msra.mxu0 0.0
    %2440 = vmatprep.subr.mxu0 0.0
    %2441 = vmatpush2.msra.mxu0 0.0
    %2442 = vmatprep.subr.mxu0 0.0
    %2443 = vmatpush2.msra.mxu0 0.0
    %2444 = vmatprep.subr.mxu0 0.0
    %2445 = vmatpush2.msra.mxu0 0.0
    %2446 = vmatprep.subr.mxu0 0.0
    %2447 = vmatpush2.msra.mxu0 0.0
    %2448 = vmatprep.subr.mxu0 0.0
    %2449 = vmatpush2.msra.mxu0 0.0
    %2450 = vmatprep.subr.mxu0 0.0
    %2451 = vmatpush2.msra.mxu0 0.0
    %2452 = vmatprep.subr.mxu0 0.0
    %2453 = vmatpush2.msra.mxu0 0.0
    %2454 = vmatprep.subr.mxu0 0.0
    %2455 = vmatpush2.msra.mxu0 0.0
    %2456 = vmatprep.mubr.f32.mxu0 0.0
    %2457 = vmatmul.mubr.f32.gmra.mxu0 %v2387
    %v2458 = vpop.f32.mrf.mxu0
    %v2459 = vadd.f32 %v2384, %v2458
    %v2460 = vpop.f32.mrf.mxu0
    %2461 = vmatprep.mubr.f32.mxu0 0.0
    %2462 = vmatmul.mubr.f32.gmra.mxu0 %v2390
    %v2463 = vpop.f32.mrf.mxu0
    %v2464 = vadd.f32 %v2384, %v2463
    %v2465 = vpop.f32.mrf.mxu0
    %2466 = vdwg.mxu0
    %v2467 = vadd.f32 %v1417, %v2459
    %v2468 = vadd.f32 %v1418, %v2464
    %v2469 = vld [vmem:[%s1424 + $0x1] sm:$0x1]
    %v2470 = vsel %vm44, %v2467, 0.0
    %2471 = vadd.xlane.f32.xlu0 %v2470
    %v2472 = vpop.xlane.xlu0 %2471
    %v2473 = vsel %vm44, %v2468, 0.0
    %2474 = vadd.xlane.f32.xlu0 %v2473
    %v2475 = vpop.xlane.xlu0 %2474
    %v2476 = vmul.f32 %v2472, %v51
    %v2477 = vmul.f32 %v2475, %v51
    %v2478 = vsub.f32 %v2467, %v2476
    %v2479 = vsub.f32 %v2468, %v2477
    %v2480 = vmul.f32 %v2478, %v2478
    %v2481 = vmul.f32 %v2479, %v2479
    %v2482 = vsel %vm44, %v2480, 0.0
    %2483 = vadd.xlane.f32.xlu0 %v2482
    %v2484 = vpop.xlane.xlu0 %2483
    %v2485 = vsel %vm44, %v2481, 0.0
    %2486 = vadd.xlane.f32.xlu0 %v2485
    %v2487 = vpop.xlane.xlu0 %2486
    %v2488 = vmul.f32 %v2484, %v51
    %v2489 = vmul.f32 %v2487, %v51
    %v2490 = vadd.f32 %v2488, 1e-12
    %v2491 = vadd.f32 %v2489, 1e-12
    %v2492 = vrsqrt.pop %v2490
    %v2493 = vrsqrt.pop %v2491
    %v2494 = vmul.f32 %v2478, %v2492
    %v2495 = vmul.f32 %v2479, %v2493
    %v2497 = vlaneseq
    %v2498 = vshrl.u32 %v2497, 7
    %v2499 = vsub.s32 0, %v2498
    %v2500 = vrot.slane %v2469, %v2499
    %v2502 = vmul.f32 %v2494, %v2500
    %v2503 = vmul.f32 %v2495, %v2500
    %2504 = vrot.lane.b32.xlu0 %v2500, 96
    %v2505 = vpop.permute.xlu0 %2504
    %v2507 = vadd.f32 %v2502, %v2505
    %v2508 = vadd.f32 %v2503, %v2505
    %v2509 = vld [vmem:[%s1419 + $0x8] sm:$0xff]
    %v2510 = vld [vmem:[%s1419 + $0x18] sm:$0xff]
    %v2511 = vld [vmem:[%s1419 + $0x28] sm:$0xff]
    %v2512 = vld [vmem:[%s1419 + $0x38] sm:$0xff]
    %2513 = vrot.lane.b32.xlu0 %v2500, 64
    %v2514 = vpop.permute.xlu0 %2513
    %v2517 = vsel %vm44, %v2507, 0
    %v2520 = vsel %vm44, %v2508, 0
    %2522 = vmatprep.subr.mxu0 0.0
    %2523 = vmatpush1.msra.mxu0 0.0
    %2524 = vmatprep.subr.mxu0 0.0
    %2525 = vmatpush1.msra.mxu0 0.0
    %2526 = vmatprep.subr.mxu0 0.0
    %2527 = vmatpush1.msra.mxu0 0.0
    %2528 = vmatprep.subr.mxu0 0.0
    %2529 = vmatpush1.msra.mxu0 0.0
    %2530 = vmatprep.subr.mxu0 0.0
    %2531 = vmatpush1.msra.mxu0 0.0
    %2532 = vmatprep.subr.mxu0 0.0
    %2533 = vmatpush1.msra.mxu0 0.0
    %2534 = vmatprep.subr.mxu0 0.0
    %2535 = vmatpush1.msra.mxu0 0.0
    %2536 = vmatprep.subr.mxu0 0.0
    %2537 = vmatpush1.msra.mxu0 0.0
    %2538 = vmatprep.subr.mxu0 0.0
    %2539 = vmatpush1.msra.mxu0 0.0
    %2540 = vmatprep.subr.mxu0 0.0
    %2541 = vmatpush1.msra.mxu0 0.0
    %2542 = vmatprep.subr.mxu0 0.0
    %2543 = vmatpush1.msra.mxu0 0.0
    %2544 = vmatprep.subr.mxu0 0.0
    %2545 = vmatpush1.msra.mxu0 0.0
    %2546 = vmatprep.subr.mxu0 0.0
    %2547 = vmatpush1.msra.mxu0 %v2512
    %2548 = vmatprep.subr.mxu0 0.0
    %2549 = vmatpush1.msra.mxu0 %v2511
    %2550 = vmatprep.subr.mxu0 0.0
    %2551 = vmatpush1.msra.mxu0 %v2510
    %2552 = vmatprep.subr.mxu0 0.0
    %2553 = vmatpush1.msra.mxu0 %v2509
    %2554 = vmatprep.subr.mxu0 0.0
    %2555 = vmatpush2.msra.mxu0 0.0
    %2556 = vmatprep.subr.mxu0 0.0
    %2557 = vmatpush2.msra.mxu0 0.0
    %2558 = vmatprep.subr.mxu0 0.0
    %2559 = vmatpush2.msra.mxu0 0.0
    %2560 = vmatprep.subr.mxu0 0.0
    %2561 = vmatpush2.msra.mxu0 0.0
    %2562 = vmatprep.subr.mxu0 0.0
    %2563 = vmatpush2.msra.mxu0 0.0
    %2564 = vmatprep.subr.mxu0 0.0
    %2565 = vmatpush2.msra.mxu0 0.0
    %2566 = vmatprep.subr.mxu0 0.0
    %2567 = vmatpush2.msra.mxu0 0.0
    %2568 = vmatprep.subr.mxu0 0.0
    %2569 = vmatpush2.msra.mxu0 0.0
    %2570 = vmatprep.subr.mxu0 0.0
    %2571 = vmatpush2.msra.mxu0 0.0
    %2572 = vmatprep.subr.mxu0 0.0
    %2573 = vmatpush2.msra.mxu0 0.0
    %2574 = vmatprep.subr.mxu0 0.0
    %2575 = vmatpush2.msra.mxu0 0.0
    %2576 = vmatprep.subr.mxu0 0.0
    %2577 = vmatpush2.msra.mxu0 0.0
    %2578 = vmatprep.subr.mxu0 0.0
    %2579 = vmatpush2.msra.mxu0 0.0
    %2580 = vmatprep.subr.mxu0 0.0
    %2581 = vmatpush2.msra.mxu0 0.0
    %2582 = vmatprep.subr.mxu0 0.0
    %2583 = vmatpush2.msra.mxu0 0.0
    %2584 = vmatprep.subr.mxu0 0.0
    %2585 = vmatpush2.msra.mxu0 0.0
    %2586 = vmatprep.mubr.f32.mxu0 0.0
    %2587 = vmatmul.mubr.f32.gmra.mxu0 %v2517
    %v2588 = vpop.f32.mrf.mxu0
    %v2589 = vadd.f32 %v2514, %v2588
    %v2590 = vpop.f32.mrf.mxu0
    %2591 = vmatprep.mubr.f32.mxu0 0.0
    %2592 = vmatmul.mubr.f32.gmra.mxu0 %v2520
    %v2593 = vpop.f32.mrf.mxu0
    %v2594 = vadd.f32 %v2514, %v2593
    %v2595 = vpop.f32.mrf.mxu0
    %2596 = vdwg.mxu0
    %v2597 = vmul.f32 %v2589, 0.5
    %v2598 = vmul.f32 %v2594, 0.5
    %v2599 = vmul.f32 %v2589, 0.044715
    %v2600 = vmul.f32 %v2594, 0.044715
    %v2601 = vmul.f32 %v2599, %v2589
    %v2602 = vmul.f32 %v2600, %v2594
    %v2603 = vmul.f32 %v2601, %v2589
    %v2604 = vmul.f32 %v2602, %v2594
    %v2605 = vadd.f32 %v2589, %v2603
    %v2606 = vadd.f32 %v2594, %v2604
    %v2607 = vmul.f32 %v2605, 0.7978846
    %v2608 = vmul.f32 %v2606, 0.7978846
    %v2609 = vtanh.pop %v2607
    %v2610 = vtanh.pop %v2608
    %v2611 = vadd.f32 %v2609, 1.0
    %v2612 = vadd.f32 %v2610, 1.0
    %v2613 = vmul.f32 %v2597, %v2611
    %v2614 = vmul.f32 %v2598, %v2612
    %s2615 = scalar_lea.vmem %s3, 64
    %v2616 = vld [vmem:[%s2615] sm:$0xff]
    %v2617 = vld [vmem:[%s2615 + $0x8] sm:$0xff]
    %v2618 = vld [vmem:[%s2615 + $0x10] sm:$0xff]
    %v2619 = vld [vmem:[%s2615 + $0x18] sm:$0xff]
    %v2620 = vld [vmem:[%s2615 + $0x20] sm:$0xff]
    %v2621 = vld [vmem:[%s2615 + $0x28] sm:$0xff]
    %v2622 = vld [vmem:[%s2615 + $0x30] sm:$0xff]
    %v2623 = vld [vmem:[%s2615 + $0x38] sm:$0xff]
    %v2624 = vld [vmem:[%s1424 + $0x2] sm:$0x1]
    %v2626 = vlaneseq
    %v2627 = vshrl.u32 %v2626, 7
    %v2628 = vsub.s32 0, %v2627
    %v2629 = vrot.slane %v2624, %v2628
    %v2632 = vsel %vm1299, %v2613, 0
    %v2635 = vsel %vm1299, %v2614, 0
    %2637 = vmatprep.subr.mxu0 0.0
    %2638 = vmatpush1.msra.mxu0 0.0
    %2639 = vmatprep.subr.mxu0 0.0
    %2640 = vmatpush1.msra.mxu0 0.0
    %2641 = vmatprep.subr.mxu0 0.0
    %2642 = vmatpush1.msra.mxu0 0.0
    %2643 = vmatprep.subr.mxu0 0.0
    %2644 = vmatpush1.msra.mxu0 0.0
    %2645 = vmatprep.subr.mxu0 0.0
    %2646 = vmatpush1.msra.mxu0 0.0
    %2647 = vmatprep.subr.mxu0 0.0
    %2648 = vmatpush1.msra.mxu0 0.0
    %2649 = vmatprep.subr.mxu0 0.0
    %2650 = vmatpush1.msra.mxu0 0.0
    %2651 = vmatprep.subr.mxu0 0.0
    %2652 = vmatpush1.msra.mxu0 0.0
    %2653 = vmatprep.subr.mxu0 0.0
    %2654 = vmatpush1.msra.mxu0 %v2623
    %2655 = vmatprep.subr.mxu0 0.0
    %2656 = vmatpush1.msra.mxu0 %v2622
    %2657 = vmatprep.subr.mxu0 0.0
    %2658 = vmatpush1.msra.mxu0 %v2621
    %2659 = vmatprep.subr.mxu0 0.0
    %2660 = vmatpush1.msra.mxu0 %v2620
    %2661 = vmatprep.subr.mxu0 0.0
    %2662 = vmatpush1.msra.mxu0 %v2619
    %2663 = vmatprep.subr.mxu0 0.0
    %2664 = vmatpush1.msra.mxu0 %v2618
    %2665 = vmatprep.subr.mxu0 0.0
    %2666 = vmatpush1.msra.mxu0 %v2617
    %2667 = vmatprep.subr.mxu0 0.0
    %2668 = vmatpush1.msra.mxu0 %v2616
    %2669 = vmatprep.subr.mxu0 0.0
    %2670 = vmatpush2.msra.mxu0 0.0
    %2671 = vmatprep.subr.mxu0 0.0
    %2672 = vmatpush2.msra.mxu0 0.0
    %2673 = vmatprep.subr.mxu0 0.0
    %2674 = vmatpush2.msra.mxu0 0.0
    %2675 = vmatprep.subr.mxu0 0.0
    %2676 = vmatpush2.msra.mxu0 0.0
    %2677 = vmatprep.subr.mxu0 0.0
    %2678 = vmatpush2.msra.mxu0 0.0
    %2679 = vmatprep.subr.mxu0 0.0
    %2680 = vmatpush2.msra.mxu0 0.0
    %2681 = vmatprep.subr.mxu0 0.0
    %2682 = vmatpush2.msra.mxu0 0.0
    %2683 = vmatprep.subr.mxu0 0.0
    %2684 = vmatpush2.msra.mxu0 0.0
    %2685 = vmatprep.subr.mxu0 0.0
    %2686 = vmatpush2.msra.mxu0 0.0
    %2687 = vmatprep.subr.mxu0 0.0
    %2688 = vmatpush2.msra.mxu0 0.0
    %2689 = vmatprep.subr.mxu0 0.0
    %2690 = vmatpush2.msra.mxu0 0.0
    %2691 = vmatprep.subr.mxu0 0.0
    %2692 = vmatpush2.msra.mxu0 0.0
    %2693 = vmatprep.subr.mxu0 0.0
    %2694 = vmatpush2.msra.mxu0 0.0
    %2695 = vmatprep.subr.mxu0 0.0
    %2696 = vmatpush2.msra.mxu0 0.0
    %2697 = vmatprep.subr.mxu0 0.0
    %2698 = vmatpush2.msra.mxu0 0.0
    %2699 = vmatprep.subr.mxu0 0.0
    %2700 = vmatpush2.msra.mxu0 0.0
    %2701 = vmatprep.mubr.f32.mxu0 0.0
    %2702 = vmatmul.mubr.f32.gmra.mxu0 %v2632
    %v2703 = vpop.f32.mrf.mxu0
    %v2704 = vadd.f32 %v2629, %v2703
    %v2705 = vpop.f32.mrf.mxu0
    %2706 = vmatprep.mubr.f32.mxu0 0.0
    %2707 = vmatmul.mubr.f32.gmra.mxu0 %v2635
    %v2708 = vpop.f32.mrf.mxu0
    %v2709 = vadd.f32 %v2629, %v2708
    %v2710 = vpop.f32.mrf.mxu0
    %2711 = vdwg.mxu0
    %v2712 = vadd.f32 %v2507, %v2704
    %v2713 = vadd.f32 %v2508, %v2709
    %v2714 = vsel %vm44, %v2712, 0.0
    %2715 = vadd.xlane.f32.xlu0 %v2714
    %v2716 = vpop.xlane.xlu0 %2715
    %v2717 = vsel %vm44, %v2713, 0.0
    %2718 = vadd.xlane.f32.xlu0 %v2717
    %v2719 = vpop.xlane.xlu0 %2718
    %v2720 = vmul.f32 %v2716, %v51
    %v2721 = vmul.f32 %v2719, %v51
    %v2722 = vsub.f32 %v2712, %v2720
    %v2723 = vsub.f32 %v2713, %v2721
    %v2724 = vmul.f32 %v2722, %v2722
    %v2725 = vmul.f32 %v2723, %v2723
    %v2726 = vsel %vm44, %v2724, 0.0
    %2727 = vadd.xlane.f32.xlu0 %v2726
    %v2728 = vpop.xlane.xlu0 %2727
    %v2729 = vsel %vm44, %v2725, 0.0
    %2730 = vadd.xlane.f32.xlu0 %v2729
    %v2731 = vpop.xlane.xlu0 %2730
    %v2732 = vmul.f32 %v2728, %v51
    %v2733 = vmul.f32 %v2731, %v51
    %v2734 = vadd.f32 %v2732, 1e-12
    %v2735 = vadd.f32 %v2733, 1e-12
    %v2736 = vrsqrt.pop %v2734
    %v2737 = vrsqrt.pop %v2735
    %v2738 = vmul.f32 %v2722, %v2736
    %v2739 = vmul.f32 %v2723, %v2737
    %2740 = vrot.lane.b32.xlu0 %v2629, 96
    %v2741 = vpop.permute.xlu0 %2740
    %v2743 = vmul.f32 %v2738, %v2741
    %v2744 = vmul.f32 %v2739, %v2741
    %2745 = vrot.lane.b32.xlu0 %v2629, 64
    %v2746 = vpop.permute.xlu0 %2745
    %v2748 = vadd.f32 %v2743, %v2746
    %v2749 = vadd.f32 %v2744, %v2746
    %v2750 = vld [vmem:[#allocation2] sm:$0xff]
    %v2751 = vld [vmem:[#allocation2 + $0x18] sm:$0xff]
    %v2752 = vld [vmem:[#allocation2 + $0x30] sm:$0xff]
    %v2753 = vld [vmem:[#allocation2 + $0x48] sm:$0xff]
    %v2754 = vld [vmem:[%s6] sm:$0x1]
    %v2756 = vlaneseq
    %v2757 = vshrl.u32 %v2756, 7
    %v2758 = vsub.s32 0, %v2757
    %v2759 = vrot.slane %v2754, %v2758
    %2760 = vrot.lane.b32.xlu0 %v2759, 64
    %v2761 = vpop.permute.xlu0 %2760
    %v2764 = vsel %vm44, %v2748, 0
    %v2767 = vsel %vm44, %v2749, 0
    %2769 = vmatprep.subr.mxu0 0.0
    %2770 = vmatpush1.msra.mxu0 0.0
    %2771 = vmatprep.subr.mxu0 0.0
    %2772 = vmatpush1.msra.mxu0 0.0
    %2773 = vmatprep.subr.mxu0 0.0
    %2774 = vmatpush1.msra.mxu0 0.0
    %2775 = vmatprep.subr.mxu0 0.0
    %2776 = vmatpush1.msra.mxu0 0.0
    %2777 = vmatprep.subr.mxu0 0.0
    %2778 = vmatpush1.msra.mxu0 0.0
    %2779 = vmatprep.subr.mxu0 0.0
    %2780 = vmatpush1.msra.mxu0 0.0
    %2781 = vmatprep.subr.mxu0 0.0
    %2782 = vmatpush1.msra.mxu0 0.0
    %2783 = vmatprep.subr.mxu0 0.0
    %2784 = vmatpush1.msra.mxu0 0.0
    %2785 = vmatprep.subr.mxu0 0.0
    %2786 = vmatpush1.msra.mxu0 0.0
    %2787 = vmatprep.subr.mxu0 0.0
    %2788 = vmatpush1.msra.mxu0 0.0
    %2789 = vmatprep.subr.mxu0 0.0
    %2790 = vmatpush1.msra.mxu0 0.0
    %2791 = vmatprep.subr.mxu0 0.0
    %2792 = vmatpush1.msra.mxu0 0.0
    %2793 = vmatprep.subr.mxu0 0.0
    %2794 = vmatpush1.msra.mxu0 %v2753
    %2795 = vmatprep.subr.mxu0 0.0
    %2796 = vmatpush1.msra.mxu0 %v2752
    %2797 = vmatprep.subr.mxu0 0.0
    %2798 = vmatpush1.msra.mxu0 %v2751
    %2799 = vmatprep.subr.mxu0 0.0
    %2800 = vmatpush1.msra.mxu0 %v2750
    %2801 = vmatprep.subr.mxu0 0.0
    %2802 = vmatpush2.msra.mxu0 0.0
    %2803 = vmatprep.subr.mxu0 0.0
    %2804 = vmatpush2.msra.mxu0 0.0
    %2805 = vmatprep.subr.mxu0 0.0
    %2806 = vmatpush2.msra.mxu0 0.0
    %2807 = vmatprep.subr.mxu0 0.0
    %2808 = vmatpush2.msra.mxu0 0.0
    %2809 = vmatprep.subr.mxu0 0.0
    %2810 = vmatpush2.msra.mxu0 0.0
    %2811 = vmatprep.subr.mxu0 0.0
    %2812 = vmatpush2.msra.mxu0 0.0
    %2813 = vmatprep.subr.mxu0 0.0
    %2814 = vmatpush2.msra.mxu0 0.0
    %2815 = vmatprep.subr.mxu0 0.0
    %2816 = vmatpush2.msra.mxu0 0.0
    %2817 = vmatprep.subr.mxu0 0.0
    %2818 = vmatpush2.msra.mxu0 0.0
    %2819 = vmatprep.subr.mxu0 0.0
    %2820 = vmatpush2.msra.mxu0 0.0
    %2821 = vmatprep.subr.mxu0 0.0
    %2822 = vmatpush2.msra.mxu0 0.0
    %2823 = vmatprep.subr.mxu0 0.0
    %2824 = vmatpush2.msra.mxu0 0.0
    %2825 = vmatprep.subr.mxu0 0.0
    %2826 = vmatpush2.msra.mxu0 0.0
    %2827 = vmatprep.subr.mxu0 0.0
    %2828 = vmatpush2.msra.mxu0 0.0
    %2829 = vmatprep.subr.mxu0 0.0
    %2830 = vmatpush2.msra.mxu0 0.0
    %2831 = vmatprep.subr.mxu0 0.0
    %2832 = vmatpush2.msra.mxu0 0.0
    %2833 = vmatprep.mubr.f32.mxu0 0.0
    %2834 = vmatmul.mubr.f32.gmra.mxu0 %v2764
    %v2835 = vpop.f32.mrf.mxu0
    %v2836 = vadd.f32 %v2761, %v2835
    %v2837 = vpop.f32.mrf.mxu0
    %2838 = vmatprep.mubr.f32.mxu0 0.0
    %2839 = vmatmul.mubr.f32.gmra.mxu0 %v2767
    %v2840 = vpop.f32.mrf.mxu0
    %v2841 = vadd.f32 %v2761, %v2840
    %v2842 = vpop.f32.mrf.mxu0
    %2843 = vdwg.mxu0
    %v2844 = vtanh.pop %v2836
    %v2845 = vtanh.pop %v2841
    %v2846 = vld [vmem:[#allocation2] sm:$0xff]
    %v2847 = vld [vmem:[#allocation2 + $0x8] sm:$0xff]
    %v2848 = vld [vmem:[#allocation2 + $0x10] sm:$0xff]
    %v2849 = vld [vmem:[#allocation2 + $0x18] sm:$0xff]
    %v2850 = vld [vmem:[#allocation2 + $0x20] sm:$0xff]
    %v2851 = vld [vmem:[#allocation2 + $0x28] sm:$0xff]
    %v2852 = vld [vmem:[#allocation2 + $0x30] sm:$0xff]
    %v2853 = vld [vmem:[#allocation2 + $0x38] sm:$0xff]
    %v2854 = vld [vmem:[#allocation2 + $0x40] sm:$0xff]
    %v2855 = vld [vmem:[#allocation2 + $0x48] sm:$0xff]
    %v2856 = vld [vmem:[#allocation2 + $0x50] sm:$0xff]
    %v2857 = vld [vmem:[#allocation2 + $0x58] sm:$0xff]
    %v2858 = vld [vmem:[%s6] sm:$0x7]
    %v2860 = vlaneseq
    %v2861 = vshrl.u32 %v2860, 7
    %v2862 = vsub.s32 0, %v2861
    %v2863 = vrot.slane %v2858, %v2862
    %v2864 = vlaneseq
    %v2865 = vshrl.u32 %v2864, 7
    %v2866 = vsub.s32 1, %v2865
    %v2867 = vrot.slane %v2858, %v2866
    %v2868 = vlaneseq
    %v2869 = vshrl.u32 %v2868, 7
    %v2870 = vsub.s32 2, %v2869
    %v2871 = vrot.slane %v2858, %v2870
    %2884 = vrot.lane.b32.xlu0 %v2846, 96
    %v2885 = vpop.permute.xlu0 %2884
    %2886 = vrot.lane.b32.xlu0 %v2847, 96
    %v2887 = vpop.permute.xlu0 %2886
    %2888 = vrot.lane.b32.xlu0 %v2848, 96
    %v2889 = vpop.permute.xlu0 %2888
    %2890 = vrot.lane.b32.xlu0 %v2849, 96
    %v2891 = vpop.permute.xlu0 %2890
    %2892 = vrot.lane.b32.xlu0 %v2850, 96
    %v2893 = vpop.permute.xlu0 %2892
    %2894 = vrot.lane.b32.xlu0 %v2851, 96
    %v2895 = vpop.permute.xlu0 %2894
    %2896 = vrot.lane.b32.xlu0 %v2852, 96
    %v2897 = vpop.permute.xlu0 %2896
    %2898 = vrot.lane.b32.xlu0 %v2853, 96
    %v2899 = vpop.permute.xlu0 %2898
    %2900 = vrot.lane.b32.xlu0 %v2854, 96
    %v2901 = vpop.permute.xlu0 %2900
    %2902 = vrot.lane.b32.xlu0 %v2855, 96
    %v2903 = vpop.permute.xlu0 %2902
    %2904 = vrot.lane.b32.xlu0 %v2856, 96
    %v2905 = vpop.permute.xlu0 %2904
    %2906 = vrot.lane.b32.xlu0 %v2857, 96
    %v2907 = vpop.permute.xlu0 %2906
    %vm2908 = vcmask 785408
    %v2909 = vsel %vm2908, %v2885, %v2887
    %v2910 = vsel %vm2908, %v2887, %v2889
    %v2911 = vsel %vm2908, %v2891, %v2893
    %v2912 = vsel %vm2908, %v2893, %v2895
    %v2913 = vsel %vm2908, %v2897, %v2899
    %v2914 = vsel %vm2908, %v2899, %v2901
    %v2915 = vsel %vm2908, %v2903, %v2905
    %v2916 = vsel %vm2908, %v2905, %v2907
    %2925 = vrot.lane.b32.xlu0 %v2863, 32
    %v2926 = vpop.permute.xlu0 %2925
    %2927 = vrot.lane.b32.xlu0 %v2867, 32
    %v2928 = vpop.permute.xlu0 %2927
    %2929 = vrot.lane.b32.xlu0 %v2871, 32
    %v2930 = vpop.permute.xlu0 %2929
    %v2931 = vsel %vm44, %v2926, %v2928
    %v2932 = vsel %vm44, %v2928, %v2930
    %v2936 = vsel %vm44, %v2844, 0
    %v2939 = vsel %vm44, %v2845, 0
    %2941 = vmatprep.subr.mxu0 0.0
    %2942 = vmatpush1.msra.mxu0 0.0
    %2943 = vmatprep.subr.mxu0 0.0
    %2944 = vmatpush1.msra.mxu0 0.0
    %2945 = vmatprep.subr.mxu0 0.0
    %2946 = vmatpush1.msra.mxu0 0.0
    %2947 = vmatprep.subr.mxu0 0.0
    %2948 = vmatpush1.msra.mxu0 0.0
    %2949 = vmatprep.subr.mxu0 0.0
    %2950 = vmatpush1.msra.mxu0 0.0
    %2951 = vmatprep.subr.mxu0 0.0
    %2952 = vmatpush1.msra.mxu0 0.0
    %2953 = vmatprep.subr.mxu0 0.0
    %2954 = vmatpush1.msra.mxu0 0.0
    %2955 = vmatprep.subr.mxu0 0.0
    %2956 = vmatpush1.msra.mxu0 0.0
    %2957 = vmatprep.subr.mxu0 0.0
    %2958 = vmatpush1.msra.mxu0 0.0
    %2959 = vmatprep.subr.mxu0 0.0
    %2960 = vmatpush1.msra.mxu0 0.0
    %2961 = vmatprep.subr.mxu0 0.0
    %2962 = vmatpush1.msra.mxu0 0.0
    %2963 = vmatprep.subr.mxu0 0.0
    %2964 = vmatpush1.msra.mxu0 0.0
    %2965 = vmatprep.subr.mxu0 %v2916
    %2966 = vmatpush1.msra.mxu0 %v2915
    %2967 = vmatprep.subr.mxu0 %v2914
    %2968 = vmatpush1.msra.mxu0 %v2913
    %2969 = vmatprep.subr.mxu0 %v2912
    %2970 = vmatpush1.msra.mxu0 %v2911
    %2971 = vmatprep.subr.mxu0 %v2910
    %2972 = vmatpush1.msra.mxu0 %v2909
    %2973 = vmatprep.subr.mxu0 0.0
    %2974 = vmatpush2.msra.mxu0 0.0
    %2975 = vmatprep.subr.mxu0 0.0
    %2976 = vmatpush2.msra.mxu0 0.0
    %2977 = vmatprep.subr.mxu0 0.0
    %2978 = vmatpush2.msra.mxu0 0.0
    %2979 = vmatprep.subr.mxu0 0.0
    %2980 = vmatpush2.msra.mxu0 0.0
    %2981 = vmatprep.subr.mxu0 0.0
    %2982 = vmatpush2.msra.mxu0 0.0
    %2983 = vmatprep.subr.mxu0 0.0
    %2984 = vmatpush2.msra.mxu0 0.0
    %2985 = vmatprep.subr.mxu0 0.0
    %2986 = vmatpush2.msra.mxu0 0.0
    %2987 = vmatprep.subr.mxu0 0.0
    %2988 = vmatpush2.msra.mxu0 0.0
    %2989 = vmatprep.subr.mxu0 0.0
    %2990 = vmatpush2.msra.mxu0 0.0
    %2991 = vmatprep.subr.mxu0 0.0
    %2992 = vmatpush2.msra.mxu0 0.0
    %2993 = vmatprep.subr.mxu0 0.0
    %2994 = vmatpush2.msra.mxu0 0.0
    %2995 = vmatprep.subr.mxu0 0.0
    %2996 = vmatpush2.msra.mxu0 0.0
    %2997 = vmatprep.subr.mxu0 0.0
    %2998 = vmatpush2.msra.mxu0 0.0
    %2999 = vmatprep.subr.mxu0 0.0
    %3000 = vmatpush2.msra.mxu0 0.0
    %3001 = vmatprep.subr.mxu0 0.0
    %3002 = vmatpush2.msra.mxu0 0.0
    %3003 = vmatprep.subr.mxu0 0.0
    %3004 = vmatpush2.msra.mxu0 0.0
    %3005 = vmatprep.mubr.f32.mxu0 0.0
    %3006 = vmatmul.mubr.f32.gmra.mxu0 %v2936
    %v3007 = vpop.f32.mrf.mxu0
    %v3008 = vadd.f32 %v2931, %v3007
    %v3009 = vpop.f32.mrf.mxu0
    %v3010 = vadd.f32 %v2932, %v3009
    %3011 = vmatprep.mubr.f32.mxu0 0.0
    %3012 = vmatmul.mubr.f32.gmra.mxu0 %v2939
    %v3013 = vpop.f32.mrf.mxu0
    %v3014 = vadd.f32 %v2931, %v3013
    %v3015 = vpop.f32.mrf.mxu0
    %v3016 = vadd.f32 %v2932, %v3015
    %3017 = vdwg.mxu0
    %v3018 = vmax.f32 %v3008, 0.0
    %v3019 = vmax.f32 %v3010, 0.0
    %v3020 = vmax.f32 %v3014, 0.0
    %v3021 = vmax.f32 %v3016, 0.0
    %v3022 = vld [vmem:[%s6 + $0x2] sm:$0x7]
    %v3024 = vlaneseq
    %v3025 = vshrl.u32 %v3024, 7
    %v3026 = vsub.s32 0, %v3025
    %v3027 = vrot.slane %v3022, %v3026
    %v3028 = vlaneseq
    %v3029 = vshrl.u32 %v3028, 7
    %v3030 = vsub.s32 1, %v3029
    %v3031 = vrot.slane %v3022, %v3030
    %v3032 = vlaneseq
    %v3033 = vshrl.u32 %v3032, 7
    %v3034 = vsub.s32 2, %v3033
    %v3035 = vrot.slane %v3022, %v3034
    %3036 = vrot.lane.b32.xlu0 %v3027, 32
    %v3037 = vpop.permute.xlu0 %3036
    %3038 = vrot.lane.b32.xlu0 %v3031, 32
    %v3039 = vpop.permute.xlu0 %3038
    %3040 = vrot.lane.b32.xlu0 %v3035, 32
    %v3041 = vpop.permute.xlu0 %3040
    %v3042 = vsel %vm44, %v3037, %v3039
    %v3043 = vsel %vm44, %v3039, %v3041
    %v3046 = vadd.f32 %v3018, %v3042
    %v3047 = vadd.f32 %v3019, %v3043
    %v3048 = vadd.f32 %v3020, %v3042
    %v3049 = vadd.f32 %v3021, %v3043
    %v3050 = vmax.f32 %v3046, %v3047
    %3051 = vmax.xlane.f32.xlu0 %v3050
    %v3052 = vpop.xlane.xlu0 %3051
    %v3053 = vmax.f32 %v3048, %v3049
    %3054 = vmax.xlane.f32.xlu0 %v3053
    %v3055 = vpop.xlane.xlu0 %3054
    %v3056 = vsub.f32 %v3046, %v3052
    %v3057 = vsub.f32 %v3047, %v3052
    %v3058 = vsub.f32 %v3048, %v3055
    %v3059 = vsub.f32 %v3049, %v3055
    %v3060 = vmul.f32 %v3056, 1.442695
    %v3061 = vpow.pop %v3060
    %v3062 = vmul.f32 %v3057, 1.442695
    %v3063 = vpow.pop %v3062
    %v3064 = vmul.f32 %v3058, 1.442695
    %v3065 = vpow.pop %v3064
    %v3066 = vmul.f32 %v3059, 1.442695
    %v3067 = vpow.pop %v3066
    %v3068 = vadd.f32 %v3061, %v3063
    %3069 = vadd.xlane.f32.xlu0 %v3068
    %v3070 = vpop.xlane.xlu0 %3069
    %v3071 = vadd.f32 %v3065, %v3067
    %3072 = vadd.xlane.f32.xlu0 %v3071
    %v3073 = vpop.xlane.xlu0 %3072
    %v3074 = vrcp.pop %v3070
    %v3075 = vrcp.pop %v3073
    %v3076 = vmul.f32 %v3061, %v3074
    %v3077 = vmul.f32 %v3063, %v3074
    %v3078 = vmul.f32 %v3065, %v3075
    %v3079 = vmul.f32 %v3067, %v3075
    %3080 = vst [vmem:[#allocation5] sm:$0xff] %v3076
    %3081 = vst [vmem:[#allocation5 + $0x8] sm:$0xff] %v3077
    %3082 = vst [vmem:[#allocation5 + $0x10] sm:$0xff] %v3078
    %3083 = vst [vmem:[#allocation5 + $0x18] sm:$0xff] %v3079
    // Predicated region
    $region34: #{tpu_custom_call.1} parent=1 // pred_check
      _
    $region35: #{tpu_custom_call.1} parent=1 // pred_check_branch
      %3085 = sbr.rel (0) target = $region37
    $region36: #{tpu_custom_call.1} parent=1 // pred_region
      %s3087 = ssub.s32 512, 512
      %3088 = vsyncadd [#allocation4], %s3087
      %s3089 = sshll.u32 [#allocation5], 4
      %s3090 = int_to_ptr.vmem [resolvable:$true] %s3089
      %3095 = dma.vmem_to_hbm [thread:$0]  %s3090, 512, %s7, [#allocation4], 256, 256, 16
    $region37: #{tpu_custom_call.1} parent=1 // pred_fallthru
      _
    // Predicated region
    $region38: #{tpu_custom_call.1} parent=1 // pred_check
      _
    $region39: #{tpu_custom_call.1} parent=1 // pred_check_branch
      %3097 = sbr.rel (0) target = $region41
    $region40: #{tpu_custom_call.1} parent=1 // pred_region
      %3098 = dma.done [#allocation4], 512
    $region41: #{tpu_custom_call.1} parent=1 // pred_fallthru
      _
    %3099 = vsyncpa [#allocation3], 1
    %3100 = vsyncpa [#allocation4], 1

</llo_original>
